<compile_context>
chip_gen: v7x
topology: tpu7x:2x2x1
jax: 0.10.0
libtpu: 0.0.40
codegen_flags: <defaults>
</compile_context>

<pallas_src>
import functools

import jax
import jax.numpy as jnp
from jax.experimental import pallas as pl
from jax.experimental.pallas import tpu as pltpu


def _round_up(x, m):
    return (x + m - 1) // m * m


# ----------------------------------------------------------------------------
# Fused Pallas kernel: channel-major matmul + BatchNorm(eval) affine + ReLU
#   out[r, m] = relu(((wx @ x) + (wc @ coords))[r, m] * scale[r] + bias[r])
# ----------------------------------------------------------------------------

def _fused_mm_kernel(x_ref, c_ref, wx_ref, wc_ref, s_ref, b_ref, o_ref):
    # Single-K-block specialization: no accumulator scratch, no pl.when.
    acc = jnp.dot(wx_ref[...], x_ref[...], preferred_element_type=jnp.float32)
    acc = acc + jnp.dot(wc_ref[...], c_ref[...],
                        preferred_element_type=jnp.float32)
    v = acc * s_ref[...] + b_ref[...]            # BN(eval) per-row affine, f32
    o_ref[...] = jnp.maximum(v, 0.0).astype(o_ref.dtype)


def fused_matmul_bn_relu(x, coords, wx, wc, scale, bias, *,
                         out_dtype=jnp.bfloat16, m_blocks=2):
    """relu((wx @ x + wc @ coords) * scale[:, None] + bias[:, None]).

    x:      [Kx, M]  activations (channel-major; pixels on the lane axis)
    coords: [Kc, M]  coordinate channels (tiny)
    wx:     [R, Kx]  weight;  wc: [R, Kc]  coordinate weight
    scale/bias: [R]  folded BatchNorm (inference) affine
    Output: [R, M] in `out_dtype` (bf16 for intermediates, f32 for the final
    layer).  Operands are fed to the MXU as bf16 with f32 accumulation.
    """
    kx, m = x.shape
    kc, m2 = coords.shape
    r, kx2 = wx.shape
    assert m == m2 and kx == kx2 and wc.shape == (r, kc)

    # Pad small contraction dims up to a sublane multiple (zero rows/cols).
    kxp = _round_up(kx, 8)
    kcp = _round_up(kc, 8)
    if kxp != kx:
        x = jnp.pad(x, ((0, kxp - kx), (0, 0)))
        wx = jnp.pad(wx, ((0, 0), (0, kxp - kx)))
    if kcp != kc:
        coords = jnp.pad(coords, ((0, kcp - kc), (0, 0)))
        wc = jnp.pad(wc, ((0, 0), (0, kcp - kc)))

    # M tiling: pixels on the lane axis -> tiles are multiples of 128.
    # m_blocks=2 gives one block per v7x TensorCore; on v5e/v6e the extra
    # serial grid step costs ~0.35us and is negligible.
    if m <= 128:
        tm, mp = m, m
    else:
        tm = _round_up(pl.cdiv(m, m_blocks), 128)
        mp = _round_up(m, tm)
    if mp != m:
        x = jnp.pad(x, ((0, 0), (0, mp - m)))
        coords = jnp.pad(coords, ((0, 0), (0, mp - m)))

    x = x.astype(jnp.bfloat16)
    coords = coords.astype(jnp.bfloat16)
    wx = wx.astype(jnp.bfloat16)
    wc = wc.astype(jnp.bfloat16)
    s2 = scale.astype(jnp.float32).reshape(r, 1)
    b2 = bias.astype(jnp.float32).reshape(r, 1)

    out_item = 2 if out_dtype == jnp.bfloat16 else 4
    cost = pl.CostEstimate(
        flops=2 * r * (kxp + kcp) * mp,
        transcendentals=0,
        bytes_accessed=(x.size + coords.size + wx.size + wc.size) * 2
        + (s2.size + b2.size) * 4 + r * mp * out_item)

    out = pl.pallas_call(
        _fused_mm_kernel,
        out_shape=jax.ShapeDtypeStruct((r, mp), out_dtype),
        grid_spec=pltpu.PrefetchScalarGridSpec(
            num_scalar_prefetch=0,
            grid=(mp // tm,),
            in_specs=[pl.BlockSpec((kxp, tm), lambda i: (0, i)),
                      pl.BlockSpec((kcp, tm), lambda i: (0, i)),
                      pl.BlockSpec((r, kxp), lambda i: (0, 0)),
                      pl.BlockSpec((r, kcp), lambda i: (0, 0)),
                      pl.BlockSpec((r, 1), lambda i: (0, 0)),
                      pl.BlockSpec((r, 1), lambda i: (0, 0))],
            out_specs=pl.BlockSpec((r, tm), lambda i: (0, i))),
        compiler_params=pltpu.CompilerParams(
            dimension_semantics=("parallel",)),
        cost_estimate=cost,
    )(x, coords, wx, wc, s2, b2)

    if mp != m:
        out = out[:, :m]
    return out


# ----------------------------------------------------------------------------
# CoordConv helpers
# ----------------------------------------------------------------------------

def _coord_grid(h, w):
    """(y, x, r) coordinate channels on an h x w grid, each in [-1, 1]."""
    ys = 2.0 * jnp.arange(h, dtype=jnp.float32) / max(h - 1, 1) - 1.0
    xs = 2.0 * jnp.arange(w, dtype=jnp.float32) / max(w - 1, 1) - 1.0
    yy = jnp.broadcast_to(ys[:, None], (h, w))
    xx = jnp.broadcast_to(xs[None, :], (h, w))
    rr = jnp.sqrt(yy ** 2 + xx ** 2)
    rr = rr / jnp.maximum(jnp.max(rr), 1e-12)
    return jnp.stack([yy, xx, rr], axis=0)                  # [3, h, w]


def add_coords(x_nhwc):
    """AddCoordinates: prepend (y, x, r) channels (NHWC).  Reference only."""
    n, h, w, _ = x_nhwc.shape
    cg = jnp.transpose(_coord_grid(h, w), (1, 2, 0))
    cg = jnp.broadcast_to(cg[None], (n, h, w, 3))
    return jnp.concatenate([cg, x_nhwc], axis=-1)


def _phase_plan(kh, kw, stride, padding):
    """Sub-pixel decomposition of a strided ConvTranspose: for each output
    phase (py, px), the kernel taps (ky, kx) and input shift (dy, dx) with
    out[s*qy+py, s*qx+px] += x[qy+dy, qx+dx] @ w[ky, kx]."""
    s, p = stride, padding
    plan = []
    for py in range(s):
        for px in range(s):
            taps = []
            for ky in range(kh):
                if (py + p - ky) % s:
                    continue
                dy = (py + p - ky) // s
                for kx in range(kw):
                    if (px + p - kx) % s:
                        continue
                    dx = (px + p - kx) // s
                    taps.append((ky, kx, dy, dx))
            plan.append(((py, px), taps))
    return plan


# ----------------------------------------------------------------------------
# Decoder forward (Pallas) and pure-XLA reference
# ----------------------------------------------------------------------------

def decoder_forward(x_nchw, P, stride, padding, output_padding):
    N, cin, H, W = x_nchw.shape
    w1, wt, w2 = P["w1"], P["wt"], P["w2"]
    mid = w1.shape[1]
    kh, kw = wt.shape[0], wt.shape[1]
    cout = w2.shape[1]
    s, p = stride, padding

    # ---------------- conv1: 1x1 CoordConv + BN + ReLU ----------------------
    m1 = N * H * W
    x1 = jnp.transpose(x_nchw, (1, 0, 2, 3)).reshape(cin, m1)   # [Cin, M1]
    cg1 = _coord_grid(H, W)                                     # [3, H, W]
    c1 = jnp.tile(cg1.reshape(3, H * W), (1, N))                # [3, M1]
    y1 = fused_matmul_bn_relu(x1, c1, w1[3:, :].T, w1[:3, :].T,
                              P["bn1"][0], P["bn1"][1],
                              out_dtype=jnp.bfloat16)           # [mid, M1]

    # ---------------- tp_conv: CoordConvTranspose + BN + ReLU ---------------
    Ho = (H - 1) * s - 2 * p + kh + output_padding
    Wo = (W - 1) * s - 2 * p + kw + output_padding
    qhs = [len(range(py, Ho, s)) for py in range(s)]
    qws = [len(range(px, Wo, s)) for px in range(s)]
    # TODO(synk): phases with unequal output extents (Ho or Wo not a multiple
    # of the stride) would need per-phase padding; not needed for this Decoder.
    assert len(set(qhs)) == 1 and len(set(qws)) == 1
    qh, qw = qhs[0], qws[0]
    mq = N * qh * qw

    plan = _phase_plan(kh, kw, s, p)
    shifts = sorted({(dy, dx) for _, taps in plan for (_, _, dy, dx) in taps})
    shift_idx = {sh: i for i, sh in enumerate(shifts)}
    nsh = len(shifts)
    dys = [dy for dy, _ in shifts]
    dxs = [dx for _, dx in shifts]
    pt = max(0, -min(dys)); pb = max(0, qh - 1 + max(dys) - (H - 1))
    pL = max(0, -min(dxs)); pR = max(0, qw - 1 + max(dxs) - (W - 1))

    # Shifted copies of conv1's output (and of the input coordinate grid):
    # rows of the im2col matrix, columns are the per-phase output pixels.
    y1_sp = y1.reshape(mid, N, H, W)
    y1_pad = jnp.pad(y1_sp, ((0, 0), (0, 0), (pt, pb), (pL, pR)))
    cg1_pad = jnp.pad(cg1, ((0, 0), (pt, pb), (pL, pR)))
    x_parts, c_parts = [], []
    for (dy, dx) in shifts:
        x_parts.append(y1_pad[:, :, dy + pt:dy + pt + qh, dx + pL:dx + pL + qw])
        c_parts.append(cg1_pad[:, dy + pt:dy + pt + qh, dx + pL:dx + pL + qw])
    x_big = jnp.concatenate(x_parts, axis=0).reshape(nsh * mid, mq)
    c_big = jnp.tile(jnp.concatenate(c_parts, axis=0).reshape(nsh * 3, qh * qw),
                     (1, N))

    # Fused weight: rows r = c * s^2 + phase (channel-major, phase-minor) so
    # the matmul output reshapes straight into conv2's input with NO scatter.
    ss = s * s
    wt_x = jnp.zeros((mid * ss, nsh * mid), jnp.float32)
    wt_c = jnp.zeros((mid * ss, nsh * 3), jnp.float32)
    for (py, px), taps in plan:
        ph = py * s + px
        for (ky, kx, dy, dx) in taps:
            si = shift_idx[(dy, dx)]
            tap = wt[ky, kx]                                   # [mid+3, mid]
            wt_x = wt_x.at[ph::ss, si * mid:(si + 1) * mid].set(tap[3:, :].T)
            wt_c = wt_c.at[ph::ss, si * 3:(si + 1) * 3].set(tap[:3, :].T)
    sc2 = jnp.repeat(P["bn2"][0], ss)
    bi2 = jnp.repeat(P["bn2"][1], ss)
    y2 = fused_matmul_bn_relu(x_big, c_big, wt_x, wt_c, sc2, bi2,
                              out_dtype=jnp.bfloat16)          # [mid*ss, mq]

    # ---------------- conv2: 1x1 CoordConv + BN + ReLU ----------------------
    # 1x1 convs are permutation-invariant over pixels: keep the phase-major
    # pixel order (plain reshape) and undo it only in the final transpose.
    m3 = ss * mq
    x3 = y2.reshape(mid, m3)                                   # [mid, M3]
    cg2 = _coord_grid(Ho, Wo)                                  # [3, Ho, Wo]
    c3_parts = []
    for (py, px), _ in plan:
        c_ph = cg2[:, py::s, px::s].reshape(3, qh * qw)
        c3_parts.append(jnp.tile(c_ph, (1, N)))
    c3 = jnp.concatenate(c3_parts, axis=1)                     # [3, M3]
    o = fused_matmul_bn_relu(x3, c3, w2[3:, :].T, w2[:3, :].T,
                             P["bn3"][0], P["bn3"][1],
                             out_dtype=jnp.float32)            # [cout, M3]

    # Depth-to-space + channel-major -> NCHW, once, on the final output.
    o = o.reshape(cout, s, s, N, qh, qw)
    o = jnp.transpose(o, (3, 0, 4, 1, 5, 2)).reshape(N, cout, Ho, Wo)
    return o


def decoder_reference(x_nchw, P, stride, padding, output_padding):
    """Pure-XLA reference (same bf16 operand rounding, f32 accumulation)."""
    q = lambda t: t.astype(jnp.bfloat16).astype(jnp.float32)
    hi = jax.lax.Precision.HIGHEST

    def bn_relu(t, bn):
        sc, bi = bn
        return jnp.maximum(t * sc + bi, 0.0)

    x = jnp.transpose(x_nchw, (0, 2, 3, 1)).astype(jnp.float32)
    # conv1 (1x1 CoordConv)
    xa = add_coords(x)
    y = jnp.einsum("nhwc,cd->nhwd", q(xa), q(P["w1"]), precision=hi)
    y = bn_relu(y, P["bn1"])
    # tp_conv: transposed conv == input-dilated conv with flipped kernel
    ya = add_coords(y)
    kh, kw = P["wt"].shape[:2]
    wf = P["wt"][::-1, ::-1]
    z = jax.lax.conv_general_dilated(
        q(ya), q(wf), window_strides=(1, 1),
        padding=((kh - 1 - padding, kh - 1 - padding + output_padding),
                 (kw - 1 - padding, kw - 1 - padding + output_padding)),
        lhs_dilation=(stride, stride), rhs_dilation=(1, 1),
        dimension_numbers=("NHWC", "HWIO", "NHWC"), precision=hi)
    z = bn_relu(z, P["bn2"])
    # conv2 (1x1 CoordConv)
    za = add_coords(z)
    o = jnp.einsum("nhwc,cd->nhwd", q(za), q(P["w2"]), precision=hi)
    o = bn_relu(o, P["bn3"])
    return jnp.transpose(o, (0, 3, 1, 2))


# ----------------------------------------------------------------------------
# Deterministic synthetic parameters
# ----------------------------------------------------------------------------

class ParamGen:
    def __init__(self, seed=0):
        self._key = jax.random.PRNGKey(seed)

    def _next(self):
        self._key, k = jax.random.split(self._key)
        return k

    def dense(self, fan_in, fan_out):
        return jax.random.normal(self._next(), (fan_in, fan_out),
                                 jnp.float32) * (2.0 / fan_in) ** 0.5

    def convt(self, kh, kw, cin, cout):
        fan_in = kh * kw * cin
        return jax.random.normal(self._next(), (kh, kw, cin, cout),
                                 jnp.float32) * (2.0 / fan_in) ** 0.5

    def bn(self, c, eps=1e-5):
        gamma = 1.0 + 0.1 * jax.random.normal(self._next(), (c,), jnp.float32)
        beta = 0.1 * jax.random.normal(self._next(), (c,), jnp.float32)
        mean = 0.05 * jax.random.normal(self._next(), (c,), jnp.float32)
        var = jnp.abs(1.0 + 0.1 * jax.random.normal(self._next(), (c,),
                                                    jnp.float32))
        scale = gamma / jnp.sqrt(var + eps)
        bias = beta - mean * scale
        return (scale, bias)


def make_decoder_params(seed, in_planes, out_planes, kernel_size):
    # TODO(synk): PyTorch-trained weights / BN running statistics are replaced
    # by deterministic synthetic values (BN evaluated in inference mode).
    pg = ParamGen(seed)
    mid = in_planes // 4
    return {
        "w1": pg.dense(in_planes + 3, mid), "bn1": pg.bn(mid),
        "wt": pg.convt(kernel_size, kernel_size, mid + 3, mid),
        "bn2": pg.bn(mid),
        "w2": pg.dense(mid + 3, out_planes), "bn3": pg.bn(out_planes),
    }


# ----------------------------------------------------------------------------
# Demo / self-check
# ----------------------------------------------------------------------------

if __name__ == "__main__":
    IN_PLANES, OUT_PLANES = 64, 64
    KSIZE, STRIDE, PAD, OUT_PAD = 3, 2, 1, 1
    N, H, W = 2, 16, 16

    key = jax.random.PRNGKey(0)
    x = jax.random.normal(key, (N, IN_PLANES, H, W), jnp.float32)
    params = make_decoder_params(seed=0, in_planes=IN_PLANES,
                                 out_planes=OUT_PLANES, kernel_size=KSIZE)

    fwd = jax.jit(functools.partial(decoder_forward, stride=STRIDE,
                                    padding=PAD, output_padding=OUT_PAD))
    out = jax.block_until_ready(fwd(x, params))

    ho = (H - 1) * STRIDE - 2 * PAD + KSIZE + OUT_PAD
    wo = (W - 1) * STRIDE - 2 * PAD + KSIZE + OUT_PAD
    assert out.shape == (N, OUT_PLANES, ho, wo), out.shape
    assert bool(jnp.all(jnp.isfinite(out)))
    assert bool(jnp.all(out >= 0.0))                       # ReLU outputs

    ref = decoder_reference(x, params, STRIDE, PAD, OUT_PAD)
    max_err = float(jnp.max(jnp.abs(out - ref)))
    assert jnp.allclose(out, ref, rtol=2e-2, atol=2e-2), f"max abs err {max_err}"

    print("KERNEL_OK")
</pallas_src>

<mosaic_0001>
module attributes {stable_mosaic.version = 11 : i64} {
  func.func @_fused_mm_kernel(%arg0: i32, %arg1: memref<64x256xbf16, #tpu.memory_space<vmem>>, %arg2: memref<8x256xbf16, #tpu.memory_space<vmem>>, %arg3: memref<16x64xbf16, #tpu.memory_space<vmem>>, %arg4: memref<16x8xbf16, #tpu.memory_space<vmem>>, %arg5: memref<16x1xf32, #tpu.memory_space<vmem>>, %arg6: memref<16x1xf32, #tpu.memory_space<vmem>>, %arg7: memref<16x256xbf16, #tpu.memory_space<vmem>>) attributes {dimension_semantics = [#tpu.dimension_semantics<parallel>], iteration_bounds = array<i64: 2>, scalar_prefetch = 0 : i64, scratch_operands = 0 : i64, tpu.core_type = #tpu.core_type<tc>, window_params = [{transform_indices = @transform_0, window_bounds = array<i64: 64, 256>}, {transform_indices = @transform_1, window_bounds = array<i64: 8, 256>}, {pipeline_mode = #tpu.pipeline_mode<synchronous>, transform_indices = @transform_2, window_bounds = array<i64: 16, 64>}, {pipeline_mode = #tpu.pipeline_mode<synchronous>, transform_indices = @transform_3, window_bounds = array<i64: 16, 8>}, {pipeline_mode = #tpu.pipeline_mode<synchronous>, transform_indices = @transform_4, window_bounds = array<i64: 16, 1>}, {pipeline_mode = #tpu.pipeline_mode<synchronous>, transform_indices = @transform_5, window_bounds = array<i64: 16, 1>}, {transform_indices = @transform_6, window_bounds = array<i64: 16, 256>}]} {
    %c0 = arith.constant 0 : index
    %c0_0 = arith.constant 0 : index
    %0 = vector.load %arg3[%c0, %c0_0] : memref<16x64xbf16, #tpu.memory_space<vmem>>, vector<16x64xbf16>
    %c0_1 = arith.constant 0 : index
    %c0_2 = arith.constant 0 : index
    %1 = vector.load %arg1[%c0_1, %c0_2] : memref<64x256xbf16, #tpu.memory_space<vmem>>, vector<64x256xbf16>
    %cst = arith.constant dense<0.000000e+00> : vector<16x256xf32>
    %2 = tpu.matmul %0, %1, %cst {dimension_numbers = #tpu.dot_dimension_numbers<[1], [0], [0], [1], [0, 0, 1, 1], [], []>} : vector<16x64xbf16>, vector<64x256xbf16>, vector<16x256xf32> -> vector<16x256xf32>
    %c0_3 = arith.constant 0 : index
    %c0_4 = arith.constant 0 : index
    %3 = vector.load %arg4[%c0_3, %c0_4] : memref<16x8xbf16, #tpu.memory_space<vmem>>, vector<16x8xbf16>
    %c0_5 = arith.constant 0 : index
    %c0_6 = arith.constant 0 : index
    %4 = vector.load %arg2[%c0_5, %c0_6] : memref<8x256xbf16, #tpu.memory_space<vmem>>, vector<8x256xbf16>
    %cst_7 = arith.constant dense<0.000000e+00> : vector<16x256xf32>
    %5 = tpu.matmul %3, %4, %cst_7 {dimension_numbers = #tpu.dot_dimension_numbers<[1], [0], [0], [1], [0, 0, 1, 1], [], []>} : vector<16x8xbf16>, vector<8x256xbf16>, vector<16x256xf32> -> vector<16x256xf32>
    %6 = arith.addf %2, %5 : vector<16x256xf32>
    %c0_8 = arith.constant 0 : index
    %c0_9 = arith.constant 0 : index
    %7 = vector.load %arg5[%c0_8, %c0_9] : memref<16x1xf32, #tpu.memory_space<vmem>>, vector<16x1xf32>
    %8 = vector.broadcast %7 : vector<16x1xf32> to vector<16x256xf32>
    %9 = arith.mulf %6, %8 : vector<16x256xf32>
    %c0_10 = arith.constant 0 : index
    %c0_11 = arith.constant 0 : index
    %10 = vector.load %arg6[%c0_10, %c0_11] : memref<16x1xf32, #tpu.memory_space<vmem>>, vector<16x1xf32>
    %11 = vector.broadcast %10 : vector<16x1xf32> to vector<16x256xf32>
    %12 = arith.addf %9, %11 : vector<16x256xf32>
    %cst_12 = arith.constant 0.000000e+00 : f32
    %13 = vector.broadcast %cst_12 : f32 to vector<16x256xf32>
    %14 = arith.maximumf %12, %13 : vector<16x256xf32>
    %15 = arith.truncf %14 : vector<16x256xf32> to vector<16x256xbf16>
    %c0_13 = arith.constant 0 : index
    %c0_14 = arith.constant 0 : index
    %16 = vector.load %arg7[%c0_13, %c0_14] : memref<16x256xbf16, #tpu.memory_space<vmem>>, vector<16x256xbf16>
    tpu.vector_store %arg7[%c0_13, %c0_14], %15 {strides = array<i32>} : memref<16x256xbf16, #tpu.memory_space<vmem>>, vector<16x256xbf16>,
    return
  }
  func.func @transform_0(%arg0: i32) -> (i32, i32) {
    %c0_i32 = arith.constant 0 : i32
    %c0_i32_0 = arith.constant 0 : i32
    return %c0_i32, %arg0 : i32, i32
  }
  func.func @transform_1(%arg0: i32) -> (i32, i32) {
    %c0_i32 = arith.constant 0 : i32
    %c0_i32_0 = arith.constant 0 : i32
    return %c0_i32, %arg0 : i32, i32
  }
  func.func @transform_2(%arg0: i32) -> (i32, i32) {
    %c0_i32 = arith.constant 0 : i32
    %c0_i32_0 = arith.constant 0 : i32
    %c0_i32_1 = arith.constant 0 : i32
    return %c0_i32, %c0_i32_0 : i32, i32
  }
  func.func @transform_3(%arg0: i32) -> (i32, i32) {
    %c0_i32 = arith.constant 0 : i32
    %c0_i32_0 = arith.constant 0 : i32
    %c0_i32_1 = arith.constant 0 : i32
    return %c0_i32, %c0_i32_0 : i32, i32
  }
  func.func @transform_4(%arg0: i32) -> (i32, i32) {
    %c0_i32 = arith.constant 0 : i32
    %c0_i32_0 = arith.constant 0 : i32
    %c0_i32_1 = arith.constant 0 : i32
    return %c0_i32, %c0_i32_0 : i32, i32
  }
  func.func @transform_5(%arg0: i32) -> (i32, i32) {
    %c0_i32 = arith.constant 0 : i32
    %c0_i32_0 = arith.constant 0 : i32
    %c0_i32_1 = arith.constant 0 : i32
    return %c0_i32, %c0_i32_0 : i32, i32
  }
  func.func @transform_6(%arg0: i32) -> (i32, i32) {
    %c0_i32 = arith.constant 0 : i32
    %c0_i32_0 = arith.constant 0 : i32
    return %c0_i32, %arg0 : i32, i32
  }
}

module attributes {stable_mosaic.version = 11 : i64} {
  func.func @_fused_mm_kernel(%arg0: i32, %arg1: memref<64x256xbf16, #tpu.memory_space<vmem>>, %arg2: memref<16x256xbf16, #tpu.memory_space<vmem>>, %arg3: memref<64x64xbf16, #tpu.memory_space<vmem>>, %arg4: memref<64x16xbf16, #tpu.memory_space<vmem>>, %arg5: memref<64x1xf32, #tpu.memory_space<vmem>>, %arg6: memref<64x1xf32, #tpu.memory_space<vmem>>, %arg7: memref<64x256xbf16, #tpu.memory_space<vmem>>) attributes {dimension_semantics = [#tpu.dimension_semantics<parallel>], iteration_bounds = array<i64: 2>, scalar_prefetch = 0 : i64, scratch_operands = 0 : i64, tpu.core_type = #tpu.core_type<tc>, window_params = [{transform_indices = @transform_0, window_bounds = array<i64: 64, 256>}, {transform_indices = @transform_1, window_bounds = array<i64: 16, 256>}, {pipeline_mode = #tpu.pipeline_mode<synchronous>, transform_indices = @transform_2, window_bounds = array<i64: 64, 64>}, {pipeline_mode = #tpu.pipeline_mode<synchronous>, transform_indices = @transform_3, window_bounds = array<i64: 64, 16>}, {pipeline_mode = #tpu.pipeline_mode<synchronous>, transform_indices = @transform_4, window_bounds = array<i64: 64, 1>}, {pipeline_mode = #tpu.pipeline_mode<synchronous>, transform_indices = @transform_5, window_bounds = array<i64: 64, 1>}, {transform_indices = @transform_6, window_bounds = array<i64: 64, 256>}]} {
    %c0 = arith.constant 0 : index
    %c0_0 = arith.constant 0 : index
    %0 = vector.load %arg3[%c0, %c0_0] : memref<64x64xbf16, #tpu.memory_space<vmem>>, vector<64x64xbf16>
    %c0_1 = arith.constant 0 : index
    %c0_2 = arith.constant 0 : index
    %1 = vector.load %arg1[%c0_1, %c0_2] : memref<64x256xbf16, #tpu.memory_space<vmem>>, vector<64x256xbf16>
    %cst = arith.constant dense<0.000000e+00> : vector<64x256xf32>
    %2 = tpu.matmul %0, %1, %cst {dimension_numbers = #tpu.dot_dimension_numbers<[1], [0], [0], [1], [0, 0, 1, 1], [], []>} : vector<64x64xbf16>, vector<64x256xbf16>, vector<64x256xf32> -> vector<64x256xf32>
    %c0_3 = arith.constant 0 : index
    %c0_4 = arith.constant 0 : index
    %3 = vector.load %arg4[%c0_3, %c0_4] : memref<64x16xbf16, #tpu.memory_space<vmem>>, vector<64x16xbf16>
    %c0_5 = arith.constant 0 : index
    %c0_6 = arith.constant 0 : index
    %4 = vector.load %arg2[%c0_5, %c0_6] : memref<16x256xbf16, #tpu.memory_space<vmem>>, vector<16x256xbf16>
    %cst_7 = arith.constant dense<0.000000e+00> : vector<64x256xf32>
    %5 = tpu.matmul %3, %4, %cst_7 {dimension_numbers = #tpu.dot_dimension_numbers<[1], [0], [0], [1], [0, 0, 1, 1], [], []>} : vector<64x16xbf16>, vector<16x256xbf16>, vector<64x256xf32> -> vector<64x256xf32>
    %6 = arith.addf %2, %5 : vector<64x256xf32>
    %c0_8 = arith.constant 0 : index
    %c0_9 = arith.constant 0 : index
    %7 = vector.load %arg5[%c0_8, %c0_9] : memref<64x1xf32, #tpu.memory_space<vmem>>, vector<64x1xf32>
    %8 = vector.broadcast %7 : vector<64x1xf32> to vector<64x256xf32>
    %9 = arith.mulf %6, %8 : vector<64x256xf32>
    %c0_10 = arith.constant 0 : index
    %c0_11 = arith.constant 0 : index
    %10 = vector.load %arg6[%c0_10, %c0_11] : memref<64x1xf32, #tpu.memory_space<vmem>>, vector<64x1xf32>
    %11 = vector.broadcast %10 : vector<64x1xf32> to vector<64x256xf32>
    %12 = arith.addf %9, %11 : vector<64x256xf32>
    %cst_12 = arith.constant 0.000000e+00 : f32
    %13 = vector.broadcast %cst_12 : f32 to vector<64x256xf32>
    %14 = arith.maximumf %12, %13 : vector<64x256xf32>
    %15 = arith.truncf %14 : vector<64x256xf32> to vector<64x256xbf16>
    %c0_13 = arith.constant 0 : index
    %c0_14 = arith.constant 0 : index
    %16 = vector.load %arg7[%c0_13, %c0_14] : memref<64x256xbf16, #tpu.memory_space<vmem>>, vector<64x256xbf16>
    tpu.vector_store %arg7[%c0_13, %c0_14], %15 {strides = array<i32>} : memref<64x256xbf16, #tpu.memory_space<vmem>>, vector<64x256xbf16>,
    return
  }
  func.func @transform_0(%arg0: i32) -> (i32, i32) {
    %c0_i32 = arith.constant 0 : i32
    %c0_i32_0 = arith.constant 0 : i32
    return %c0_i32, %arg0 : i32, i32
  }
  func.func @transform_1(%arg0: i32) -> (i32, i32) {
    %c0_i32 = arith.constant 0 : i32
    %c0_i32_0 = arith.constant 0 : i32
    return %c0_i32, %arg0 : i32, i32
  }
  func.func @transform_2(%arg0: i32) -> (i32, i32) {
    %c0_i32 = arith.constant 0 : i32
    %c0_i32_0 = arith.constant 0 : i32
    %c0_i32_1 = arith.constant 0 : i32
    return %c0_i32, %c0_i32_0 : i32, i32
  }
  func.func @transform_3(%arg0: i32) -> (i32, i32) {
    %c0_i32 = arith.constant 0 : i32
    %c0_i32_0 = arith.constant 0 : i32
    %c0_i32_1 = arith.constant 0 : i32
    return %c0_i32, %c0_i32_0 : i32, i32
  }
  func.func @transform_4(%arg0: i32) -> (i32, i32) {
    %c0_i32 = arith.constant 0 : i32
    %c0_i32_0 = arith.constant 0 : i32
    %c0_i32_1 = arith.constant 0 : i32
    return %c0_i32, %c0_i32_0 : i32, i32
  }
  func.func @transform_5(%arg0: i32) -> (i32, i32) {
    %c0_i32 = arith.constant 0 : i32
    %c0_i32_0 = arith.constant 0 : i32
    %c0_i32_1 = arith.constant 0 : i32
    return %c0_i32, %c0_i32_0 : i32, i32
  }
  func.func @transform_6(%arg0: i32) -> (i32, i32) {
    %c0_i32 = arith.constant 0 : i32
    %c0_i32_0 = arith.constant 0 : i32
    return %c0_i32, %arg0 : i32, i32
  }
}

module attributes {stable_mosaic.version = 11 : i64} {
  func.func @_fused_mm_kernel(%arg0: i32, %arg1: memref<16x1024xbf16, #tpu.memory_space<vmem>>, %arg2: memref<8x1024xbf16, #tpu.memory_space<vmem>>, %arg3: memref<64x16xbf16, #tpu.memory_space<vmem>>, %arg4: memref<64x8xbf16, #tpu.memory_space<vmem>>, %arg5: memref<64x1xf32, #tpu.memory_space<vmem>>, %arg6: memref<64x1xf32, #tpu.memory_space<vmem>>, %arg7: memref<64x1024xf32, #tpu.memory_space<vmem>>) attributes {dimension_semantics = [#tpu.dimension_semantics<parallel>], iteration_bounds = array<i64: 2>, scalar_prefetch = 0 : i64, scratch_operands = 0 : i64, tpu.core_type = #tpu.core_type<tc>, window_params = [{transform_indices = @transform_0, window_bounds = array<i64: 16, 1024>}, {transform_indices = @transform_1, window_bounds = array<i64: 8, 1024>}, {pipeline_mode = #tpu.pipeline_mode<synchronous>, transform_indices = @transform_2, window_bounds = array<i64: 64, 16>}, {pipeline_mode = #tpu.pipeline_mode<synchronous>, transform_indices = @transform_3, window_bounds = array<i64: 64, 8>}, {pipeline_mode = #tpu.pipeline_mode<synchronous>, transform_indices = @transform_4, window_bounds = array<i64: 64, 1>}, {pipeline_mode = #tpu.pipeline_mode<synchronous>, transform_indices = @transform_5, window_bounds = array<i64: 64, 1>}, {transform_indices = @transform_6, window_bounds = array<i64: 64, 1024>}]} {
    %c0 = arith.constant 0 : index
    %c0_0 = arith.constant 0 : index
    %0 = vector.load %arg3[%c0, %c0_0] : memref<64x16xbf16, #tpu.memory_space<vmem>>, vector<64x16xbf16>
    %c0_1 = arith.constant 0 : index
    %c0_2 = arith.constant 0 : index
    %1 = vector.load %arg1[%c0_1, %c0_2] : memref<16x1024xbf16, #tpu.memory_space<vmem>>, vector<16x1024xbf16>
    %cst = arith.constant dense<0.000000e+00> : vector<64x1024xf32>
    %2 = tpu.matmul %0, %1, %cst {dimension_numbers = #tpu.dot_dimension_numbers<[1], [0], [0], [1], [0, 0, 1, 1], [], []>} : vector<64x16xbf16>, vector<16x1024xbf16>, vector<64x1024xf32> -> vector<64x1024xf32>
    %c0_3 = arith.constant 0 : index
    %c0_4 = arith.constant 0 : index
    %3 = vector.load %arg4[%c0_3, %c0_4] : memref<64x8xbf16, #tpu.memory_space<vmem>>, vector<64x8xbf16>
    %c0_5 = arith.constant 0 : index
    %c0_6 = arith.constant 0 : index
    %4 = vector.load %arg2[%c0_5, %c0_6] : memref<8x1024xbf16, #tpu.memory_space<vmem>>, vector<8x1024xbf16>
    %cst_7 = arith.constant dense<0.000000e+00> : vector<64x1024xf32>
    %5 = tpu.matmul %3, %4, %cst_7 {dimension_numbers = #tpu.dot_dimension_numbers<[1], [0], [0], [1], [0, 0, 1, 1], [], []>} : vector<64x8xbf16>, vector<8x1024xbf16>, vector<64x1024xf32> -> vector<64x1024xf32>
    %6 = arith.addf %2, %5 : vector<64x1024xf32>
    %c0_8 = arith.constant 0 : index
    %c0_9 = arith.constant 0 : index
    %7 = vector.load %arg5[%c0_8, %c0_9] : memref<64x1xf32, #tpu.memory_space<vmem>>, vector<64x1xf32>
    %8 = vector.broadcast %7 : vector<64x1xf32> to vector<64x1024xf32>
    %9 = arith.mulf %6, %8 : vector<64x1024xf32>
    %c0_10 = arith.constant 0 : index
    %c0_11 = arith.constant 0 : index
    %10 = vector.load %arg6[%c0_10, %c0_11] : memref<64x1xf32, #tpu.memory_space<vmem>>, vector<64x1xf32>
    %11 = vector.broadcast %10 : vector<64x1xf32> to vector<64x1024xf32>
    %12 = arith.addf %9, %11 : vector<64x1024xf32>
    %cst_12 = arith.constant 0.000000e+00 : f32
    %13 = vector.broadcast %cst_12 : f32 to vector<64x1024xf32>
    %14 = arith.maximumf %12, %13 : vector<64x1024xf32>
    %c0_13 = arith.constant 0 : index
    %c0_14 = arith.constant 0 : index
    %15 = vector.load %arg7[%c0_13, %c0_14] : memref<64x1024xf32, #tpu.memory_space<vmem>>, vector<64x1024xf32>
    tpu.vector_store %arg7[%c0_13, %c0_14], %14 {strides = array<i32>} : memref<64x1024xf32, #tpu.memory_space<vmem>>, vector<64x1024xf32>,
    return
  }
  func.func @transform_0(%arg0: i32) -> (i32, i32) {
    %c0_i32 = arith.constant 0 : i32
    %c0_i32_0 = arith.constant 0 : i32
    return %c0_i32, %arg0 : i32, i32
  }
  func.func @transform_1(%arg0: i32) -> (i32, i32) {
    %c0_i32 = arith.constant 0 : i32
    %c0_i32_0 = arith.constant 0 : i32
    return %c0_i32, %arg0 : i32, i32
  }
  func.func @transform_2(%arg0: i32) -> (i32, i32) {
    %c0_i32 = arith.constant 0 : i32
    %c0_i32_0 = arith.constant 0 : i32
    %c0_i32_1 = arith.constant 0 : i32
    return %c0_i32, %c0_i32_0 : i32, i32
  }
  func.func @transform_3(%arg0: i32) -> (i32, i32) {
    %c0_i32 = arith.constant 0 : i32
    %c0_i32_0 = arith.constant 0 : i32
    %c0_i32_1 = arith.constant 0 : i32
    return %c0_i32, %c0_i32_0 : i32, i32
  }
  func.func @transform_4(%arg0: i32) -> (i32, i32) {
    %c0_i32 = arith.constant 0 : i32
    %c0_i32_0 = arith.constant 0 : i32
    %c0_i32_1 = arith.constant 0 : i32
    return %c0_i32, %c0_i32_0 : i32, i32
  }
  func.func @transform_5(%arg0: i32) -> (i32, i32) {
    %c0_i32 = arith.constant 0 : i32
    %c0_i32_0 = arith.constant 0 : i32
    %c0_i32_1 = arith.constant 0 : i32
    return %c0_i32, %c0_i32_0 : i32, i32
  }
  func.func @transform_6(%arg0: i32) -> (i32, i32) {
    %c0_i32 = arith.constant 0 : i32
    %c0_i32_0 = arith.constant 0 : i32
    return %c0_i32, %arg0 : i32, i32
  }
}

</mosaic_0001>

<llo_original>
// kernel: decoder_forward.4
$region0: #{decoder_forward.4}
  #allocation0 [shape = 'u32[]', space=smem, size = 0x4, offset = 0x4, fixed_abs, tag = 'smem constant byte address 0x4 - core index']
  #allocation1 [shape = 'u32[144,128]{1,0:T(1,128)}', space=vmem, size = 0x12000, scoped, tag = 'internal scratch']
  %s0 = inlined_call_operand.vmem [shape: bf16[64,512], index: 0, kind: input, shape index: {}]
  %s1 = inlined_call_operand.vmem [shape: bf16[16,512], index: 1, kind: input, shape index: {}]
  %s2 = inlined_call_operand.vmem [shape: bf16[64,64], index: 2, kind: input, shape index: {}]
  %s3 = inlined_call_operand.vmem [shape: bf16[64,16], index: 3, kind: input, shape index: {}]
  %s4 = inlined_call_operand.vmem [shape: f32[64,1], index: 4, kind: input, shape index: {}]
  %s5 = inlined_call_operand.vmem [shape: f32[64,1], index: 5, kind: input, shape index: {}]
  %s6 = inlined_call_operand.vmem [shape: bf16[64,512], index: 6, kind: output, shape index: {}]
  %s7 = sld [smem:[#allocation0]]
  $region167: #{decoder_forward.4} parent=0
    _
  %s9 = ssub.s32 1, %s7
  %s10 = scalar_select 0, %s9, %s7
  $region1: #{decoder_forward.4} parent=0
    #allocation2 [shape = 'u8[65536]{0}', space=vmem, size = 0x10000, scoped, tag = 'input window, operand 0']
    #allocation3 [shape = 'u8[16384]{0}', space=vmem, size = 0x4000, scoped, tag = 'input window, operand 1']
    #allocation4 [shape = 'u8[65536]{0}', space=vmem, size = 0x10000, scoped, tag = 'output window, operand 0']
    loop: start=0, step=1, limit=4
    $region2: #{decoder_forward.4} parent=1 // loop_pre_header
      _
    $region3: #{decoder_forward.4} parent=1 // loop_header
      %s12 = sphi 0, %s16
      %p13 = scmp.ge.s32.totalorder %s12, 4
      %s22 = sphi 0, %s24
      %s25 = sphi 0, %s22
      %s26 = sphi 0, %s25
      %s42 = sphi 0, %s26
      %s48 = sphi 0, %s50
      %s51 = sphi 0, %s48
      %s52 = sphi 0, %s51
      %s68 = sphi 0, %s52
      %s72 = sphi 0, %s72
      %s74 = sphi 0, %s72
      %s75 = sphi 0, %s74
      %s89 = sphi 0, %s75
      %s93 = sphi 0, %s93
      %s95 = sphi 0, %s93
      %s96 = sphi 0, %s95
      %s110 = sphi 0, %s96
      %s114 = sphi 0, %s114
      %s116 = sphi 0, %s114
      %s117 = sphi 0, %s116
      %s131 = sphi 0, %s117
      %s135 = sphi 0, %s135
      %s137 = sphi 0, %s135
      %s138 = sphi 0, %s137
      %s152 = sphi 0, %s138
      %s158 = sphi 0, %s160
      %s161 = sphi 0, %s158
      %s162 = sphi 0, %s161
      %s178 = sphi 0, %s162
    $region4: #{decoder_forward.4} parent=1 // loop_header_branch
      %15 = sbr.rel (%p13) target = $region8
    $region5: #{decoder_forward.4} parent=1 // loop_body
      %s17 = ssub.s32 %s12, 1
      %s18 = ssub.s32 %s12, 2
      %s19 = sadd.s32 %s12, 1
      %s20 = ssub.s32 %s12, %s19
      %p21 = scmp.eq.s32.totalorder %s20, 0
      %s23 = sadd.s32 %s22, 1
      %s24 = scalar_select %p21, %s22, %s23
      %p27 = pneg %p21
      %p28 = scmp.eq.s32.totalorder %s12, 1
      %p29 = por %p27, %p28
      %p30 = scmp.ne.s32.totalorder %s22, %s25
      %p31 = scmp.eq.s32.totalorder %s12, 0
      %p32 = por %p30, %p31
      %p33 = scmp.ne.s32.totalorder %s22, %s25
      %p34 = scmp.eq.s32.totalorder %s17, 1
      %p35 = por %p33, %p34
      %p36 = scmp.ne.s32.totalorder %s25, %s26
      %p37 = scmp.eq.s32.totalorder %s17, 0
      %p38 = por %p36, %p37
      %p39 = scmp.ne.s32.totalorder %s25, %s26
      %p40 = scmp.eq.s32.totalorder %s18, 1
      %p41 = por %p39, %p40
      %p43 = scmp.ne.s32.totalorder %s26, %s42
      %p44 = scmp.eq.s32.totalorder %s18, 0
      %p45 = por %p43, %p44
      %s46 = ssub.s32 %s12, %s19
      %p47 = scmp.eq.s32.totalorder %s46, 0
      %s49 = sadd.s32 %s48, 1
      %s50 = scalar_select %p47, %s48, %s49
      %p53 = pneg %p47
      %p54 = scmp.eq.s32.totalorder %s12, 1
      %p55 = por %p53, %p54
      %p56 = scmp.ne.s32.totalorder %s48, %s51
      %p57 = scmp.eq.s32.totalorder %s12, 0
      %p58 = por %p56, %p57
      %p59 = scmp.ne.s32.totalorder %s48, %s51
      %p60 = scmp.eq.s32.totalorder %s17, 1
      %p61 = por %p59, %p60
      %p62 = scmp.ne.s32.totalorder %s51, %s52
      %p63 = scmp.eq.s32.totalorder %s17, 0
      %p64 = por %p62, %p63
      %p65 = scmp.ne.s32.totalorder %s51, %s52
      %p66 = scmp.eq.s32.totalorder %s18, 1
      %p67 = por %p65, %p66
      %p69 = scmp.ne.s32.totalorder %s52, %s68
      %p70 = scmp.eq.s32.totalorder %s18, 0
      %p71 = por %p69, %p70
      %s73 = sadd.s32 %s72, 1
      %p76 = scmp.eq.s32.totalorder %s12, 1
      %p77 = scmp.ne.s32.totalorder %s72, %s74
      %p78 = scmp.eq.s32.totalorder %s12, 0
      %p79 = por %p77, %p78
      %p80 = scmp.ne.s32.totalorder %s72, %s74
      %p81 = scmp.eq.s32.totalorder %s17, 1
      %p82 = por %p80, %p81
      %p83 = scmp.ne.s32.totalorder %s74, %s75
      %p84 = scmp.eq.s32.totalorder %s17, 0
      %p85 = por %p83, %p84
      %p86 = scmp.ne.s32.totalorder %s74, %s75
      %p87 = scmp.eq.s32.totalorder %s18, 1
      %p88 = por %p86, %p87
      %p90 = scmp.ne.s32.totalorder %s75, %s89
      %p91 = scmp.eq.s32.totalorder %s18, 0
      %p92 = por %p90, %p91
      %s94 = sadd.s32 %s93, 1
      %p97 = scmp.eq.s32.totalorder %s12, 1
      %p98 = scmp.ne.s32.totalorder %s93, %s95
      %p99 = scmp.eq.s32.totalorder %s12, 0
      %p100 = por %p98, %p99
      %p101 = scmp.ne.s32.totalorder %s93, %s95
      %p102 = scmp.eq.s32.totalorder %s17, 1
      %p103 = por %p101, %p102
      %p104 = scmp.ne.s32.totalorder %s95, %s96
      %p105 = scmp.eq.s32.totalorder %s17, 0
      %p106 = por %p104, %p105
      %p107 = scmp.ne.s32.totalorder %s95, %s96
      %p108 = scmp.eq.s32.totalorder %s18, 1
      %p109 = por %p107, %p108
      %p111 = scmp.ne.s32.totalorder %s96, %s110
      %p112 = scmp.eq.s32.totalorder %s18, 0
      %p113 = por %p111, %p112
      %s115 = sadd.s32 %s114, 1
      %p118 = scmp.eq.s32.totalorder %s12, 1
      %p119 = scmp.ne.s32.totalorder %s114, %s116
      %p120 = scmp.eq.s32.totalorder %s12, 0
      %p121 = por %p119, %p120
      %p122 = scmp.ne.s32.totalorder %s114, %s116
      %p123 = scmp.eq.s32.totalorder %s17, 1
      %p124 = por %p122, %p123
      %p125 = scmp.ne.s32.totalorder %s116, %s117
      %p126 = scmp.eq.s32.totalorder %s17, 0
      %p127 = por %p125, %p126
      %p128 = scmp.ne.s32.totalorder %s116, %s117
      %p129 = scmp.eq.s32.totalorder %s18, 1
      %p130 = por %p128, %p129
      %p132 = scmp.ne.s32.totalorder %s117, %s131
      %p133 = scmp.eq.s32.totalorder %s18, 0
      %p134 = por %p132, %p133
      %s136 = sadd.s32 %s135, 1
      %p139 = scmp.eq.s32.totalorder %s12, 1
      %p140 = scmp.ne.s32.totalorder %s135, %s137
      %p141 = scmp.eq.s32.totalorder %s12, 0
      %p142 = por %p140, %p141
      %p143 = scmp.ne.s32.totalorder %s135, %s137
      %p144 = scmp.eq.s32.totalorder %s17, 1
      %p145 = por %p143, %p144
      %p146 = scmp.ne.s32.totalorder %s137, %s138
      %p147 = scmp.eq.s32.totalorder %s17, 0
      %p148 = por %p146, %p147
      %p149 = scmp.ne.s32.totalorder %s137, %s138
      %p150 = scmp.eq.s32.totalorder %s18, 1
      %p151 = por %p149, %p150
      %p153 = scmp.ne.s32.totalorder %s138, %s152
      %p154 = scmp.eq.s32.totalorder %s18, 0
      %p155 = por %p153, %p154
      %s156 = ssub.s32 %s12, %s19
      %p157 = scmp.eq.s32.totalorder %s156, 0
      %s159 = sadd.s32 %s158, 1
      %s160 = scalar_select %p157, %s158, %s159
      %p163 = pneg %p157
      %p164 = scmp.eq.s32.totalorder %s12, 1
      %p165 = por %p163, %p164
      %p166 = scmp.ne.s32.totalorder %s158, %s161
      %p167 = scmp.eq.s32.totalorder %s12, 0
      %p168 = por %p166, %p167
      %p169 = scmp.ne.s32.totalorder %s158, %s161
      %p170 = scmp.eq.s32.totalorder %s17, 1
      %p171 = por %p169, %p170
      %p172 = scmp.ne.s32.totalorder %s161, %s162
      %p173 = scmp.eq.s32.totalorder %s17, 0
      %p174 = por %p172, %p173
      %p175 = scmp.ne.s32.totalorder %s161, %s162
      %p176 = scmp.eq.s32.totalorder %s18, 1
      %p177 = por %p175, %p176
      %p179 = scmp.ne.s32.totalorder %s162, %s178
      %p180 = scmp.eq.s32.totalorder %s18, 0
      %p181 = por %p179, %p180
      %p182 = scmp.le.s32.totalorder 1, %s12
      %p183 = scmp.lt.s32.totalorder %s12, 3
      %p184 = pnand %p182, %p183
      %p185 = pneg %p184
      // Predicated region
      $region9: #{decoder_forward.4} parent=5 // pred_check
        _
      $region10: #{decoder_forward.4} parent=5 // pred_check_branch
        %187 = sbr.rel (%p184) target = $region12
      $region11: #{decoder_forward.4} parent=5 // pred_region
        %s188 = ssub.s32 %s12, 1
        // Predicated region
        $region13: #{decoder_forward.4} parent=11 // pred_check
          %p189 = pneg %p85
        $region14: #{decoder_forward.4} parent=11 // pred_check_branch
          %191 = sbr.rel (%p189) target = $region16
        $region15: #{decoder_forward.4} parent=11 // pred_region
          _
        $region16: #{decoder_forward.4} parent=11 // pred_fallthru
          _
        // Predicated region
        $region17: #{decoder_forward.4} parent=11 // pred_check
          %p192 = pneg %p106
        $region18: #{decoder_forward.4} parent=11 // pred_check_branch
          %194 = sbr.rel (%p192) target = $region20
        $region19: #{decoder_forward.4} parent=11 // pred_region
          _
        $region20: #{decoder_forward.4} parent=11 // pred_fallthru
          _
        // Predicated region
        $region21: #{decoder_forward.4} parent=11 // pred_check
          %p195 = pneg %p127
        $region22: #{decoder_forward.4} parent=11 // pred_check_branch
          %197 = sbr.rel (%p195) target = $region24
        $region23: #{decoder_forward.4} parent=11 // pred_region
          _
        $region24: #{decoder_forward.4} parent=11 // pred_fallthru
          _
        // Predicated region
        $region25: #{decoder_forward.4} parent=11 // pred_check
          %p198 = pneg %p148
        $region26: #{decoder_forward.4} parent=11 // pred_check_branch
          %200 = sbr.rel (%p198) target = $region28
        $region27: #{decoder_forward.4} parent=11 // pred_region
          _
        $region28: #{decoder_forward.4} parent=11 // pred_fallthru
          _
      $region12: #{decoder_forward.4} parent=5 // pred_fallthru
        _
      %p201 = scmp.lt.s32.totalorder %s12, 2
      // Predicated region
      $region29: #{decoder_forward.4} parent=5 // pred_check
        %p202 = pneg %p201
      $region30: #{decoder_forward.4} parent=5 // pred_check_branch
        %204 = sbr.rel (%p202) target = $region32
      $region31: #{decoder_forward.4} parent=5 // pred_region
        // Predicated region
        $region33: #{decoder_forward.4} parent=31 // pred_check
          %p205 = pneg %p32
        $region34: #{decoder_forward.4} parent=31 // pred_check_branch
          %207 = sbr.rel (%p205) target = $region36
        $region35: #{decoder_forward.4} parent=31 // pred_region
          %s208 = sand.u32 %s22, 1
          %s209 = sand.u32 %s22, 1
          %s210 = smul.addr %s209, 64
          %s211 = scalar_lea.vmem [#allocation2], %s210
          %s212 = smul.u32 2, %s12
          %s213 = smul.addr %s212, 4
          %s214 = scalar_lea.vmem %s0, %s213
          // Predicated region
          $region37: #{decoder_forward.4} parent=35 // pred_check
            _
          $region38: #{decoder_forward.4} parent=35 // pred_check_branch
            %216 = sbr.rel (0) target = $region40
          $region39: #{decoder_forward.4} parent=35 // pred_region
            // Predicated region
            $region41: #{decoder_forward.4} parent=39 // pred_check
              _
            $region42: #{decoder_forward.4} parent=39 // pred_check_branch
              %218 = sbr.rel (0) target = $region44
            $region43: #{decoder_forward.4} parent=39 // pred_region
              // Predicated region
              $region56: #{decoder_forward.4} parent=43 // pred_check
                _
              $region57: #{decoder_forward.4} parent=43 // pred_check_branch
                %247 = sbr.rel (0) target = $region59
              $region58: #{decoder_forward.4} parent=43 // pred_region
                loop: start=0, step=1, limit=1
                $region60: #{decoder_forward.4} parent=58 // loop_pre_header
                  _
                $region61: #{decoder_forward.4} parent=58 // loop_header
                  %s249 = sphi 0, %s253
                  %p250 = scmp.ge.s32.totalorder %s249, 1
                  %s254 = sphi %s214, %s214
                  %s255 = sphi %s211, %s211
                $region62: #{decoder_forward.4} parent=58 // loop_header_branch
                  %252 = sbr.rel (%p250) target = $region66
                $region63: #{decoder_forward.4} parent=58 // loop_body
                  %v256 = vld [vmem:[%s254] sm:$0xff]
                  %257 = vst [vmem:[%s255] sm:$0xff] %v256
                  %v258 = vld [vmem:[%s254 + $0x10] sm:$0xff]
                  %259 = vst [vmem:[%s255 + $0x8] sm:$0xff] %v258
                  %v260 = vld [vmem:[%s254 + $0x20] sm:$0xff]
                  %261 = vst [vmem:[%s255 + $0x10] sm:$0xff] %v260
                  %v262 = vld [vmem:[%s254 + $0x30] sm:$0xff]
                  %263 = vst [vmem:[%s255 + $0x18] sm:$0xff] %v262
                  %v264 = vld [vmem:[%s254 + $0x40] sm:$0xff]
                  %265 = vst [vmem:[%s255 + $0x20] sm:$0xff] %v264
                  %v266 = vld [vmem:[%s254 + $0x50] sm:$0xff]
                  %267 = vst [vmem:[%s255 + $0x28] sm:$0xff] %v266
                  %v268 = vld [vmem:[%s254 + $0x60] sm:$0xff]
                  %269 = vst [vmem:[%s255 + $0x30] sm:$0xff] %v268
                  %v270 = vld [vmem:[%s254 + $0x70] sm:$0xff]
                  %271 = vst [vmem:[%s255 + $0x38] sm:$0xff] %v270
                $region64: #{decoder_forward.4} parent=58 // loop_footer
                  %s253 = sadd.s32 1, %s249
                $region65: #{decoder_forward.4} parent=58 // loop_footer_branch
                  %248 = sbr.rel target = $region61
                $region66: #{decoder_forward.4} parent=58 // loop_exit
                  _
              $region59: #{decoder_forward.4} parent=43 // pred_fallthru
                _
              // Predicated region
              $region67: #{decoder_forward.4} parent=43 // pred_check
                _
              $region68: #{decoder_forward.4} parent=43 // pred_check_branch
                %273 = sbr.rel target = $region70
              $region69: #{decoder_forward.4} parent=43 // pred_region
                _
              $region70: #{decoder_forward.4} parent=43 // pred_fallthru
                _
            $region44: #{decoder_forward.4} parent=39 // pred_fallthru
              _
            // Predicated region
            $region45: #{decoder_forward.4} parent=39 // pred_check
              _
            $region46: #{decoder_forward.4} parent=39 // pred_check_branch
              %220 = sbr.rel target = $region48
            $region47: #{decoder_forward.4} parent=39 // pred_region
              loop: start=0, step=1, limit=1
              $region49: #{decoder_forward.4} parent=47 // loop_pre_header
                _
              $region50: #{decoder_forward.4} parent=47 // loop_header
                %s223 = sphi 0, %s227
                %p224 = scmp.ge.s32.totalorder %s223, 1
                %s228 = sphi %s214, %s214
                %s229 = sphi %s211, %s211
              $region51: #{decoder_forward.4} parent=47 // loop_header_branch
                %226 = sbr.rel (%p224) target = $region55
              $region52: #{decoder_forward.4} parent=47 // loop_body
                %v230 = vld [vmem:[%s228] sm:$0xff]
                %231 = vst [vmem:[%s229] sm:$0xff] %v230
                %v232 = vld [vmem:[%s228 + $0x10] sm:$0xff]
                %233 = vst [vmem:[%s229 + $0x8] sm:$0xff] %v232
                %v234 = vld [vmem:[%s228 + $0x20] sm:$0xff]
                %235 = vst [vmem:[%s229 + $0x10] sm:$0xff] %v234
                %v236 = vld [vmem:[%s228 + $0x30] sm:$0xff]
                %237 = vst [vmem:[%s229 + $0x18] sm:$0xff] %v236
                %v238 = vld [vmem:[%s228 + $0x40] sm:$0xff]
                %239 = vst [vmem:[%s229 + $0x20] sm:$0xff] %v238
                %v240 = vld [vmem:[%s228 + $0x50] sm:$0xff]
                %241 = vst [vmem:[%s229 + $0x28] sm:$0xff] %v240
                %v242 = vld [vmem:[%s228 + $0x60] sm:$0xff]
                %243 = vst [vmem:[%s229 + $0x30] sm:$0xff] %v242
                %v244 = vld [vmem:[%s228 + $0x70] sm:$0xff]
                %245 = vst [vmem:[%s229 + $0x38] sm:$0xff] %v244
              $region53: #{decoder_forward.4} parent=47 // loop_footer
                %s227 = sadd.s32 1, %s223
              $region54: #{decoder_forward.4} parent=47 // loop_footer_branch
                %222 = sbr.rel target = $region50
              $region55: #{decoder_forward.4} parent=47 // loop_exit
                _
            $region48: #{decoder_forward.4} parent=39 // pred_fallthru
              _
          $region40: #{decoder_forward.4} parent=35 // pred_fallthru
            _
          %274 = vnop
        $region36: #{decoder_forward.4} parent=31 // pred_fallthru
          _
        // Predicated region
        $region71: #{decoder_forward.4} parent=31 // pred_check
          %p275 = pneg %p58
        $region72: #{decoder_forward.4} parent=31 // pred_check_branch
          %277 = sbr.rel (%p275) target = $region74
        $region73: #{decoder_forward.4} parent=31 // pred_region
          %s278 = sand.u32 %s48, 1
          %s279 = sand.u32 %s48, 1
          %s280 = smul.addr %s279, 16
          %s281 = scalar_lea.vmem [#allocation3], %s280
          %s282 = smul.u32 2, %s12
          %s283 = smul.addr %s282, 4
          %s284 = scalar_lea.vmem %s1, %s283
          // Predicated region
          $region75: #{decoder_forward.4} parent=73 // pred_check
            _
          $region76: #{decoder_forward.4} parent=73 // pred_check_branch
            %286 = sbr.rel (0) target = $region78
          $region77: #{decoder_forward.4} parent=73 // pred_region
            // Predicated region
            $region79: #{decoder_forward.4} parent=77 // pred_check
              _
            $region80: #{decoder_forward.4} parent=77 // pred_check_branch
              %288 = sbr.rel (0) target = $region82
            $region81: #{decoder_forward.4} parent=77 // pred_region
              // Predicated region
              $region94: #{decoder_forward.4} parent=81 // pred_check
                _
              $region95: #{decoder_forward.4} parent=81 // pred_check_branch
                %305 = sbr.rel (0) target = $region97
              $region96: #{decoder_forward.4} parent=81 // pred_region
                loop: start=0, step=1, limit=1
                $region98: #{decoder_forward.4} parent=96 // loop_pre_header
                  _
                $region99: #{decoder_forward.4} parent=96 // loop_header
                  %s307 = sphi 0, %s311
                  %p308 = scmp.ge.s32.totalorder %s307, 1
                  %s312 = sphi %s284, %s284
                  %s313 = sphi %s281, %s281
                $region100: #{decoder_forward.4} parent=96 // loop_header_branch
                  %310 = sbr.rel (%p308) target = $region104
                $region101: #{decoder_forward.4} parent=96 // loop_body
                  %v314 = vld [vmem:[%s312] sm:$0xff]
                  %315 = vst [vmem:[%s313] sm:$0xff] %v314
                  %v316 = vld [vmem:[%s312 + $0x10] sm:$0xff]
                  %317 = vst [vmem:[%s313 + $0x8] sm:$0xff] %v316
                $region102: #{decoder_forward.4} parent=96 // loop_footer
                  %s311 = sadd.s32 1, %s307
                $region103: #{decoder_forward.4} parent=96 // loop_footer_branch
                  %306 = sbr.rel target = $region99
                $region104: #{decoder_forward.4} parent=96 // loop_exit
                  _
              $region97: #{decoder_forward.4} parent=81 // pred_fallthru
                _
              // Predicated region
              $region105: #{decoder_forward.4} parent=81 // pred_check
                _
              $region106: #{decoder_forward.4} parent=81 // pred_check_branch
                %319 = sbr.rel target = $region108
              $region107: #{decoder_forward.4} parent=81 // pred_region
                _
              $region108: #{decoder_forward.4} parent=81 // pred_fallthru
                _
            $region82: #{decoder_forward.4} parent=77 // pred_fallthru
              _
            // Predicated region
            $region83: #{decoder_forward.4} parent=77 // pred_check
              _
            $region84: #{decoder_forward.4} parent=77 // pred_check_branch
              %290 = sbr.rel target = $region86
            $region85: #{decoder_forward.4} parent=77 // pred_region
              loop: start=0, step=1, limit=1
              $region87: #{decoder_forward.4} parent=85 // loop_pre_header
                _
              $region88: #{decoder_forward.4} parent=85 // loop_header
                %s293 = sphi 0, %s297
                %p294 = scmp.ge.s32.totalorder %s293, 1
                %s298 = sphi %s284, %s284
                %s299 = sphi %s281, %s281
              $region89: #{decoder_forward.4} parent=85 // loop_header_branch
                %296 = sbr.rel (%p294) target = $region93
              $region90: #{decoder_forward.4} parent=85 // loop_body
                %v300 = vld [vmem:[%s298] sm:$0xff]
                %301 = vst [vmem:[%s299] sm:$0xff] %v300
                %v302 = vld [vmem:[%s298 + $0x10] sm:$0xff]
                %303 = vst [vmem:[%s299 + $0x8] sm:$0xff] %v302
              $region91: #{decoder_forward.4} parent=85 // loop_footer
                %s297 = sadd.s32 1, %s293
              $region92: #{decoder_forward.4} parent=85 // loop_footer_branch
                %292 = sbr.rel target = $region88
              $region93: #{decoder_forward.4} parent=85 // loop_exit
                _
            $region86: #{decoder_forward.4} parent=77 // pred_fallthru
              _
          $region78: #{decoder_forward.4} parent=73 // pred_fallthru
            _
          %320 = vnop
        $region74: #{decoder_forward.4} parent=31 // pred_fallthru
          _
      $region32: #{decoder_forward.4} parent=5 // pred_fallthru
        _
      %p321 = scmp.le.s32.totalorder 1, %s12
      %p322 = scmp.lt.s32.totalorder %s12, 3
      %p323 = pnand %p321, %p322
      %p324 = pneg %p323
      // Predicated region
      $region109: #{decoder_forward.4} parent=5 // pred_check
        _
      $region110: #{decoder_forward.4} parent=5 // pred_check_branch
        %326 = sbr.rel (%p323) target = $region112
      $region111: #{decoder_forward.4} parent=5 // pred_region
        %s327 = ssub.s32 %s12, 1
        %s328 = sand.u32 %s25, 1
        %s329 = sand.u32 %s25, 1
        %s330 = smul.addr %s329, 64
        %s331 = scalar_lea.vmem [#allocation2], %s330
        // Predicated region
        $region113: #{decoder_forward.4} parent=111 // pred_check
          %p332 = pneg %p38
        $region114: #{decoder_forward.4} parent=111 // pred_check_branch
          %334 = sbr.rel (%p332) target = $region116
        $region115: #{decoder_forward.4} parent=111 // pred_region
          _
        $region116: #{decoder_forward.4} parent=111 // pred_fallthru
          _
        %s335 = sand.u32 %s51, 1
        %s336 = sand.u32 %s51, 1
        %s337 = smul.addr %s336, 16
        %s338 = scalar_lea.vmem [#allocation3], %s337
        // Predicated region
        $region117: #{decoder_forward.4} parent=111 // pred_check
          %p339 = pneg %p64
        $region118: #{decoder_forward.4} parent=111 // pred_check_branch
          %341 = sbr.rel (%p339) target = $region120
        $region119: #{decoder_forward.4} parent=111 // pred_region
          _
        $region120: #{decoder_forward.4} parent=111 // pred_fallthru
          _
        %s342 = sand.u32 %s25, 1
        %s343 = sand.u32 %s25, 1
        %s344 = smul.addr %s343, 64
        %s345 = scalar_lea.vmem [#allocation2], %s344
        %p346 = pneg %p38
        %p347 = pneg %p35
        %s348 = sand.u32 %s51, 1
        %s349 = sand.u32 %s51, 1
        %s350 = smul.addr %s349, 16
        %s351 = scalar_lea.vmem [#allocation3], %s350
        %p352 = pneg %p64
        %p353 = pneg %p61
        %p354 = pneg %p85
        %p355 = pneg %p82
        %p356 = pneg %p106
        %p357 = pneg %p103
        %p358 = pneg %p127
        %p359 = pneg %p124
        %p360 = pneg %p148
        %p361 = pneg %p145
        %p362 = pneg %p174
        %p363 = pneg %p171
        %s364 = sand.u32 %s161, 1
        %s365 = sand.u32 %s161, 1
        %s366 = smul.addr %s365, 64
        %s367 = scalar_lea.vmem [#allocation4], %s366
        %s368 = smul.u32 2, %s17
        %s369 = smul.u32 2, %s17
        %s370 = smul.u32 2, %s17
        %v372 = vld [vmem:[%s2] sm:$0xf]
        %v373 = vld [vmem:[%s2 + $0x4] sm:$0xf]
        %v374 = vld [vmem:[%s2 + $0x8] sm:$0xf]
        %v375 = vld [vmem:[%s2 + $0xc] sm:$0xf]
        %v376 = vld [vmem:[%s2 + $0x10] sm:$0xf]
        %v377 = vld [vmem:[%s2 + $0x14] sm:$0xf]
        %v378 = vld [vmem:[%s2 + $0x18] sm:$0xf]
        %v379 = vld [vmem:[%s2 + $0x1c] sm:$0xf]
        %v380 = vld [vmem:[%s331] sm:$0xff]
        %v381 = vld [vmem:[%s331 + $0x8] sm:$0xff]
        %v382 = vld [vmem:[%s331 + $0x10] sm:$0xff]
        %v383 = vld [vmem:[%s331 + $0x18] sm:$0xff]
        %v384 = vld [vmem:[%s331 + $0x20] sm:$0xff]
        %v385 = vld [vmem:[%s331 + $0x28] sm:$0xff]
        %v386 = vld [vmem:[%s331 + $0x30] sm:$0xff]
        %v387 = vld [vmem:[%s331 + $0x38] sm:$0xff]
        %v388 = vld [vmem:[%s3] sm:$0xf]
        %v389 = vld [vmem:[%s3 + $0x4] sm:$0xf]
        %v390 = vld [vmem:[%s3 + $0x8] sm:$0xf]
        %v391 = vld [vmem:[%s3 + $0xc] sm:$0xf]
        %v392 = vld [vmem:[%s3 + $0x10] sm:$0xf]
        %v393 = vld [vmem:[%s3 + $0x14] sm:$0xf]
        %v394 = vld [vmem:[%s3 + $0x18] sm:$0xf]
        %v395 = vld [vmem:[%s3 + $0x1c] sm:$0xf]
        %v396 = vld [vmem:[%s338] sm:$0xff]
        %v397 = vld [vmem:[%s338 + $0x8] sm:$0xff]
        %v406 = vunpack.c.l.b16 %v388
        %v407 = vunpack.c.l.b16 %v389
        %v408 = vunpack.c.l.b16 %v390
        %v409 = vunpack.c.l.b16 %v391
        %v410 = vunpack.c.l.b16 %v392
        %v411 = vunpack.c.l.b16 %v393
        %v412 = vunpack.c.l.b16 %v394
        %v413 = vunpack.c.l.b16 %v395
        %v414 = vpack.c.b16 %v407, %v406
        %v415 = vpack.c.b16 %v409, %v408
        %v416 = vpack.c.b16 %v411, %v410
        %v417 = vpack.c.b16 %v413, %v412
        %v420 = vunpack.c.l.b16 %v396
        %v421 = vunpack.c.h.b16 %v396
        %v422 = vunpack.c.l.b16 %v397
        %v423 = vunpack.c.h.b16 %v397
        %v424 = vpack.c.b16 %v422, %v420
        %v425 = vpack.c.b16 %v423, %v421
        %vm428 = vcmask 130048
        %v430 = vsel %vm428, %v414, 0
        %v433 = vsel %vm428, %v415, 0
        %v436 = vsel %vm428, %v416, 0
        %v439 = vsel %vm428, %v417, 0
        %441 = vmatprep.subr.bf16.mxu0 %v425
        %442 = vmatpush1.bf16.msra.mxu0 %v424
        %443 = vmatprep.subr.bf16.mxu0 0
        %444 = vmatpush1.bf16.msra.mxu0 0
        %445 = vmatprep.subr.bf16.mxu0 0
        %446 = vmatpush1.bf16.msra.mxu0 0
        %447 = vmatprep.subr.bf16.mxu0 0
        %448 = vmatpush1.bf16.msra.mxu0 0
        %449 = vmatprep.subr.bf16.mxu0 0
        %450 = vmatpush1.bf16.msra.mxu0 0
        %451 = vmatprep.subr.bf16.mxu0 0
        %452 = vmatpush1.bf16.msra.mxu0 0
        %453 = vmatprep.subr.bf16.mxu0 0
        %454 = vmatpush1.bf16.msra.mxu0 0
        %455 = vmatprep.subr.bf16.mxu0 0
        %456 = vmatpush1.bf16.msra.mxu0 0
        %457 = vmatprep.subr.bf16.mxu0 0
        %458 = vmatpush1.bf16.msra.mxu0 0
        %459 = vmatprep.subr.bf16.mxu0 0
        %460 = vmatpush1.bf16.msra.mxu0 0
        %461 = vmatprep.subr.bf16.mxu0 0
        %462 = vmatpush1.bf16.msra.mxu0 0
        %463 = vmatprep.subr.bf16.mxu0 0
        %464 = vmatpush1.bf16.msra.mxu0 0
        %465 = vmatprep.subr.bf16.mxu0 0
        %466 = vmatpush1.bf16.msra.mxu0 0
        %467 = vmatprep.subr.bf16.mxu0 0
        %468 = vmatpush1.bf16.msra.mxu0 0
        %469 = vmatprep.subr.bf16.mxu0 0
        %470 = vmatpush1.bf16.msra.mxu0 0
        %471 = vmatprep.subr.bf16.mxu0 0
        %472 = vmatpush1.bf16.msra.mxu0 0
        %473 = vmatprep.mubr.bf16.mxu0 0
        %474 = vmatmul.mubr.bf16.gmra.mrb[0].mxu0 %v430
        %v475 = vpop.f32.mrb[0].mxu0
        %v476 = vadd.f32 0.0, %v475
        %v477 = vpop.f32.mrb[0].mxu0
        %v478 = vadd.f32 0.0, %v477
        %v479 = vpop.f32.mrb[0].mxu0
        %v480 = vadd.f32 0.0, %v479
        %v481 = vpop.f32.mrb[0].mxu0
        %v482 = vadd.f32 0.0, %v481
        %483 = vmatprep.mubr.bf16.mxu0 0
        %484 = vmatmul.mubr.bf16.gmra.mrb[0].mxu0 %v433
        %v485 = vpop.f32.mrb[0].mxu0
        %v486 = vadd.f32 0.0, %v485
        %v487 = vpop.f32.mrb[0].mxu0
        %v488 = vadd.f32 0.0, %v487
        %v489 = vpop.f32.mrb[0].mxu0
        %v490 = vadd.f32 0.0, %v489
        %v491 = vpop.f32.mrb[0].mxu0
        %v492 = vadd.f32 0.0, %v491
        %493 = vmatprep.mubr.bf16.mxu0 0
        %494 = vmatmul.mubr.bf16.gmra.mrb[0].mxu0 %v436
        %v495 = vpop.f32.mrb[0].mxu0
        %v496 = vadd.f32 0.0, %v495
        %v497 = vpop.f32.mrb[0].mxu0
        %v498 = vadd.f32 0.0, %v497
        %v499 = vpop.f32.mrb[0].mxu0
        %v500 = vadd.f32 0.0, %v499
        %v501 = vpop.f32.mrb[0].mxu0
        %v502 = vadd.f32 0.0, %v501
        %503 = vmatprep.mubr.bf16.mxu0 0
        %504 = vmatmul.mubr.bf16.gmra.mrb[0].mxu0 %v439
        %v505 = vpop.f32.mrb[0].mxu0
        %v506 = vadd.f32 0.0, %v505
        %v507 = vpop.f32.mrb[0].mxu0
        %v508 = vadd.f32 0.0, %v507
        %v509 = vpop.f32.mrb[0].mxu0
        %v510 = vadd.f32 0.0, %v509
        %v511 = vpop.f32.mrb[0].mxu0
        %v512 = vadd.f32 0.0, %v511
        %513 = vdwg.mxu0
        %v522 = vunpack.c.l.b16 %v372
        %v523 = vunpack.c.l.b16 %v373
        %v524 = vunpack.c.l.b16 %v374
        %v525 = vunpack.c.l.b16 %v375
        %v526 = vunpack.c.l.b16 %v376
        %v527 = vunpack.c.l.b16 %v377
        %v528 = vunpack.c.l.b16 %v378
        %v529 = vunpack.c.l.b16 %v379
        %v530 = vpack.c.b16 %v523, %v522
        %v531 = vpack.c.b16 %v525, %v524
        %v532 = vpack.c.b16 %v527, %v526
        %v533 = vpack.c.b16 %v529, %v528
        %v542 = vunpack.c.l.b16 %v380
        %v543 = vunpack.c.h.b16 %v380
        %v544 = vunpack.c.l.b16 %v381
        %v545 = vunpack.c.h.b16 %v381
        %v546 = vunpack.c.l.b16 %v382
        %v547 = vunpack.c.h.b16 %v382
        %v548 = vunpack.c.l.b16 %v383
        %v549 = vunpack.c.h.b16 %v383
        %v550 = vunpack.c.l.b16 %v384
        %v551 = vunpack.c.h.b16 %v384
        %v552 = vunpack.c.l.b16 %v385
        %v553 = vunpack.c.h.b16 %v385
        %v554 = vunpack.c.l.b16 %v386
        %v555 = vunpack.c.h.b16 %v386
        %v556 = vunpack.c.l.b16 %v387
        %v557 = vunpack.c.h.b16 %v387
        %v558 = vpack.c.b16 %v544, %v542
        %v559 = vpack.c.b16 %v545, %v543
        %v560 = vpack.c.b16 %v548, %v546
        %v561 = vpack.c.b16 %v549, %v547
        %v562 = vpack.c.b16 %v552, %v550
        %v563 = vpack.c.b16 %v553, %v551
        %v564 = vpack.c.b16 %v556, %v554
        %v565 = vpack.c.b16 %v557, %v555
        %vm574 = vcmask 523264
        %v576 = vsel %vm574, %v530, 0
        %v579 = vsel %vm574, %v531, 0
        %v582 = vsel %vm574, %v532, 0
        %v585 = vsel %vm574, %v533, 0
        %587 = vmatprep.subr.bf16.mxu0 %v559
        %588 = vmatpush1.bf16.msra.mxu0 %v558
        %589 = vmatprep.subr.bf16.mxu0 %v561
        %590 = vmatpush1.bf16.msra.mxu0 %v560
        %591 = vmatprep.subr.bf16.mxu0 %v563
        %592 = vmatpush1.bf16.msra.mxu0 %v562
        %593 = vmatprep.subr.bf16.mxu0 %v565
        %594 = vmatpush1.bf16.msra.mxu0 %v564
        %595 = vmatprep.subr.bf16.mxu0 0
        %596 = vmatpush1.bf16.msra.mxu0 0
        %597 = vmatprep.subr.bf16.mxu0 0
        %598 = vmatpush1.bf16.msra.mxu0 0
        %599 = vmatprep.subr.bf16.mxu0 0
        %600 = vmatpush1.bf16.msra.mxu0 0
        %601 = vmatprep.subr.bf16.mxu0 0
        %602 = vmatpush1.bf16.msra.mxu0 0
        %603 = vmatprep.subr.bf16.mxu0 0
        %604 = vmatpush1.bf16.msra.mxu0 0
        %605 = vmatprep.subr.bf16.mxu0 0
        %606 = vmatpush1.bf16.msra.mxu0 0
        %607 = vmatprep.subr.bf16.mxu0 0
        %608 = vmatpush1.bf16.msra.mxu0 0
        %609 = vmatprep.subr.bf16.mxu0 0
        %610 = vmatpush1.bf16.msra.mxu0 0
        %611 = vmatprep.subr.bf16.mxu0 0
        %612 = vmatpush1.bf16.msra.mxu0 0
        %613 = vmatprep.subr.bf16.mxu0 0
        %614 = vmatpush1.bf16.msra.mxu0 0
        %615 = vmatprep.subr.bf16.mxu0 0
        %616 = vmatpush1.bf16.msra.mxu0 0
        %617 = vmatprep.subr.bf16.mxu0 0
        %618 = vmatpush1.bf16.msra.mxu0 0
        %619 = vmatprep.mubr.bf16.mxu0 0
        %620 = vmatmul.mubr.bf16.gmra.mrb[0].mxu0 %v576
        %v621 = vpop.f32.mrb[0].mxu0
        %v622 = vadd.f32 %v476, %v621
        %v623 = vpop.f32.mrb[0].mxu0
        %v624 = vadd.f32 %v478, %v623
        %v625 = vpop.f32.mrb[0].mxu0
        %v626 = vadd.f32 %v480, %v625
        %v627 = vpop.f32.mrb[0].mxu0
        %v628 = vadd.f32 %v482, %v627
        %629 = vmatprep.mubr.bf16.mxu0 0
        %630 = vmatmul.mubr.bf16.gmra.mrb[0].mxu0 %v579
        %v631 = vpop.f32.mrb[0].mxu0
        %v632 = vadd.f32 %v486, %v631
        %v633 = vpop.f32.mrb[0].mxu0
        %v634 = vadd.f32 %v488, %v633
        %v635 = vpop.f32.mrb[0].mxu0
        %v636 = vadd.f32 %v490, %v635
        %v637 = vpop.f32.mrb[0].mxu0
        %v638 = vadd.f32 %v492, %v637
        %639 = vmatprep.mubr.bf16.mxu0 0
        %640 = vmatmul.mubr.bf16.gmra.mrb[0].mxu0 %v582
        %v641 = vpop.f32.mrb[0].mxu0
        %v642 = vadd.f32 %v496, %v641
        %v643 = vpop.f32.mrb[0].mxu0
        %v644 = vadd.f32 %v498, %v643
        %v645 = vpop.f32.mrb[0].mxu0
        %v646 = vadd.f32 %v500, %v645
        %v647 = vpop.f32.mrb[0].mxu0
        %v648 = vadd.f32 %v502, %v647
        %649 = vmatprep.mubr.bf16.mxu0 0
        %650 = vmatmul.mubr.bf16.gmra.mrb[0].mxu0 %v585
        %v651 = vpop.f32.mrb[0].mxu0
        %v652 = vadd.f32 %v506, %v651
        %v653 = vpop.f32.mrb[0].mxu0
        %v654 = vadd.f32 %v508, %v653
        %v655 = vpop.f32.mrb[0].mxu0
        %v656 = vadd.f32 %v510, %v655
        %v657 = vpop.f32.mrb[0].mxu0
        %v658 = vadd.f32 %v512, %v657
        %659 = vdwg.mxu0
        %v660 = vld [vmem:[%s4] sm:$0xff]
        %v661 = vld [vmem:[%s4 + $0x8] sm:$0xff]
        %v662 = vld [vmem:[%s4 + $0x10] sm:$0xff]
        %v663 = vld [vmem:[%s4 + $0x18] sm:$0xff]
        %v664 = vld [vmem:[%s4 + $0x20] sm:$0xff]
        %v665 = vld [vmem:[%s4 + $0x28] sm:$0xff]
        %v666 = vld [vmem:[%s4 + $0x30] sm:$0xff]
        %v667 = vld [vmem:[%s4 + $0x38] sm:$0xff]
        %669 = vset.pattern.permute.xlu0 0
        %670 = vperm.xlu0 %669, %v660
        %v671 = vpop.permute.xlu0 %670
        %674 = vset.pattern.permute.xlu0 0
        %675 = vperm.xlu0 %674, %v661
        %v676 = vpop.permute.xlu0 %675
        %679 = vset.pattern.permute.xlu0 0
        %680 = vperm.xlu0 %679, %v662
        %v681 = vpop.permute.xlu0 %680
        %684 = vset.pattern.permute.xlu0 0
        %685 = vperm.xlu0 %684, %v663
        %v686 = vpop.permute.xlu0 %685
        %689 = vset.pattern.permute.xlu0 0
        %690 = vperm.xlu0 %689, %v664
        %v691 = vpop.permute.xlu0 %690
        %694 = vset.pattern.permute.xlu0 0
        %695 = vperm.xlu0 %694, %v665
        %v696 = vpop.permute.xlu0 %695
        %699 = vset.pattern.permute.xlu0 0
        %700 = vperm.xlu0 %699, %v666
        %v701 = vpop.permute.xlu0 %700
        %704 = vset.pattern.permute.xlu0 0
        %705 = vperm.xlu0 %704, %v667
        %v706 = vpop.permute.xlu0 %705
        %v708 = vmul.f32 %v622, %v671
        %v709 = vmul.f32 %v624, %v671
        %v710 = vmul.f32 %v626, %v676
        %v711 = vmul.f32 %v628, %v676
        %v712 = vmul.f32 %v632, %v681
        %v713 = vmul.f32 %v634, %v681
        %v714 = vmul.f32 %v636, %v686
        %v715 = vmul.f32 %v638, %v686
        %v716 = vmul.f32 %v642, %v691
        %v717 = vmul.f32 %v644, %v691
        %v718 = vmul.f32 %v646, %v696
        %v719 = vmul.f32 %v648, %v696
        %v720 = vmul.f32 %v652, %v701
        %v721 = vmul.f32 %v654, %v701
        %v722 = vmul.f32 %v656, %v706
        %v723 = vmul.f32 %v658, %v706
        %v724 = vld [vmem:[%s5] sm:$0xff]
        %v725 = vld [vmem:[%s5 + $0x8] sm:$0xff]
        %v726 = vld [vmem:[%s5 + $0x10] sm:$0xff]
        %v727 = vld [vmem:[%s5 + $0x18] sm:$0xff]
        %v728 = vld [vmem:[%s5 + $0x20] sm:$0xff]
        %v729 = vld [vmem:[%s5 + $0x28] sm:$0xff]
        %v730 = vld [vmem:[%s5 + $0x30] sm:$0xff]
        %v731 = vld [vmem:[%s5 + $0x38] sm:$0xff]
        %733 = vset.pattern.permute.xlu0 0
        %734 = vperm.xlu0 %733, %v724
        %v735 = vpop.permute.xlu0 %734
        %738 = vset.pattern.permute.xlu0 0
        %739 = vperm.xlu0 %738, %v725
        %v740 = vpop.permute.xlu0 %739
        %743 = vset.pattern.permute.xlu0 0
        %744 = vperm.xlu0 %743, %v726
        %v745 = vpop.permute.xlu0 %744
        %748 = vset.pattern.permute.xlu0 0
        %749 = vperm.xlu0 %748, %v727
        %v750 = vpop.permute.xlu0 %749
        %753 = vset.pattern.permute.xlu0 0
        %754 = vperm.xlu0 %753, %v728
        %v755 = vpop.permute.xlu0 %754
        %758 = vset.pattern.permute.xlu0 0
        %759 = vperm.xlu0 %758, %v729
        %v760 = vpop.permute.xlu0 %759
        %763 = vset.pattern.permute.xlu0 0
        %764 = vperm.xlu0 %763, %v730
        %v765 = vpop.permute.xlu0 %764
        %768 = vset.pattern.permute.xlu0 0
        %769 = vperm.xlu0 %768, %v731
        %v770 = vpop.permute.xlu0 %769
        %v772 = vadd.f32 %v708, %v735
        %v773 = vadd.f32 %v709, %v735
        %v774 = vadd.f32 %v710, %v740
        %v775 = vadd.f32 %v711, %v740
        %v776 = vadd.f32 %v712, %v745
        %v777 = vadd.f32 %v713, %v745
        %v778 = vadd.f32 %v714, %v750
        %v779 = vadd.f32 %v715, %v750
        %v780 = vadd.f32 %v716, %v755
        %v781 = vadd.f32 %v717, %v755
        %v782 = vadd.f32 %v718, %v760
        %v783 = vadd.f32 %v719, %v760
        %v784 = vadd.f32 %v720, %v765
        %v785 = vadd.f32 %v721, %v765
        %v786 = vadd.f32 %v722, %v770
        %v787 = vadd.f32 %v723, %v770
        %v788 = vmax.f32 %v772, 0.0
        %v789 = vmax.f32 %v773, 0.0
        %v790 = vmax.f32 %v774, 0.0
        %v791 = vmax.f32 %v775, 0.0
        %v792 = vmax.f32 %v776, 0.0
        %v793 = vmax.f32 %v777, 0.0
        %v794 = vmax.f32 %v778, 0.0
        %v795 = vmax.f32 %v779, 0.0
        %v796 = vmax.f32 %v780, 0.0
        %v797 = vmax.f32 %v781, 0.0
        %v798 = vmax.f32 %v782, 0.0
        %v799 = vmax.f32 %v783, 0.0
        %v800 = vmax.f32 %v784, 0.0
        %v801 = vmax.f32 %v785, 0.0
        %v802 = vmax.f32 %v786, 0.0
        %v803 = vmax.f32 %v787, 0.0
        %v804 = vpack.c.bf16 %v790, %v788
        %v805 = vpack.c.bf16 %v791, %v789
        %v806 = vpack.c.bf16 %v794, %v792
        %v807 = vpack.c.bf16 %v795, %v793
        %v808 = vpack.c.bf16 %v798, %v796
        %v809 = vpack.c.bf16 %v799, %v797
        %v810 = vpack.c.bf16 %v802, %v800
        %v811 = vpack.c.bf16 %v803, %v801
        %v820 = vunpack.c.l.b16 %v804
        %v821 = vunpack.c.l.b16 %v805
        %v822 = vunpack.c.h.b16 %v804
        %v823 = vunpack.c.h.b16 %v805
        %v824 = vunpack.c.l.b16 %v806
        %v825 = vunpack.c.l.b16 %v807
        %v826 = vunpack.c.h.b16 %v806
        %v827 = vunpack.c.h.b16 %v807
        %v828 = vunpack.c.l.b16 %v808
        %v829 = vunpack.c.l.b16 %v809
        %v830 = vunpack.c.h.b16 %v808
        %v831 = vunpack.c.h.b16 %v809
        %v832 = vunpack.c.l.b16 %v810
        %v833 = vunpack.c.l.b16 %v811
        %v834 = vunpack.c.h.b16 %v810
        %v835 = vunpack.c.h.b16 %v811
        %v836 = vpack.c.b16 %v821, %v820
        %v837 = vpack.c.b16 %v823, %v822
        %v838 = vpack.c.b16 %v825, %v824
        %v839 = vpack.c.b16 %v827, %v826
        %v840 = vpack.c.b16 %v829, %v828
        %v841 = vpack.c.b16 %v831, %v830
        %v842 = vpack.c.b16 %v833, %v832
        %v843 = vpack.c.b16 %v835, %v834
        %852 = vst [vmem:[%s367] sm:$0xff] %v836
        %853 = vst [vmem:[%s367 + $0x8] sm:$0xff] %v837
        %854 = vst [vmem:[%s367 + $0x10] sm:$0xff] %v838
        %855 = vst [vmem:[%s367 + $0x18] sm:$0xff] %v839
        %856 = vst [vmem:[%s367 + $0x20] sm:$0xff] %v840
        %857 = vst [vmem:[%s367 + $0x28] sm:$0xff] %v841
        %858 = vst [vmem:[%s367 + $0x30] sm:$0xff] %v842
        %859 = vst [vmem:[%s367 + $0x38] sm:$0xff] %v843
        %s860 = sand.u32 %s161, 1
        %s861 = sand.u32 %s161, 1
        %s862 = smul.addr %s861, 64
        %s863 = scalar_lea.vmem [#allocation4], %s862
        // Predicated region
        $region121: #{decoder_forward.4} parent=111 // pred_check
          %p864 = pneg %p171
        $region122: #{decoder_forward.4} parent=111 // pred_check_branch
          %866 = sbr.rel (%p864) target = $region124
        $region123: #{decoder_forward.4} parent=111 // pred_region
          %s867 = smul.u32 2, %s17
          %s868 = smul.addr %s867, 4
          %s869 = scalar_lea.vmem %s6, %s868
          // Predicated region
          $region125: #{decoder_forward.4} parent=123 // pred_check
            _
          $region126: #{decoder_forward.4} parent=123 // pred_check_branch
            %871 = sbr.rel (0) target = $region128
          $region127: #{decoder_forward.4} parent=123 // pred_region
            // Predicated region
            $region129: #{decoder_forward.4} parent=127 // pred_check
              _
            $region130: #{decoder_forward.4} parent=127 // pred_check_branch
              %873 = sbr.rel (0) target = $region132
            $region131: #{decoder_forward.4} parent=127 // pred_region
              // Predicated region
              $region144: #{decoder_forward.4} parent=131 // pred_check
                _
              $region145: #{decoder_forward.4} parent=131 // pred_check_branch
                %902 = sbr.rel (0) target = $region147
              $region146: #{decoder_forward.4} parent=131 // pred_region
                loop: start=0, step=1, limit=1
                $region148: #{decoder_forward.4} parent=146 // loop_pre_header
                  _
                $region149: #{decoder_forward.4} parent=146 // loop_header
                  %s904 = sphi 0, %s908
                  %p905 = scmp.ge.s32.totalorder %s904, 1
                  %s909 = sphi %s863, %s863
                  %s910 = sphi %s869, %s869
                $region150: #{decoder_forward.4} parent=146 // loop_header_branch
                  %907 = sbr.rel (%p905) target = $region154
                $region151: #{decoder_forward.4} parent=146 // loop_body
                  %v911 = vld [vmem:[%s909] sm:$0xff]
                  %912 = vst [vmem:[%s910] sm:$0xff] %v911
                  %v913 = vld [vmem:[%s909 + $0x8] sm:$0xff]
                  %914 = vst [vmem:[%s910 + $0x10] sm:$0xff] %v913
                  %v915 = vld [vmem:[%s909 + $0x10] sm:$0xff]
                  %916 = vst [vmem:[%s910 + $0x20] sm:$0xff] %v915
                  %v917 = vld [vmem:[%s909 + $0x18] sm:$0xff]
                  %918 = vst [vmem:[%s910 + $0x30] sm:$0xff] %v917
                  %v919 = vld [vmem:[%s909 + $0x20] sm:$0xff]
                  %920 = vst [vmem:[%s910 + $0x40] sm:$0xff] %v919
                  %v921 = vld [vmem:[%s909 + $0x28] sm:$0xff]
                  %922 = vst [vmem:[%s910 + $0x50] sm:$0xff] %v921
                  %v923 = vld [vmem:[%s909 + $0x30] sm:$0xff]
                  %924 = vst [vmem:[%s910 + $0x60] sm:$0xff] %v923
                  %v925 = vld [vmem:[%s909 + $0x38] sm:$0xff]
                  %926 = vst [vmem:[%s910 + $0x70] sm:$0xff] %v925
                $region152: #{decoder_forward.4} parent=146 // loop_footer
                  %s908 = sadd.s32 1, %s904
                $region153: #{decoder_forward.4} parent=146 // loop_footer_branch
                  %903 = sbr.rel target = $region149
                $region154: #{decoder_forward.4} parent=146 // loop_exit
                  _
              $region147: #{decoder_forward.4} parent=131 // pred_fallthru
                _
              // Predicated region
              $region155: #{decoder_forward.4} parent=131 // pred_check
                _
              $region156: #{decoder_forward.4} parent=131 // pred_check_branch
                %928 = sbr.rel target = $region158
              $region157: #{decoder_forward.4} parent=131 // pred_region
                _
              $region158: #{decoder_forward.4} parent=131 // pred_fallthru
                _
            $region132: #{decoder_forward.4} parent=127 // pred_fallthru
              _
            // Predicated region
            $region133: #{decoder_forward.4} parent=127 // pred_check
              _
            $region134: #{decoder_forward.4} parent=127 // pred_check_branch
              %875 = sbr.rel target = $region136
            $region135: #{decoder_forward.4} parent=127 // pred_region
              loop: start=0, step=1, limit=1
              $region137: #{decoder_forward.4} parent=135 // loop_pre_header
                _
              $region138: #{decoder_forward.4} parent=135 // loop_header
                %s878 = sphi 0, %s882
                %p879 = scmp.ge.s32.totalorder %s878, 1
                %s883 = sphi %s863, %s863
                %s884 = sphi %s869, %s869
              $region139: #{decoder_forward.4} parent=135 // loop_header_branch
                %881 = sbr.rel (%p879) target = $region143
              $region140: #{decoder_forward.4} parent=135 // loop_body
                %v885 = vld [vmem:[%s883] sm:$0xff]
                %886 = vst [vmem:[%s884] sm:$0xff] %v885
                %v887 = vld [vmem:[%s883 + $0x8] sm:$0xff]
                %888 = vst [vmem:[%s884 + $0x10] sm:$0xff] %v887
                %v889 = vld [vmem:[%s883 + $0x10] sm:$0xff]
                %890 = vst [vmem:[%s884 + $0x20] sm:$0xff] %v889
                %v891 = vld [vmem:[%s883 + $0x18] sm:$0xff]
                %892 = vst [vmem:[%s884 + $0x30] sm:$0xff] %v891
                %v893 = vld [vmem:[%s883 + $0x20] sm:$0xff]
                %894 = vst [vmem:[%s884 + $0x40] sm:$0xff] %v893
                %v895 = vld [vmem:[%s883 + $0x28] sm:$0xff]
                %896 = vst [vmem:[%s884 + $0x50] sm:$0xff] %v895
                %v897 = vld [vmem:[%s883 + $0x30] sm:$0xff]
                %898 = vst [vmem:[%s884 + $0x60] sm:$0xff] %v897
                %v899 = vld [vmem:[%s883 + $0x38] sm:$0xff]
                %900 = vst [vmem:[%s884 + $0x70] sm:$0xff] %v899
              $region141: #{decoder_forward.4} parent=135 // loop_footer
                %s882 = sadd.s32 1, %s878
              $region142: #{decoder_forward.4} parent=135 // loop_footer_branch
                %877 = sbr.rel target = $region138
              $region143: #{decoder_forward.4} parent=135 // loop_exit
                _
            $region136: #{decoder_forward.4} parent=127 // pred_fallthru
              _
          $region128: #{decoder_forward.4} parent=123 // pred_fallthru
            _
          %929 = vnop
        $region124: #{decoder_forward.4} parent=111 // pred_fallthru
          _
      $region112: #{decoder_forward.4} parent=5 // pred_fallthru
        _
      %p930 = scmp.le.s32.totalorder 2, %s12
      // Predicated region
      $region159: #{decoder_forward.4} parent=5 // pred_check
        %p931 = pneg %p930
      $region160: #{decoder_forward.4} parent=5 // pred_check_branch
        %933 = sbr.rel (%p931) target = $region162
      $region161: #{decoder_forward.4} parent=5 // pred_region
        %s934 = ssub.s32 %s12, 2
        // Predicated region
        $region163: #{decoder_forward.4} parent=161 // pred_check
          %p935 = pneg %p177
        $region164: #{decoder_forward.4} parent=161 // pred_check_branch
          %937 = sbr.rel (%p935) target = $region166
        $region165: #{decoder_forward.4} parent=161 // pred_region
          %s938 = sand.u32 %s162, 1
          %s939 = sand.u32 %s162, 1
          %s940 = smul.addr %s939, 64
          %s941 = scalar_lea.vmem [#allocation4], %s940
        $region166: #{decoder_forward.4} parent=161 // pred_fallthru
          _
      $region162: #{decoder_forward.4} parent=5 // pred_fallthru
        _
    $region6: #{decoder_forward.4} parent=1 // loop_footer
      %s16 = sadd.s32 1, %s12
    $region7: #{decoder_forward.4} parent=1 // loop_footer_branch
      %11 = sbr.rel target = $region3
    $region8: #{decoder_forward.4} parent=1 // loop_exit
      _

// kernel: decoder_forward.3
$region0: #{decoder_forward.3}
  #allocation0 [shape = 'u32[]', space=smem, size = 0x4, offset = 0x4, fixed_abs, tag = 'smem constant byte address 0x4 - core index']
  #allocation1 [shape = 'u32[144,128]{1,0:T(1,128)}', space=vmem, size = 0x12000, scoped, tag = 'internal scratch']
  %s0 = inlined_call_operand.vmem [shape: bf16[64,512], index: 0, kind: input, shape index: {}]
  %s1 = inlined_call_operand.vmem [shape: bf16[8,512], index: 1, kind: input, shape index: {}]
  %s2 = inlined_call_operand.vmem [shape: bf16[16,64], index: 2, kind: input, shape index: {}]
  %s3 = inlined_call_operand.vmem [shape: bf16[16,8], index: 3, kind: input, shape index: {}]
  %s4 = inlined_call_operand.vmem [shape: f32[16,1], index: 4, kind: input, shape index: {}]
  %s5 = inlined_call_operand.vmem [shape: f32[16,1], index: 5, kind: input, shape index: {}]
  %s6 = inlined_call_operand.vmem [shape: bf16[16,512], index: 6, kind: output, shape index: {}]
  %s7 = sld [smem:[#allocation0]]
  $region129: #{decoder_forward.3} parent=0
    _
  %s9 = ssub.s32 1, %s7
  %s10 = scalar_select 0, %s9, %s7
  $region1: #{decoder_forward.3} parent=0
    #allocation2 [shape = 'u8[65536]{0}', space=vmem, size = 0x10000, scoped, tag = 'input window, operand 0']
    #allocation3 [shape = 'u8[16384]{0}', space=vmem, size = 0x4000, scoped, tag = 'output window, operand 0']
    loop: start=0, step=1, limit=4
    $region2: #{decoder_forward.3} parent=1 // loop_pre_header
      _
    $region3: #{decoder_forward.3} parent=1 // loop_header
      %s12 = sphi 0, %s16
      %p13 = scmp.ge.s32.totalorder %s12, 4
      %s22 = sphi 0, %s24
      %s25 = sphi 0, %s22
      %s26 = sphi 0, %s25
      %s42 = sphi 0, %s26
      %s48 = sphi 0, %s50
      %s51 = sphi 0, %s48
      %s52 = sphi 0, %s51
      %s68 = sphi 0, %s52
      %s72 = sphi 0, %s72
      %s74 = sphi 0, %s72
      %s75 = sphi 0, %s74
      %s89 = sphi 0, %s75
      %s93 = sphi 0, %s93
      %s95 = sphi 0, %s93
      %s96 = sphi 0, %s95
      %s110 = sphi 0, %s96
      %s114 = sphi 0, %s114
      %s116 = sphi 0, %s114
      %s117 = sphi 0, %s116
      %s131 = sphi 0, %s117
      %s135 = sphi 0, %s135
      %s137 = sphi 0, %s135
      %s138 = sphi 0, %s137
      %s152 = sphi 0, %s138
      %s158 = sphi 0, %s160
      %s161 = sphi 0, %s158
      %s162 = sphi 0, %s161
      %s178 = sphi 0, %s162
    $region4: #{decoder_forward.3} parent=1 // loop_header_branch
      %15 = sbr.rel (%p13) target = $region8
    $region5: #{decoder_forward.3} parent=1 // loop_body
      %s17 = ssub.s32 %s12, 1
      %s18 = ssub.s32 %s12, 2
      %s19 = sadd.s32 %s12, 1
      %s20 = ssub.s32 %s12, %s19
      %p21 = scmp.eq.s32.totalorder %s20, 0
      %s23 = sadd.s32 %s22, 1
      %s24 = scalar_select %p21, %s22, %s23
      %p27 = pneg %p21
      %p28 = scmp.eq.s32.totalorder %s12, 1
      %p29 = por %p27, %p28
      %p30 = scmp.ne.s32.totalorder %s22, %s25
      %p31 = scmp.eq.s32.totalorder %s12, 0
      %p32 = por %p30, %p31
      %p33 = scmp.ne.s32.totalorder %s22, %s25
      %p34 = scmp.eq.s32.totalorder %s17, 1
      %p35 = por %p33, %p34
      %p36 = scmp.ne.s32.totalorder %s25, %s26
      %p37 = scmp.eq.s32.totalorder %s17, 0
      %p38 = por %p36, %p37
      %p39 = scmp.ne.s32.totalorder %s25, %s26
      %p40 = scmp.eq.s32.totalorder %s18, 1
      %p41 = por %p39, %p40
      %p43 = scmp.ne.s32.totalorder %s26, %s42
      %p44 = scmp.eq.s32.totalorder %s18, 0
      %p45 = por %p43, %p44
      %s46 = ssub.s32 %s12, %s19
      %p47 = scmp.eq.s32.totalorder %s46, 0
      %s49 = sadd.s32 %s48, 1
      %s50 = scalar_select %p47, %s48, %s49
      %p53 = pneg %p47
      %p54 = scmp.eq.s32.totalorder %s12, 1
      %p55 = por %p53, %p54
      %p56 = scmp.ne.s32.totalorder %s48, %s51
      %p57 = scmp.eq.s32.totalorder %s12, 0
      %p58 = por %p56, %p57
      %p59 = scmp.ne.s32.totalorder %s48, %s51
      %p60 = scmp.eq.s32.totalorder %s17, 1
      %p61 = por %p59, %p60
      %p62 = scmp.ne.s32.totalorder %s51, %s52
      %p63 = scmp.eq.s32.totalorder %s17, 0
      %p64 = por %p62, %p63
      %p65 = scmp.ne.s32.totalorder %s51, %s52
      %p66 = scmp.eq.s32.totalorder %s18, 1
      %p67 = por %p65, %p66
      %p69 = scmp.ne.s32.totalorder %s52, %s68
      %p70 = scmp.eq.s32.totalorder %s18, 0
      %p71 = por %p69, %p70
      %s73 = sadd.s32 %s72, 1
      %p76 = scmp.eq.s32.totalorder %s12, 1
      %p77 = scmp.ne.s32.totalorder %s72, %s74
      %p78 = scmp.eq.s32.totalorder %s12, 0
      %p79 = por %p77, %p78
      %p80 = scmp.ne.s32.totalorder %s72, %s74
      %p81 = scmp.eq.s32.totalorder %s17, 1
      %p82 = por %p80, %p81
      %p83 = scmp.ne.s32.totalorder %s74, %s75
      %p84 = scmp.eq.s32.totalorder %s17, 0
      %p85 = por %p83, %p84
      %p86 = scmp.ne.s32.totalorder %s74, %s75
      %p87 = scmp.eq.s32.totalorder %s18, 1
      %p88 = por %p86, %p87
      %p90 = scmp.ne.s32.totalorder %s75, %s89
      %p91 = scmp.eq.s32.totalorder %s18, 0
      %p92 = por %p90, %p91
      %s94 = sadd.s32 %s93, 1
      %p97 = scmp.eq.s32.totalorder %s12, 1
      %p98 = scmp.ne.s32.totalorder %s93, %s95
      %p99 = scmp.eq.s32.totalorder %s12, 0
      %p100 = por %p98, %p99
      %p101 = scmp.ne.s32.totalorder %s93, %s95
      %p102 = scmp.eq.s32.totalorder %s17, 1
      %p103 = por %p101, %p102
      %p104 = scmp.ne.s32.totalorder %s95, %s96
      %p105 = scmp.eq.s32.totalorder %s17, 0
      %p106 = por %p104, %p105
      %p107 = scmp.ne.s32.totalorder %s95, %s96
      %p108 = scmp.eq.s32.totalorder %s18, 1
      %p109 = por %p107, %p108
      %p111 = scmp.ne.s32.totalorder %s96, %s110
      %p112 = scmp.eq.s32.totalorder %s18, 0
      %p113 = por %p111, %p112
      %s115 = sadd.s32 %s114, 1
      %p118 = scmp.eq.s32.totalorder %s12, 1
      %p119 = scmp.ne.s32.totalorder %s114, %s116
      %p120 = scmp.eq.s32.totalorder %s12, 0
      %p121 = por %p119, %p120
      %p122 = scmp.ne.s32.totalorder %s114, %s116
      %p123 = scmp.eq.s32.totalorder %s17, 1
      %p124 = por %p122, %p123
      %p125 = scmp.ne.s32.totalorder %s116, %s117
      %p126 = scmp.eq.s32.totalorder %s17, 0
      %p127 = por %p125, %p126
      %p128 = scmp.ne.s32.totalorder %s116, %s117
      %p129 = scmp.eq.s32.totalorder %s18, 1
      %p130 = por %p128, %p129
      %p132 = scmp.ne.s32.totalorder %s117, %s131
      %p133 = scmp.eq.s32.totalorder %s18, 0
      %p134 = por %p132, %p133
      %s136 = sadd.s32 %s135, 1
      %p139 = scmp.eq.s32.totalorder %s12, 1
      %p140 = scmp.ne.s32.totalorder %s135, %s137
      %p141 = scmp.eq.s32.totalorder %s12, 0
      %p142 = por %p140, %p141
      %p143 = scmp.ne.s32.totalorder %s135, %s137
      %p144 = scmp.eq.s32.totalorder %s17, 1
      %p145 = por %p143, %p144
      %p146 = scmp.ne.s32.totalorder %s137, %s138
      %p147 = scmp.eq.s32.totalorder %s17, 0
      %p148 = por %p146, %p147
      %p149 = scmp.ne.s32.totalorder %s137, %s138
      %p150 = scmp.eq.s32.totalorder %s18, 1
      %p151 = por %p149, %p150
      %p153 = scmp.ne.s32.totalorder %s138, %s152
      %p154 = scmp.eq.s32.totalorder %s18, 0
      %p155 = por %p153, %p154
      %s156 = ssub.s32 %s12, %s19
      %p157 = scmp.eq.s32.totalorder %s156, 0
      %s159 = sadd.s32 %s158, 1
      %s160 = scalar_select %p157, %s158, %s159
      %p163 = pneg %p157
      %p164 = scmp.eq.s32.totalorder %s12, 1
      %p165 = por %p163, %p164
      %p166 = scmp.ne.s32.totalorder %s158, %s161
      %p167 = scmp.eq.s32.totalorder %s12, 0
      %p168 = por %p166, %p167
      %p169 = scmp.ne.s32.totalorder %s158, %s161
      %p170 = scmp.eq.s32.totalorder %s17, 1
      %p171 = por %p169, %p170
      %p172 = scmp.ne.s32.totalorder %s161, %s162
      %p173 = scmp.eq.s32.totalorder %s17, 0
      %p174 = por %p172, %p173
      %p175 = scmp.ne.s32.totalorder %s161, %s162
      %p176 = scmp.eq.s32.totalorder %s18, 1
      %p177 = por %p175, %p176
      %p179 = scmp.ne.s32.totalorder %s162, %s178
      %p180 = scmp.eq.s32.totalorder %s18, 0
      %p181 = por %p179, %p180
      %p182 = scmp.le.s32.totalorder 1, %s12
      %p183 = scmp.lt.s32.totalorder %s12, 3
      %p184 = pnand %p182, %p183
      %p185 = pneg %p184
      // Predicated region
      $region9: #{decoder_forward.3} parent=5 // pred_check
        _
      $region10: #{decoder_forward.3} parent=5 // pred_check_branch
        %187 = sbr.rel (%p184) target = $region12
      $region11: #{decoder_forward.3} parent=5 // pred_region
        %s188 = ssub.s32 %s12, 1
        // Predicated region
        $region13: #{decoder_forward.3} parent=11 // pred_check
          %p189 = pneg %p85
        $region14: #{decoder_forward.3} parent=11 // pred_check_branch
          %191 = sbr.rel (%p189) target = $region16
        $region15: #{decoder_forward.3} parent=11 // pred_region
          _
        $region16: #{decoder_forward.3} parent=11 // pred_fallthru
          _
        // Predicated region
        $region17: #{decoder_forward.3} parent=11 // pred_check
          %p192 = pneg %p106
        $region18: #{decoder_forward.3} parent=11 // pred_check_branch
          %194 = sbr.rel (%p192) target = $region20
        $region19: #{decoder_forward.3} parent=11 // pred_region
          _
        $region20: #{decoder_forward.3} parent=11 // pred_fallthru
          _
        // Predicated region
        $region21: #{decoder_forward.3} parent=11 // pred_check
          %p195 = pneg %p127
        $region22: #{decoder_forward.3} parent=11 // pred_check_branch
          %197 = sbr.rel (%p195) target = $region24
        $region23: #{decoder_forward.3} parent=11 // pred_region
          _
        $region24: #{decoder_forward.3} parent=11 // pred_fallthru
          _
        // Predicated region
        $region25: #{decoder_forward.3} parent=11 // pred_check
          %p198 = pneg %p148
        $region26: #{decoder_forward.3} parent=11 // pred_check_branch
          %200 = sbr.rel (%p198) target = $region28
        $region27: #{decoder_forward.3} parent=11 // pred_region
          _
        $region28: #{decoder_forward.3} parent=11 // pred_fallthru
          _
      $region12: #{decoder_forward.3} parent=5 // pred_fallthru
        _
      %p201 = scmp.lt.s32.totalorder %s12, 2
      // Predicated region
      $region29: #{decoder_forward.3} parent=5 // pred_check
        %p202 = pneg %p201
      $region30: #{decoder_forward.3} parent=5 // pred_check_branch
        %204 = sbr.rel (%p202) target = $region32
      $region31: #{decoder_forward.3} parent=5 // pred_region
        // Predicated region
        $region33: #{decoder_forward.3} parent=31 // pred_check
          %p205 = pneg %p32
        $region34: #{decoder_forward.3} parent=31 // pred_check_branch
          %207 = sbr.rel (%p205) target = $region36
        $region35: #{decoder_forward.3} parent=31 // pred_region
          %s208 = sand.u32 %s22, 1
          %s209 = sand.u32 %s22, 1
          %s210 = smul.addr %s209, 64
          %s211 = scalar_lea.vmem [#allocation2], %s210
          %s212 = smul.u32 2, %s12
          %s213 = smul.addr %s212, 4
          %s214 = scalar_lea.vmem %s0, %s213
          // Predicated region
          $region37: #{decoder_forward.3} parent=35 // pred_check
            _
          $region38: #{decoder_forward.3} parent=35 // pred_check_branch
            %216 = sbr.rel (0) target = $region40
          $region39: #{decoder_forward.3} parent=35 // pred_region
            // Predicated region
            $region41: #{decoder_forward.3} parent=39 // pred_check
              _
            $region42: #{decoder_forward.3} parent=39 // pred_check_branch
              %218 = sbr.rel (0) target = $region44
            $region43: #{decoder_forward.3} parent=39 // pred_region
              // Predicated region
              $region56: #{decoder_forward.3} parent=43 // pred_check
                _
              $region57: #{decoder_forward.3} parent=43 // pred_check_branch
                %247 = sbr.rel (0) target = $region59
              $region58: #{decoder_forward.3} parent=43 // pred_region
                loop: start=0, step=1, limit=1
                $region60: #{decoder_forward.3} parent=58 // loop_pre_header
                  _
                $region61: #{decoder_forward.3} parent=58 // loop_header
                  %s249 = sphi 0, %s253
                  %p250 = scmp.ge.s32.totalorder %s249, 1
                  %s254 = sphi %s214, %s214
                  %s255 = sphi %s211, %s211
                $region62: #{decoder_forward.3} parent=58 // loop_header_branch
                  %252 = sbr.rel (%p250) target = $region66
                $region63: #{decoder_forward.3} parent=58 // loop_body
                  %v256 = vld [vmem:[%s254] sm:$0xff]
                  %257 = vst [vmem:[%s255] sm:$0xff] %v256
                  %v258 = vld [vmem:[%s254 + $0x10] sm:$0xff]
                  %259 = vst [vmem:[%s255 + $0x8] sm:$0xff] %v258
                  %v260 = vld [vmem:[%s254 + $0x20] sm:$0xff]
                  %261 = vst [vmem:[%s255 + $0x10] sm:$0xff] %v260
                  %v262 = vld [vmem:[%s254 + $0x30] sm:$0xff]
                  %263 = vst [vmem:[%s255 + $0x18] sm:$0xff] %v262
                  %v264 = vld [vmem:[%s254 + $0x40] sm:$0xff]
                  %265 = vst [vmem:[%s255 + $0x20] sm:$0xff] %v264
                  %v266 = vld [vmem:[%s254 + $0x50] sm:$0xff]
                  %267 = vst [vmem:[%s255 + $0x28] sm:$0xff] %v266
                  %v268 = vld [vmem:[%s254 + $0x60] sm:$0xff]
                  %269 = vst [vmem:[%s255 + $0x30] sm:$0xff] %v268
                  %v270 = vld [vmem:[%s254 + $0x70] sm:$0xff]
                  %271 = vst [vmem:[%s255 + $0x38] sm:$0xff] %v270
                $region64: #{decoder_forward.3} parent=58 // loop_footer
                  %s253 = sadd.s32 1, %s249
                $region65: #{decoder_forward.3} parent=58 // loop_footer_branch
                  %248 = sbr.rel target = $region61
                $region66: #{decoder_forward.3} parent=58 // loop_exit
                  _
              $region59: #{decoder_forward.3} parent=43 // pred_fallthru
                _
              // Predicated region
              $region67: #{decoder_forward.3} parent=43 // pred_check
                _
              $region68: #{decoder_forward.3} parent=43 // pred_check_branch
                %273 = sbr.rel target = $region70
              $region69: #{decoder_forward.3} parent=43 // pred_region
                _
              $region70: #{decoder_forward.3} parent=43 // pred_fallthru
                _
            $region44: #{decoder_forward.3} parent=39 // pred_fallthru
              _
            // Predicated region
            $region45: #{decoder_forward.3} parent=39 // pred_check
              _
            $region46: #{decoder_forward.3} parent=39 // pred_check_branch
              %220 = sbr.rel target = $region48
            $region47: #{decoder_forward.3} parent=39 // pred_region
              loop: start=0, step=1, limit=1
              $region49: #{decoder_forward.3} parent=47 // loop_pre_header
                _
              $region50: #{decoder_forward.3} parent=47 // loop_header
                %s223 = sphi 0, %s227
                %p224 = scmp.ge.s32.totalorder %s223, 1
                %s228 = sphi %s214, %s214
                %s229 = sphi %s211, %s211
              $region51: #{decoder_forward.3} parent=47 // loop_header_branch
                %226 = sbr.rel (%p224) target = $region55
              $region52: #{decoder_forward.3} parent=47 // loop_body
                %v230 = vld [vmem:[%s228] sm:$0xff]
                %231 = vst [vmem:[%s229] sm:$0xff] %v230
                %v232 = vld [vmem:[%s228 + $0x10] sm:$0xff]
                %233 = vst [vmem:[%s229 + $0x8] sm:$0xff] %v232
                %v234 = vld [vmem:[%s228 + $0x20] sm:$0xff]
                %235 = vst [vmem:[%s229 + $0x10] sm:$0xff] %v234
                %v236 = vld [vmem:[%s228 + $0x30] sm:$0xff]
                %237 = vst [vmem:[%s229 + $0x18] sm:$0xff] %v236
                %v238 = vld [vmem:[%s228 + $0x40] sm:$0xff]
                %239 = vst [vmem:[%s229 + $0x20] sm:$0xff] %v238
                %v240 = vld [vmem:[%s228 + $0x50] sm:$0xff]
                %241 = vst [vmem:[%s229 + $0x28] sm:$0xff] %v240
                %v242 = vld [vmem:[%s228 + $0x60] sm:$0xff]
                %243 = vst [vmem:[%s229 + $0x30] sm:$0xff] %v242
                %v244 = vld [vmem:[%s228 + $0x70] sm:$0xff]
                %245 = vst [vmem:[%s229 + $0x38] sm:$0xff] %v244
              $region53: #{decoder_forward.3} parent=47 // loop_footer
                %s227 = sadd.s32 1, %s223
              $region54: #{decoder_forward.3} parent=47 // loop_footer_branch
                %222 = sbr.rel target = $region50
              $region55: #{decoder_forward.3} parent=47 // loop_exit
                _
            $region48: #{decoder_forward.3} parent=39 // pred_fallthru
              _
          $region40: #{decoder_forward.3} parent=35 // pred_fallthru
            _
          %274 = vnop
        $region36: #{decoder_forward.3} parent=31 // pred_fallthru
          _
        // Predicated region
        $region71: #{decoder_forward.3} parent=31 // pred_check
          %p275 = pneg %p58
        $region72: #{decoder_forward.3} parent=31 // pred_check_branch
          %277 = sbr.rel (%p275) target = $region74
        $region73: #{decoder_forward.3} parent=31 // pred_region
          %s278 = smul.u32 2, %s12
          %p279 = scmp.lt.s32.totalorder %s278, 3
          %s280 = scalar_select %p279, %s278, 3
          %s281 = smul.addr %s280, 4
          %s282 = scalar_lea.vmem %s1, %s281
          %s283 = smul.u32 2, %s12
        $region74: #{decoder_forward.3} parent=31 // pred_fallthru
          _
      $region32: #{decoder_forward.3} parent=5 // pred_fallthru
        _
      %p284 = scmp.le.s32.totalorder 1, %s12
      %p285 = scmp.lt.s32.totalorder %s12, 3
      %p286 = pnand %p284, %p285
      %p287 = pneg %p286
      // Predicated region
      $region75: #{decoder_forward.3} parent=5 // pred_check
        _
      $region76: #{decoder_forward.3} parent=5 // pred_check_branch
        %289 = sbr.rel (%p286) target = $region78
      $region77: #{decoder_forward.3} parent=5 // pred_region
        %s290 = ssub.s32 %s12, 1
        %s291 = sand.u32 %s25, 1
        %s292 = sand.u32 %s25, 1
        %s293 = smul.addr %s292, 64
        %s294 = scalar_lea.vmem [#allocation2], %s293
        // Predicated region
        $region79: #{decoder_forward.3} parent=77 // pred_check
          %p295 = pneg %p38
        $region80: #{decoder_forward.3} parent=77 // pred_check_branch
          %297 = sbr.rel (%p295) target = $region82
        $region81: #{decoder_forward.3} parent=77 // pred_region
          _
        $region82: #{decoder_forward.3} parent=77 // pred_fallthru
          _
        %s298 = sand.u32 %s25, 1
        %s299 = sand.u32 %s25, 1
        %s300 = smul.addr %s299, 64
        %s301 = scalar_lea.vmem [#allocation2], %s300
        %p302 = pneg %p38
        %p303 = pneg %p35
        %s304 = smul.u32 2, %s17
        %p305 = scmp.lt.s32.totalorder %s304, 3
        %s306 = scalar_select %p305, %s304, 3
        %s307 = smul.addr %s306, 4
        %s308 = scalar_lea.vmem %s1, %s307
        %p309 = pneg %p64
        %p310 = pneg %p61
        %p311 = pneg %p85
        %p312 = pneg %p82
        %p313 = pneg %p106
        %p314 = pneg %p103
        %p315 = pneg %p127
        %p316 = pneg %p124
        %p317 = pneg %p148
        %p318 = pneg %p145
        %p319 = pneg %p174
        %p320 = pneg %p171
        %s321 = sand.u32 %s161, 1
        %s322 = sand.u32 %s161, 1
        %s323 = smul.addr %s322, 16
        %s324 = scalar_lea.vmem [#allocation3], %s323
        %s325 = smul.u32 2, %s17
        %s326 = smul.u32 2, %s17
        %p327 = scmp.lt.s32.totalorder %s326, 3
        %s328 = scalar_select %p327, %s326, 3
        %s329 = smul.addr %s328, 4
        %s330 = scalar_lea.vmem %s1, %s329
        %s331 = smul.u32 2, %s17
        %s332 = smul.u32 2, %s17
        %v334 = vld [vmem:[%s2] sm:$0xf]
        %v335 = vld [vmem:[%s2 + $0x4] sm:$0xf]
        %v336 = vld [vmem:[%s294] sm:$0xff]
        %v337 = vld [vmem:[%s294 + $0x8] sm:$0xff]
        %v338 = vld [vmem:[%s294 + $0x10] sm:$0xff]
        %v339 = vld [vmem:[%s294 + $0x18] sm:$0xff]
        %v340 = vld [vmem:[%s294 + $0x20] sm:$0xff]
        %v341 = vld [vmem:[%s294 + $0x28] sm:$0xff]
        %v342 = vld [vmem:[%s294 + $0x30] sm:$0xff]
        %v343 = vld [vmem:[%s294 + $0x38] sm:$0xff]
        %v344 = vld [vmem:[%s3] sm:$0xf]
        %v345 = vld [vmem:[%s3 + $0x4] sm:$0xf]
        %v346 = vld [vmem:[%s330] sm:$0xff]
        %v349 = vunpack.c.l.b16 %v344
        %v350 = vunpack.c.l.b16 %v345
        %v351 = vpack.c.b16 %v350, %v349
        %v353 = vunpack.c.l.b16 %v346
        %v354 = vunpack.c.h.b16 %v346
        %v355 = vpack.c.b16 %v353, %v353
        %v356 = vpack.c.b16 %v354, %v354
        %vm357 = vcmask 64512
        %v359 = vsel %vm357, %v351, 0
        %vm361 = vcmask 1043456
        %v363 = vsel %vm361, %v355, 0
        %v366 = vsel %vm361, %v356, 0
        %368 = vmatprep.subr.bf16.mxu0 %v366
        %369 = vmatpush1.bf16.msra.mxu0 %v363
        %370 = vmatprep.subr.bf16.mxu0 0
        %371 = vmatpush1.bf16.msra.mxu0 0
        %372 = vmatprep.subr.bf16.mxu0 0
        %373 = vmatpush1.bf16.msra.mxu0 0
        %374 = vmatprep.subr.bf16.mxu0 0
        %375 = vmatpush1.bf16.msra.mxu0 0
        %376 = vmatprep.subr.bf16.mxu0 0
        %377 = vmatpush1.bf16.msra.mxu0 0
        %378 = vmatprep.subr.bf16.mxu0 0
        %379 = vmatpush1.bf16.msra.mxu0 0
        %380 = vmatprep.subr.bf16.mxu0 0
        %381 = vmatpush1.bf16.msra.mxu0 0
        %382 = vmatprep.subr.bf16.mxu0 0
        %383 = vmatpush1.bf16.msra.mxu0 0
        %384 = vmatprep.subr.bf16.mxu0 0
        %385 = vmatpush1.bf16.msra.mxu0 0
        %386 = vmatprep.subr.bf16.mxu0 0
        %387 = vmatpush1.bf16.msra.mxu0 0
        %388 = vmatprep.subr.bf16.mxu0 0
        %389 = vmatpush1.bf16.msra.mxu0 0
        %390 = vmatprep.subr.bf16.mxu0 0
        %391 = vmatpush1.bf16.msra.mxu0 0
        %392 = vmatprep.subr.bf16.mxu0 0
        %393 = vmatpush1.bf16.msra.mxu0 0
        %394 = vmatprep.subr.bf16.mxu0 0
        %395 = vmatpush1.bf16.msra.mxu0 0
        %396 = vmatprep.subr.bf16.mxu0 0
        %397 = vmatpush1.bf16.msra.mxu0 0
        %398 = vmatprep.subr.bf16.mxu0 0
        %399 = vmatpush1.bf16.msra.mxu0 0
        %400 = vmatprep.mubr.bf16.mxu0 0
        %401 = vmatmul.mubr.bf16.gmra.mrb[0].mxu0 %v359
        %v402 = vpop.f32.mrb[0].mxu0
        %v403 = vadd.f32 0.0, %v402
        %v404 = vpop.f32.mrb[0].mxu0
        %v405 = vadd.f32 0.0, %v404
        %v406 = vpop.f32.mrb[0].mxu0
        %v407 = vadd.f32 0.0, %v406
        %v408 = vpop.f32.mrb[0].mxu0
        %v409 = vadd.f32 0.0, %v408
        %410 = vdwg.mxu0
        %v413 = vunpack.c.l.b16 %v334
        %v414 = vunpack.c.l.b16 %v335
        %v415 = vpack.c.b16 %v414, %v413
        %v424 = vunpack.c.l.b16 %v336
        %v425 = vunpack.c.h.b16 %v336
        %v426 = vunpack.c.l.b16 %v337
        %v427 = vunpack.c.h.b16 %v337
        %v428 = vunpack.c.l.b16 %v338
        %v429 = vunpack.c.h.b16 %v338
        %v430 = vunpack.c.l.b16 %v339
        %v431 = vunpack.c.h.b16 %v339
        %v432 = vunpack.c.l.b16 %v340
        %v433 = vunpack.c.h.b16 %v340
        %v434 = vunpack.c.l.b16 %v341
        %v435 = vunpack.c.h.b16 %v341
        %v436 = vunpack.c.l.b16 %v342
        %v437 = vunpack.c.h.b16 %v342
        %v438 = vunpack.c.l.b16 %v343
        %v439 = vunpack.c.h.b16 %v343
        %v440 = vpack.c.b16 %v426, %v424
        %v441 = vpack.c.b16 %v427, %v425
        %v442 = vpack.c.b16 %v430, %v428
        %v443 = vpack.c.b16 %v431, %v429
        %v444 = vpack.c.b16 %v434, %v432
        %v445 = vpack.c.b16 %v435, %v433
        %v446 = vpack.c.b16 %v438, %v436
        %v447 = vpack.c.b16 %v439, %v437
        %vm456 = vcmask 523264
        %v458 = vsel %vm456, %v415, 0
        %460 = vmatprep.subr.bf16.mxu0 %v441
        %461 = vmatpush1.bf16.msra.mxu0 %v440
        %462 = vmatprep.subr.bf16.mxu0 %v443
        %463 = vmatpush1.bf16.msra.mxu0 %v442
        %464 = vmatprep.subr.bf16.mxu0 %v445
        %465 = vmatpush1.bf16.msra.mxu0 %v444
        %466 = vmatprep.subr.bf16.mxu0 %v447
        %467 = vmatpush1.bf16.msra.mxu0 %v446
        %468 = vmatprep.subr.bf16.mxu0 0
        %469 = vmatpush1.bf16.msra.mxu0 0
        %470 = vmatprep.subr.bf16.mxu0 0
        %471 = vmatpush1.bf16.msra.mxu0 0
        %472 = vmatprep.subr.bf16.mxu0 0
        %473 = vmatpush1.bf16.msra.mxu0 0
        %474 = vmatprep.subr.bf16.mxu0 0
        %475 = vmatpush1.bf16.msra.mxu0 0
        %476 = vmatprep.subr.bf16.mxu0 0
        %477 = vmatpush1.bf16.msra.mxu0 0
        %478 = vmatprep.subr.bf16.mxu0 0
        %479 = vmatpush1.bf16.msra.mxu0 0
        %480 = vmatprep.subr.bf16.mxu0 0
        %481 = vmatpush1.bf16.msra.mxu0 0
        %482 = vmatprep.subr.bf16.mxu0 0
        %483 = vmatpush1.bf16.msra.mxu0 0
        %484 = vmatprep.subr.bf16.mxu0 0
        %485 = vmatpush1.bf16.msra.mxu0 0
        %486 = vmatprep.subr.bf16.mxu0 0
        %487 = vmatpush1.bf16.msra.mxu0 0
        %488 = vmatprep.subr.bf16.mxu0 0
        %489 = vmatpush1.bf16.msra.mxu0 0
        %490 = vmatprep.subr.bf16.mxu0 0
        %491 = vmatpush1.bf16.msra.mxu0 0
        %492 = vmatprep.mubr.bf16.mxu0 0
        %493 = vmatmul.mubr.bf16.gmra.mrb[0].mxu0 %v458
        %v494 = vpop.f32.mrb[0].mxu0
        %v495 = vadd.f32 %v403, %v494
        %v496 = vpop.f32.mrb[0].mxu0
        %v497 = vadd.f32 %v405, %v496
        %v498 = vpop.f32.mrb[0].mxu0
        %v499 = vadd.f32 %v407, %v498
        %v500 = vpop.f32.mrb[0].mxu0
        %v501 = vadd.f32 %v409, %v500
        %502 = vdwg.mxu0
        %v503 = vld [vmem:[%s4] sm:$0xff]
        %v504 = vld [vmem:[%s4 + $0x8] sm:$0xff]
        %506 = vset.pattern.permute.xlu0 0
        %507 = vperm.xlu0 %506, %v503
        %v508 = vpop.permute.xlu0 %507
        %511 = vset.pattern.permute.xlu0 0
        %512 = vperm.xlu0 %511, %v504
        %v513 = vpop.permute.xlu0 %512
        %v515 = vmul.f32 %v495, %v508
        %v516 = vmul.f32 %v497, %v508
        %v517 = vmul.f32 %v499, %v513
        %v518 = vmul.f32 %v501, %v513
        %v519 = vld [vmem:[%s5] sm:$0xff]
        %v520 = vld [vmem:[%s5 + $0x8] sm:$0xff]
        %522 = vset.pattern.permute.xlu0 0
        %523 = vperm.xlu0 %522, %v519
        %v524 = vpop.permute.xlu0 %523
        %527 = vset.pattern.permute.xlu0 0
        %528 = vperm.xlu0 %527, %v520
        %v529 = vpop.permute.xlu0 %528
        %v531 = vadd.f32 %v515, %v524
        %v532 = vadd.f32 %v516, %v524
        %v533 = vadd.f32 %v517, %v529
        %v534 = vadd.f32 %v518, %v529
        %v535 = vmax.f32 %v531, 0.0
        %v536 = vmax.f32 %v532, 0.0
        %v537 = vmax.f32 %v533, 0.0
        %v538 = vmax.f32 %v534, 0.0
        %v539 = vpack.c.bf16 %v537, %v535
        %v540 = vpack.c.bf16 %v538, %v536
        %v543 = vunpack.c.l.b16 %v539
        %v544 = vunpack.c.l.b16 %v540
        %v545 = vunpack.c.h.b16 %v539
        %v546 = vunpack.c.h.b16 %v540
        %v547 = vpack.c.b16 %v544, %v543
        %v548 = vpack.c.b16 %v546, %v545
        %551 = vst [vmem:[%s324] sm:$0xff] %v547
        %552 = vst [vmem:[%s324 + $0x8] sm:$0xff] %v548
        %s553 = sand.u32 %s161, 1
        %s554 = sand.u32 %s161, 1
        %s555 = smul.addr %s554, 16
        %s556 = scalar_lea.vmem [#allocation3], %s555
        // Predicated region
        $region83: #{decoder_forward.3} parent=77 // pred_check
          %p557 = pneg %p171
        $region84: #{decoder_forward.3} parent=77 // pred_check_branch
          %559 = sbr.rel (%p557) target = $region86
        $region85: #{decoder_forward.3} parent=77 // pred_region
          %s560 = smul.u32 2, %s17
          %s561 = smul.addr %s560, 4
          %s562 = scalar_lea.vmem %s6, %s561
          // Predicated region
          $region87: #{decoder_forward.3} parent=85 // pred_check
            _
          $region88: #{decoder_forward.3} parent=85 // pred_check_branch
            %564 = sbr.rel (0) target = $region90
          $region89: #{decoder_forward.3} parent=85 // pred_region
            // Predicated region
            $region91: #{decoder_forward.3} parent=89 // pred_check
              _
            $region92: #{decoder_forward.3} parent=89 // pred_check_branch
              %566 = sbr.rel (0) target = $region94
            $region93: #{decoder_forward.3} parent=89 // pred_region
              // Predicated region
              $region106: #{decoder_forward.3} parent=93 // pred_check
                _
              $region107: #{decoder_forward.3} parent=93 // pred_check_branch
                %583 = sbr.rel (0) target = $region109
              $region108: #{decoder_forward.3} parent=93 // pred_region
                loop: start=0, step=1, limit=1
                $region110: #{decoder_forward.3} parent=108 // loop_pre_header
                  _
                $region111: #{decoder_forward.3} parent=108 // loop_header
                  %s585 = sphi 0, %s589
                  %p586 = scmp.ge.s32.totalorder %s585, 1
                  %s590 = sphi %s556, %s556
                  %s591 = sphi %s562, %s562
                $region112: #{decoder_forward.3} parent=108 // loop_header_branch
                  %588 = sbr.rel (%p586) target = $region116
                $region113: #{decoder_forward.3} parent=108 // loop_body
                  %v592 = vld [vmem:[%s590] sm:$0xff]
                  %593 = vst [vmem:[%s591] sm:$0xff] %v592
                  %v594 = vld [vmem:[%s590 + $0x8] sm:$0xff]
                  %595 = vst [vmem:[%s591 + $0x10] sm:$0xff] %v594
                $region114: #{decoder_forward.3} parent=108 // loop_footer
                  %s589 = sadd.s32 1, %s585
                $region115: #{decoder_forward.3} parent=108 // loop_footer_branch
                  %584 = sbr.rel target = $region111
                $region116: #{decoder_forward.3} parent=108 // loop_exit
                  _
              $region109: #{decoder_forward.3} parent=93 // pred_fallthru
                _
              // Predicated region
              $region117: #{decoder_forward.3} parent=93 // pred_check
                _
              $region118: #{decoder_forward.3} parent=93 // pred_check_branch
                %597 = sbr.rel target = $region120
              $region119: #{decoder_forward.3} parent=93 // pred_region
                _
              $region120: #{decoder_forward.3} parent=93 // pred_fallthru
                _
            $region94: #{decoder_forward.3} parent=89 // pred_fallthru
              _
            // Predicated region
            $region95: #{decoder_forward.3} parent=89 // pred_check
              _
            $region96: #{decoder_forward.3} parent=89 // pred_check_branch
              %568 = sbr.rel target = $region98
            $region97: #{decoder_forward.3} parent=89 // pred_region
              loop: start=0, step=1, limit=1
              $region99: #{decoder_forward.3} parent=97 // loop_pre_header
                _
              $region100: #{decoder_forward.3} parent=97 // loop_header
                %s571 = sphi 0, %s575
                %p572 = scmp.ge.s32.totalorder %s571, 1
                %s576 = sphi %s556, %s556
                %s577 = sphi %s562, %s562
              $region101: #{decoder_forward.3} parent=97 // loop_header_branch
                %574 = sbr.rel (%p572) target = $region105
              $region102: #{decoder_forward.3} parent=97 // loop_body
                %v578 = vld [vmem:[%s576] sm:$0xff]
                %579 = vst [vmem:[%s577] sm:$0xff] %v578
                %v580 = vld [vmem:[%s576 + $0x8] sm:$0xff]
                %581 = vst [vmem:[%s577 + $0x10] sm:$0xff] %v580
              $region103: #{decoder_forward.3} parent=97 // loop_footer
                %s575 = sadd.s32 1, %s571
              $region104: #{decoder_forward.3} parent=97 // loop_footer_branch
                %570 = sbr.rel target = $region100
              $region105: #{decoder_forward.3} parent=97 // loop_exit
                _
            $region98: #{decoder_forward.3} parent=89 // pred_fallthru
              _
          $region90: #{decoder_forward.3} parent=85 // pred_fallthru
            _
          %598 = vnop
        $region86: #{decoder_forward.3} parent=77 // pred_fallthru
          _
      $region78: #{decoder_forward.3} parent=5 // pred_fallthru
        _
      %p599 = scmp.le.s32.totalorder 2, %s12
      // Predicated region
      $region121: #{decoder_forward.3} parent=5 // pred_check
        %p600 = pneg %p599
      $region122: #{decoder_forward.3} parent=5 // pred_check_branch
        %602 = sbr.rel (%p600) target = $region124
      $region123: #{decoder_forward.3} parent=5 // pred_region
        %s603 = ssub.s32 %s12, 2
        // Predicated region
        $region125: #{decoder_forward.3} parent=123 // pred_check
          %p604 = pneg %p177
        $region126: #{decoder_forward.3} parent=123 // pred_check_branch
          %606 = sbr.rel (%p604) target = $region128
        $region127: #{decoder_forward.3} parent=123 // pred_region
          %s607 = sand.u32 %s162, 1
          %s608 = sand.u32 %s162, 1
          %s609 = smul.addr %s608, 16
          %s610 = scalar_lea.vmem [#allocation3], %s609
        $region128: #{decoder_forward.3} parent=123 // pred_fallthru
          _
      $region124: #{decoder_forward.3} parent=5 // pred_fallthru
        _
    $region6: #{decoder_forward.3} parent=1 // loop_footer
      %s16 = sadd.s32 1, %s12
    $region7: #{decoder_forward.3} parent=1 // loop_footer_branch
      %11 = sbr.rel target = $region3
    $region8: #{decoder_forward.3} parent=1 // loop_exit
      _

// kernel: decoder_forward.5
$region0: #{decoder_forward.5}
  #allocation0 [shape = 'u32[]', space=smem, size = 0x4, offset = 0x4, fixed_abs, tag = 'smem constant byte address 0x4 - core index']
  #allocation1 [shape = 'u32[144,128]{1,0:T(1,128)}', space=vmem, size = 0x12000, scoped, tag = 'internal scratch']
  %s0 = inlined_call_operand.vmem [shape: bf16[16,2048], index: 0, kind: input, shape index: {}]
  %s1 = inlined_call_operand.vmem [shape: bf16[8,2048], index: 1, kind: input, shape index: {}]
  %s2 = inlined_call_operand.vmem [shape: bf16[64,16], index: 2, kind: input, shape index: {}]
  %s3 = inlined_call_operand.vmem [shape: bf16[64,8], index: 3, kind: input, shape index: {}]
  %s4 = inlined_call_operand.vmem [shape: f32[64,1], index: 4, kind: input, shape index: {}]
  %s5 = inlined_call_operand.vmem [shape: f32[64,1], index: 5, kind: input, shape index: {}]
  %s6 = inlined_call_operand.vmem [shape: f32[64,2048], index: 6, kind: output, shape index: {}]
  %s7 = sld [smem:[#allocation0]]
  $region99: #{decoder_forward.5} parent=0
    _
  %s9 = ssub.s32 1, %s7
  %s10 = scalar_select 0, %s9, %s7
  $region1: #{decoder_forward.5} parent=0
    #allocation2 [shape = 'u8[65536]{0}', space=vmem, size = 0x10000, scoped, tag = 'input window, operand 0']
    #allocation3 [shape = 'u8[524288]{0}', space=vmem, size = 0x80000, scoped, tag = 'output window, operand 0']
    loop: start=0, step=1, limit=4
    $region2: #{decoder_forward.5} parent=1 // loop_pre_header
      _
    $region3: #{decoder_forward.5} parent=1 // loop_header
      %s12 = sphi 0, %s16
      %p13 = scmp.ge.s32.totalorder %s12, 4
      %s22 = sphi 0, %s24
      %s25 = sphi 0, %s22
      %s26 = sphi 0, %s25
      %s42 = sphi 0, %s26
      %s48 = sphi 0, %s50
      %s51 = sphi 0, %s48
      %s52 = sphi 0, %s51
      %s68 = sphi 0, %s52
      %s72 = sphi 0, %s72
      %s74 = sphi 0, %s72
      %s75 = sphi 0, %s74
      %s89 = sphi 0, %s75
      %s93 = sphi 0, %s93
      %s95 = sphi 0, %s93
      %s96 = sphi 0, %s95
      %s110 = sphi 0, %s96
      %s114 = sphi 0, %s114
      %s116 = sphi 0, %s114
      %s117 = sphi 0, %s116
      %s131 = sphi 0, %s117
      %s135 = sphi 0, %s135
      %s137 = sphi 0, %s135
      %s138 = sphi 0, %s137
      %s152 = sphi 0, %s138
      %s158 = sphi 0, %s160
      %s161 = sphi 0, %s158
      %s162 = sphi 0, %s161
      %s178 = sphi 0, %s162
    $region4: #{decoder_forward.5} parent=1 // loop_header_branch
      %15 = sbr.rel (%p13) target = $region8
    $region5: #{decoder_forward.5} parent=1 // loop_body
      %s17 = ssub.s32 %s12, 1
      %s18 = ssub.s32 %s12, 2
      %s19 = sadd.s32 %s12, 1
      %s20 = ssub.s32 %s12, %s19
      %p21 = scmp.eq.s32.totalorder %s20, 0
      %s23 = sadd.s32 %s22, 1
      %s24 = scalar_select %p21, %s22, %s23
      %p27 = pneg %p21
      %p28 = scmp.eq.s32.totalorder %s12, 1
      %p29 = por %p27, %p28
      %p30 = scmp.ne.s32.totalorder %s22, %s25
      %p31 = scmp.eq.s32.totalorder %s12, 0
      %p32 = por %p30, %p31
      %p33 = scmp.ne.s32.totalorder %s22, %s25
      %p34 = scmp.eq.s32.totalorder %s17, 1
      %p35 = por %p33, %p34
      %p36 = scmp.ne.s32.totalorder %s25, %s26
      %p37 = scmp.eq.s32.totalorder %s17, 0
      %p38 = por %p36, %p37
      %p39 = scmp.ne.s32.totalorder %s25, %s26
      %p40 = scmp.eq.s32.totalorder %s18, 1
      %p41 = por %p39, %p40
      %p43 = scmp.ne.s32.totalorder %s26, %s42
      %p44 = scmp.eq.s32.totalorder %s18, 0
      %p45 = por %p43, %p44
      %s46 = ssub.s32 %s12, %s19
      %p47 = scmp.eq.s32.totalorder %s46, 0
      %s49 = sadd.s32 %s48, 1
      %s50 = scalar_select %p47, %s48, %s49
      %p53 = pneg %p47
      %p54 = scmp.eq.s32.totalorder %s12, 1
      %p55 = por %p53, %p54
      %p56 = scmp.ne.s32.totalorder %s48, %s51
      %p57 = scmp.eq.s32.totalorder %s12, 0
      %p58 = por %p56, %p57
      %p59 = scmp.ne.s32.totalorder %s48, %s51
      %p60 = scmp.eq.s32.totalorder %s17, 1
      %p61 = por %p59, %p60
      %p62 = scmp.ne.s32.totalorder %s51, %s52
      %p63 = scmp.eq.s32.totalorder %s17, 0
      %p64 = por %p62, %p63
      %p65 = scmp.ne.s32.totalorder %s51, %s52
      %p66 = scmp.eq.s32.totalorder %s18, 1
      %p67 = por %p65, %p66
      %p69 = scmp.ne.s32.totalorder %s52, %s68
      %p70 = scmp.eq.s32.totalorder %s18, 0
      %p71 = por %p69, %p70
      %s73 = sadd.s32 %s72, 1
      %p76 = scmp.eq.s32.totalorder %s12, 1
      %p77 = scmp.ne.s32.totalorder %s72, %s74
      %p78 = scmp.eq.s32.totalorder %s12, 0
      %p79 = por %p77, %p78
      %p80 = scmp.ne.s32.totalorder %s72, %s74
      %p81 = scmp.eq.s32.totalorder %s17, 1
      %p82 = por %p80, %p81
      %p83 = scmp.ne.s32.totalorder %s74, %s75
      %p84 = scmp.eq.s32.totalorder %s17, 0
      %p85 = por %p83, %p84
      %p86 = scmp.ne.s32.totalorder %s74, %s75
      %p87 = scmp.eq.s32.totalorder %s18, 1
      %p88 = por %p86, %p87
      %p90 = scmp.ne.s32.totalorder %s75, %s89
      %p91 = scmp.eq.s32.totalorder %s18, 0
      %p92 = por %p90, %p91
      %s94 = sadd.s32 %s93, 1
      %p97 = scmp.eq.s32.totalorder %s12, 1
      %p98 = scmp.ne.s32.totalorder %s93, %s95
      %p99 = scmp.eq.s32.totalorder %s12, 0
      %p100 = por %p98, %p99
      %p101 = scmp.ne.s32.totalorder %s93, %s95
      %p102 = scmp.eq.s32.totalorder %s17, 1
      %p103 = por %p101, %p102
      %p104 = scmp.ne.s32.totalorder %s95, %s96
      %p105 = scmp.eq.s32.totalorder %s17, 0
      %p106 = por %p104, %p105
      %p107 = scmp.ne.s32.totalorder %s95, %s96
      %p108 = scmp.eq.s32.totalorder %s18, 1
      %p109 = por %p107, %p108
      %p111 = scmp.ne.s32.totalorder %s96, %s110
      %p112 = scmp.eq.s32.totalorder %s18, 0
      %p113 = por %p111, %p112
      %s115 = sadd.s32 %s114, 1
      %p118 = scmp.eq.s32.totalorder %s12, 1
      %p119 = scmp.ne.s32.totalorder %s114, %s116
      %p120 = scmp.eq.s32.totalorder %s12, 0
      %p121 = por %p119, %p120
      %p122 = scmp.ne.s32.totalorder %s114, %s116
      %p123 = scmp.eq.s32.totalorder %s17, 1
      %p124 = por %p122, %p123
      %p125 = scmp.ne.s32.totalorder %s116, %s117
      %p126 = scmp.eq.s32.totalorder %s17, 0
      %p127 = por %p125, %p126
      %p128 = scmp.ne.s32.totalorder %s116, %s117
      %p129 = scmp.eq.s32.totalorder %s18, 1
      %p130 = por %p128, %p129
      %p132 = scmp.ne.s32.totalorder %s117, %s131
      %p133 = scmp.eq.s32.totalorder %s18, 0
      %p134 = por %p132, %p133
      %s136 = sadd.s32 %s135, 1
      %p139 = scmp.eq.s32.totalorder %s12, 1
      %p140 = scmp.ne.s32.totalorder %s135, %s137
      %p141 = scmp.eq.s32.totalorder %s12, 0
      %p142 = por %p140, %p141
      %p143 = scmp.ne.s32.totalorder %s135, %s137
      %p144 = scmp.eq.s32.totalorder %s17, 1
      %p145 = por %p143, %p144
      %p146 = scmp.ne.s32.totalorder %s137, %s138
      %p147 = scmp.eq.s32.totalorder %s17, 0
      %p148 = por %p146, %p147
      %p149 = scmp.ne.s32.totalorder %s137, %s138
      %p150 = scmp.eq.s32.totalorder %s18, 1
      %p151 = por %p149, %p150
      %p153 = scmp.ne.s32.totalorder %s138, %s152
      %p154 = scmp.eq.s32.totalorder %s18, 0
      %p155 = por %p153, %p154
      %s156 = ssub.s32 %s12, %s19
      %p157 = scmp.eq.s32.totalorder %s156, 0
      %s159 = sadd.s32 %s158, 1
      %s160 = scalar_select %p157, %s158, %s159
      %p163 = pneg %p157
      %p164 = scmp.eq.s32.totalorder %s12, 1
      %p165 = por %p163, %p164
      %p166 = scmp.ne.s32.totalorder %s158, %s161
      %p167 = scmp.eq.s32.totalorder %s12, 0
      %p168 = por %p166, %p167
      %p169 = scmp.ne.s32.totalorder %s158, %s161
      %p170 = scmp.eq.s32.totalorder %s17, 1
      %p171 = por %p169, %p170
      %p172 = scmp.ne.s32.totalorder %s161, %s162
      %p173 = scmp.eq.s32.totalorder %s17, 0
      %p174 = por %p172, %p173
      %p175 = scmp.ne.s32.totalorder %s161, %s162
      %p176 = scmp.eq.s32.totalorder %s18, 1
      %p177 = por %p175, %p176
      %p179 = scmp.ne.s32.totalorder %s162, %s178
      %p180 = scmp.eq.s32.totalorder %s18, 0
      %p181 = por %p179, %p180
      %p182 = scmp.le.s32.totalorder 1, %s12
      %p183 = scmp.lt.s32.totalorder %s12, 3
      %p184 = pnand %p182, %p183
      %p185 = pneg %p184
      // Predicated region
      $region9: #{decoder_forward.5} parent=5 // pred_check
        _
      $region10: #{decoder_forward.5} parent=5 // pred_check_branch
        %187 = sbr.rel (%p184) target = $region12
      $region11: #{decoder_forward.5} parent=5 // pred_region
        %s188 = ssub.s32 %s12, 1
        // Predicated region
        $region13: #{decoder_forward.5} parent=11 // pred_check
          %p189 = pneg %p85
        $region14: #{decoder_forward.5} parent=11 // pred_check_branch
          %191 = sbr.rel (%p189) target = $region16
        $region15: #{decoder_forward.5} parent=11 // pred_region
          _
        $region16: #{decoder_forward.5} parent=11 // pred_fallthru
          _
        // Predicated region
        $region17: #{decoder_forward.5} parent=11 // pred_check
          %p192 = pneg %p106
        $region18: #{decoder_forward.5} parent=11 // pred_check_branch
          %194 = sbr.rel (%p192) target = $region20
        $region19: #{decoder_forward.5} parent=11 // pred_region
          _
        $region20: #{decoder_forward.5} parent=11 // pred_fallthru
          _
        // Predicated region
        $region21: #{decoder_forward.5} parent=11 // pred_check
          %p195 = pneg %p127
        $region22: #{decoder_forward.5} parent=11 // pred_check_branch
          %197 = sbr.rel (%p195) target = $region24
        $region23: #{decoder_forward.5} parent=11 // pred_region
          _
        $region24: #{decoder_forward.5} parent=11 // pred_fallthru
          _
        // Predicated region
        $region25: #{decoder_forward.5} parent=11 // pred_check
          %p198 = pneg %p148
        $region26: #{decoder_forward.5} parent=11 // pred_check_branch
          %200 = sbr.rel (%p198) target = $region28
        $region27: #{decoder_forward.5} parent=11 // pred_region
          _
        $region28: #{decoder_forward.5} parent=11 // pred_fallthru
          _
      $region12: #{decoder_forward.5} parent=5 // pred_fallthru
        _
      %p201 = scmp.lt.s32.totalorder %s12, 2
      // Predicated region
      $region29: #{decoder_forward.5} parent=5 // pred_check
        %p202 = pneg %p201
      $region30: #{decoder_forward.5} parent=5 // pred_check_branch
        %204 = sbr.rel (%p202) target = $region32
      $region31: #{decoder_forward.5} parent=5 // pred_region
        // Predicated region
        $region33: #{decoder_forward.5} parent=31 // pred_check
          %p205 = pneg %p32
        $region34: #{decoder_forward.5} parent=31 // pred_check_branch
          %207 = sbr.rel (%p205) target = $region36
        $region35: #{decoder_forward.5} parent=31 // pred_region
          %s208 = sand.u32 %s22, 1
          %s209 = sand.u32 %s22, 1
          %s210 = smul.addr %s209, 64
          %s211 = scalar_lea.vmem [#allocation2], %s210
          %s212 = smul.u32 8, %s12
          %s213 = smul.addr %s212, 4
          %s214 = scalar_lea.vmem %s0, %s213
          // Predicated region
          $region37: #{decoder_forward.5} parent=35 // pred_check
            _
          $region38: #{decoder_forward.5} parent=35 // pred_check_branch
            %216 = sbr.rel (0) target = $region40
          $region39: #{decoder_forward.5} parent=35 // pred_region
            // Predicated region
            $region41: #{decoder_forward.5} parent=39 // pred_check
              _
            $region42: #{decoder_forward.5} parent=39 // pred_check_branch
              %218 = sbr.rel (0) target = $region44
            $region43: #{decoder_forward.5} parent=39 // pred_region
              loop: start=0, step=1, limit=1
              $region45: #{decoder_forward.5} parent=43 // loop_pre_header
                _
              $region46: #{decoder_forward.5} parent=43 // loop_header
                %s220 = sphi 0, %s224
                %p221 = scmp.ge.s32.totalorder %s220, 1
                %s225 = sphi %s214, %s214
                %s226 = sphi %s211, %s211
              $region47: #{decoder_forward.5} parent=43 // loop_header_branch
                %223 = sbr.rel (%p221) target = $region51
              $region48: #{decoder_forward.5} parent=43 // loop_body
                %v227 = vld [vmem:[%s225] sm:$0xff]
                %228 = vst [vmem:[%s226] sm:$0xff] %v227
                %v229 = vld [vmem:[%s225 + $0x8] sm:$0xff]
                %230 = vst [vmem:[%s226 + $0x8] sm:$0xff] %v229
                %v231 = vld [vmem:[%s225 + $0x10] sm:$0xff]
                %232 = vst [vmem:[%s226 + $0x10] sm:$0xff] %v231
                %v233 = vld [vmem:[%s225 + $0x18] sm:$0xff]
                %234 = vst [vmem:[%s226 + $0x18] sm:$0xff] %v233
                %v235 = vld [vmem:[%s225 + $0x40] sm:$0xff]
                %236 = vst [vmem:[%s226 + $0x20] sm:$0xff] %v235
                %v237 = vld [vmem:[%s225 + $0x48] sm:$0xff]
                %238 = vst [vmem:[%s226 + $0x28] sm:$0xff] %v237
                %v239 = vld [vmem:[%s225 + $0x50] sm:$0xff]
                %240 = vst [vmem:[%s226 + $0x30] sm:$0xff] %v239
                %v241 = vld [vmem:[%s225 + $0x58] sm:$0xff]
                %242 = vst [vmem:[%s226 + $0x38] sm:$0xff] %v241
              $region49: #{decoder_forward.5} parent=43 // loop_footer
                %s224 = sadd.s32 1, %s220
              $region50: #{decoder_forward.5} parent=43 // loop_footer_branch
                %219 = sbr.rel target = $region46
              $region51: #{decoder_forward.5} parent=43 // loop_exit
                _
            $region44: #{decoder_forward.5} parent=39 // pred_fallthru
              _
            // Predicated region
            $region52: #{decoder_forward.5} parent=39 // pred_check
              _
            $region53: #{decoder_forward.5} parent=39 // pred_check_branch
              %244 = sbr.rel target = $region55
            $region54: #{decoder_forward.5} parent=39 // pred_region
              _
            $region55: #{decoder_forward.5} parent=39 // pred_fallthru
              _
          $region40: #{decoder_forward.5} parent=35 // pred_fallthru
            _
          %245 = vnop
        $region36: #{decoder_forward.5} parent=31 // pred_fallthru
          _
        // Predicated region
        $region56: #{decoder_forward.5} parent=31 // pred_check
          %p246 = pneg %p58
        $region57: #{decoder_forward.5} parent=31 // pred_check_branch
          %248 = sbr.rel (%p246) target = $region59
        $region58: #{decoder_forward.5} parent=31 // pred_region
          %s249 = smul.u32 8, %s12
          %p250 = scmp.lt.s32.totalorder %s249, 15
          %s251 = scalar_select %p250, %s249, 15
          %s252 = smul.addr %s251, 4
          %s253 = scalar_lea.vmem %s1, %s252
          %s254 = smul.u32 8, %s12
        $region59: #{decoder_forward.5} parent=31 // pred_fallthru
          _
      $region32: #{decoder_forward.5} parent=5 // pred_fallthru
        _
      %p255 = scmp.le.s32.totalorder 1, %s12
      %p256 = scmp.lt.s32.totalorder %s12, 3
      %p257 = pnand %p255, %p256
      %p258 = pneg %p257
      // Predicated region
      $region60: #{decoder_forward.5} parent=5 // pred_check
        _
      $region61: #{decoder_forward.5} parent=5 // pred_check_branch
        %260 = sbr.rel (%p257) target = $region63
      $region62: #{decoder_forward.5} parent=5 // pred_region
        %s261 = ssub.s32 %s12, 1
        %s262 = sand.u32 %s25, 1
        %s263 = sand.u32 %s25, 1
        %s264 = smul.addr %s263, 64
        %s265 = scalar_lea.vmem [#allocation2], %s264
        // Predicated region
        $region64: #{decoder_forward.5} parent=62 // pred_check
          %p266 = pneg %p38
        $region65: #{decoder_forward.5} parent=62 // pred_check_branch
          %268 = sbr.rel (%p266) target = $region67
        $region66: #{decoder_forward.5} parent=62 // pred_region
          _
        $region67: #{decoder_forward.5} parent=62 // pred_fallthru
          _
        %s269 = sand.u32 %s25, 1
        %s270 = sand.u32 %s25, 1
        %s271 = smul.addr %s270, 64
        %s272 = scalar_lea.vmem [#allocation2], %s271
        %p273 = pneg %p38
        %p274 = pneg %p35
        %s275 = smul.u32 8, %s17
        %p276 = scmp.lt.s32.totalorder %s275, 15
        %s277 = scalar_select %p276, %s275, 15
        %s278 = smul.addr %s277, 4
        %s279 = scalar_lea.vmem %s1, %s278
        %p280 = pneg %p64
        %p281 = pneg %p61
        %p282 = pneg %p85
        %p283 = pneg %p82
        %p284 = pneg %p106
        %p285 = pneg %p103
        %p286 = pneg %p127
        %p287 = pneg %p124
        %p288 = pneg %p148
        %p289 = pneg %p145
        %p290 = pneg %p174
        %p291 = pneg %p171
        %s292 = sand.u32 %s161, 1
        %s293 = sand.u32 %s161, 1
        %s294 = smul.addr %s293, 512
        %s295 = scalar_lea.vmem [#allocation3], %s294
        %s296 = smul.u32 8, %s17
        %s297 = smul.u32 8, %s17
        %p298 = scmp.lt.s32.totalorder %s297, 15
        %s299 = scalar_select %p298, %s297, 15
        %s300 = smul.addr %s299, 4
        %s301 = scalar_lea.vmem %s1, %s300
        %s302 = smul.u32 8, %s17
        %s303 = smul.u32 8, %s17
        %v305 = vld [vmem:[%s2] sm:$0xf]
        %v306 = vld [vmem:[%s2 + $0x4] sm:$0xf]
        %v307 = vld [vmem:[%s2 + $0x8] sm:$0xf]
        %v308 = vld [vmem:[%s2 + $0xc] sm:$0xf]
        %v309 = vld [vmem:[%s2 + $0x10] sm:$0xf]
        %v310 = vld [vmem:[%s2 + $0x14] sm:$0xf]
        %v311 = vld [vmem:[%s2 + $0x18] sm:$0xf]
        %v312 = vld [vmem:[%s2 + $0x1c] sm:$0xf]
        %v313 = vld [vmem:[%s265] sm:$0xff]
        %v314 = vld [vmem:[%s265 + $0x8] sm:$0xff]
        %v315 = vld [vmem:[%s265 + $0x10] sm:$0xff]
        %v316 = vld [vmem:[%s265 + $0x18] sm:$0xff]
        %v317 = vld [vmem:[%s265 + $0x20] sm:$0xff]
        %v318 = vld [vmem:[%s265 + $0x28] sm:$0xff]
        %v319 = vld [vmem:[%s265 + $0x30] sm:$0xff]
        %v320 = vld [vmem:[%s265 + $0x38] sm:$0xff]
        %v321 = vld [vmem:[%s3] sm:$0xf]
        %v322 = vld [vmem:[%s3 + $0x4] sm:$0xf]
        %v323 = vld [vmem:[%s3 + $0x8] sm:$0xf]
        %v324 = vld [vmem:[%s3 + $0xc] sm:$0xf]
        %v325 = vld [vmem:[%s3 + $0x10] sm:$0xf]
        %v326 = vld [vmem:[%s3 + $0x14] sm:$0xf]
        %v327 = vld [vmem:[%s3 + $0x18] sm:$0xf]
        %v328 = vld [vmem:[%s3 + $0x1c] sm:$0xf]
        %v329 = vld [vmem:[%s301] sm:$0xff]
        %v330 = vld [vmem:[%s301 + $0x8] sm:$0xff]
        %v331 = vld [vmem:[%s301 + $0x10] sm:$0xff]
        %v332 = vld [vmem:[%s301 + $0x18] sm:$0xff]
        %v341 = vunpack.c.l.b16 %v321
        %v342 = vunpack.c.l.b16 %v322
        %v343 = vunpack.c.l.b16 %v323
        %v344 = vunpack.c.l.b16 %v324
        %v345 = vunpack.c.l.b16 %v325
        %v346 = vunpack.c.l.b16 %v326
        %v347 = vunpack.c.l.b16 %v327
        %v348 = vunpack.c.l.b16 %v328
        %v349 = vpack.c.b16 %v342, %v341
        %v350 = vpack.c.b16 %v344, %v343
        %v351 = vpack.c.b16 %v346, %v345
        %v352 = vpack.c.b16 %v348, %v347
        %v357 = vunpack.c.l.b16 %v329
        %v358 = vunpack.c.h.b16 %v329
        %v359 = vunpack.c.l.b16 %v330
        %v360 = vunpack.c.h.b16 %v330
        %v361 = vunpack.c.l.b16 %v331
        %v362 = vunpack.c.h.b16 %v331
        %v363 = vunpack.c.l.b16 %v332
        %v364 = vunpack.c.h.b16 %v332
        %v365 = vpack.c.b16 %v357, %v357
        %v366 = vpack.c.b16 %v358, %v358
        %v367 = vpack.c.b16 %v359, %v359
        %v368 = vpack.c.b16 %v360, %v360
        %v369 = vpack.c.b16 %v361, %v361
        %v370 = vpack.c.b16 %v362, %v362
        %v371 = vpack.c.b16 %v363, %v363
        %v372 = vpack.c.b16 %v364, %v364
        %vm373 = vcmask 64512
        %v375 = vsel %vm373, %v349, 0
        %v378 = vsel %vm373, %v350, 0
        %v381 = vsel %vm373, %v351, 0
        %v384 = vsel %vm373, %v352, 0
        %vm386 = vcmask 1043456
        %v388 = vsel %vm386, %v365, 0
        %v391 = vsel %vm386, %v366, 0
        %v394 = vsel %vm386, %v367, 0
        %v397 = vsel %vm386, %v368, 0
        %v400 = vsel %vm386, %v369, 0
        %v403 = vsel %vm386, %v370, 0
        %v406 = vsel %vm386, %v371, 0
        %v409 = vsel %vm386, %v372, 0
        %411 = vmatprep.subr.bf16.mxu0 %v391
        %412 = vmatpush1.bf16.msra.mxu0 %v388
        %413 = vmatprep.subr.bf16.mxu0 0
        %414 = vmatpush1.bf16.msra.mxu0 0
        %415 = vmatprep.subr.bf16.mxu0 0
        %416 = vmatpush1.bf16.msra.mxu0 0
        %417 = vmatprep.subr.bf16.mxu0 0
        %418 = vmatpush1.bf16.msra.mxu0 0
        %419 = vmatprep.subr.bf16.mxu0 0
        %420 = vmatpush1.bf16.msra.mxu0 0
        %421 = vmatprep.subr.bf16.mxu0 0
        %422 = vmatpush1.bf16.msra.mxu0 0
        %423 = vmatprep.subr.bf16.mxu0 0
        %424 = vmatpush1.bf16.msra.mxu0 0
        %425 = vmatprep.subr.bf16.mxu0 0
        %426 = vmatpush1.bf16.msra.mxu0 0
        %427 = vmatprep.subr.bf16.mxu0 0
        %428 = vmatpush1.bf16.msra.mxu0 0
        %429 = vmatprep.subr.bf16.mxu0 0
        %430 = vmatpush1.bf16.msra.mxu0 0
        %431 = vmatprep.subr.bf16.mxu0 0
        %432 = vmatpush1.bf16.msra.mxu0 0
        %433 = vmatprep.subr.bf16.mxu0 0
        %434 = vmatpush1.bf16.msra.mxu0 0
        %435 = vmatprep.subr.bf16.mxu0 0
        %436 = vmatpush1.bf16.msra.mxu0 0
        %437 = vmatprep.subr.bf16.mxu0 0
        %438 = vmatpush1.bf16.msra.mxu0 0
        %439 = vmatprep.subr.bf16.mxu0 0
        %440 = vmatpush1.bf16.msra.mxu0 0
        %441 = vmatprep.subr.bf16.mxu0 0
        %442 = vmatpush1.bf16.msra.mxu0 0
        %443 = vmatprep.mubr.bf16.mxu0 0
        %444 = vmatmul.mubr.bf16.gmra.mrb[0].mxu0 %v375
        %v445 = vpop.f32.mrb[0].mxu0
        %v446 = vadd.f32 0.0, %v445
        %v447 = vpop.f32.mrb[0].mxu0
        %v448 = vadd.f32 0.0, %v447
        %v449 = vpop.f32.mrb[0].mxu0
        %v450 = vadd.f32 0.0, %v449
        %v451 = vpop.f32.mrb[0].mxu0
        %v452 = vadd.f32 0.0, %v451
        %453 = vmatprep.mubr.bf16.mxu0 0
        %454 = vmatmul.mubr.bf16.gmra.mrb[0].mxu0 %v378
        %v455 = vpop.f32.mrb[0].mxu0
        %v456 = vadd.f32 0.0, %v455
        %v457 = vpop.f32.mrb[0].mxu0
        %v458 = vadd.f32 0.0, %v457
        %v459 = vpop.f32.mrb[0].mxu0
        %v460 = vadd.f32 0.0, %v459
        %v461 = vpop.f32.mrb[0].mxu0
        %v462 = vadd.f32 0.0, %v461
        %463 = vmatprep.mubr.bf16.mxu0 0
        %464 = vmatmul.mubr.bf16.gmra.mrb[0].mxu0 %v381
        %v465 = vpop.f32.mrb[0].mxu0
        %v466 = vadd.f32 0.0, %v465
        %v467 = vpop.f32.mrb[0].mxu0
        %v468 = vadd.f32 0.0, %v467
        %v469 = vpop.f32.mrb[0].mxu0
        %v470 = vadd.f32 0.0, %v469
        %v471 = vpop.f32.mrb[0].mxu0
        %v472 = vadd.f32 0.0, %v471
        %473 = vmatprep.mubr.bf16.mxu0 0
        %474 = vmatmul.mubr.bf16.gmra.mrb[0].mxu0 %v384
        %v475 = vpop.f32.mrb[0].mxu0
        %v476 = vadd.f32 0.0, %v475
        %v477 = vpop.f32.mrb[0].mxu0
        %v478 = vadd.f32 0.0, %v477
        %v479 = vpop.f32.mrb[0].mxu0
        %v480 = vadd.f32 0.0, %v479
        %v481 = vpop.f32.mrb[0].mxu0
        %v482 = vadd.f32 0.0, %v481
        %483 = vdwg.mxu0
        %484 = vmatprep.subr.bf16.mxu0 %v397
        %485 = vmatpush1.bf16.msra.mxu0 %v394
        %486 = vmatprep.subr.bf16.mxu0 0
        %487 = vmatpush1.bf16.msra.mxu0 0
        %488 = vmatprep.subr.bf16.mxu0 0
        %489 = vmatpush1.bf16.msra.mxu0 0
        %490 = vmatprep.subr.bf16.mxu0 0
        %491 = vmatpush1.bf16.msra.mxu0 0
        %492 = vmatprep.subr.bf16.mxu0 0
        %493 = vmatpush1.bf16.msra.mxu0 0
        %494 = vmatprep.subr.bf16.mxu0 0
        %495 = vmatpush1.bf16.msra.mxu0 0
        %496 = vmatprep.subr.bf16.mxu0 0
        %497 = vmatpush1.bf16.msra.mxu0 0
        %498 = vmatprep.subr.bf16.mxu0 0
        %499 = vmatpush1.bf16.msra.mxu0 0
        %500 = vmatprep.subr.bf16.mxu0 0
        %501 = vmatpush1.bf16.msra.mxu0 0
        %502 = vmatprep.subr.bf16.mxu0 0
        %503 = vmatpush1.bf16.msra.mxu0 0
        %504 = vmatprep.subr.bf16.mxu0 0
        %505 = vmatpush1.bf16.msra.mxu0 0
        %506 = vmatprep.subr.bf16.mxu0 0
        %507 = vmatpush1.bf16.msra.mxu0 0
        %508 = vmatprep.subr.bf16.mxu0 0
        %509 = vmatpush1.bf16.msra.mxu0 0
        %510 = vmatprep.subr.bf16.mxu0 0
        %511 = vmatpush1.bf16.msra.mxu0 0
        %512 = vmatprep.subr.bf16.mxu0 0
        %513 = vmatpush1.bf16.msra.mxu0 0
        %514 = vmatprep.subr.bf16.mxu0 0
        %515 = vmatpush1.bf16.msra.mxu0 0
        %516 = vmatprep.mubr.bf16.mxu0 0
        %517 = vmatmul.mubr.bf16.gmra.mrb[0].mxu0 %v375
        %v518 = vpop.f32.mrb[0].mxu0
        %v519 = vadd.f32 0.0, %v518
        %v520 = vpop.f32.mrb[0].mxu0
        %v521 = vadd.f32 0.0, %v520
        %v522 = vpop.f32.mrb[0].mxu0
        %v523 = vadd.f32 0.0, %v522
        %v524 = vpop.f32.mrb[0].mxu0
        %v525 = vadd.f32 0.0, %v524
        %526 = vmatprep.mubr.bf16.mxu0 0
        %527 = vmatmul.mubr.bf16.gmra.mrb[0].mxu0 %v378
        %v528 = vpop.f32.mrb[0].mxu0
        %v529 = vadd.f32 0.0, %v528
        %v530 = vpop.f32.mrb[0].mxu0
        %v531 = vadd.f32 0.0, %v530
        %v532 = vpop.f32.mrb[0].mxu0
        %v533 = vadd.f32 0.0, %v532
        %v534 = vpop.f32.mrb[0].mxu0
        %v535 = vadd.f32 0.0, %v534
        %536 = vmatprep.mubr.bf16.mxu0 0
        %537 = vmatmul.mubr.bf16.gmra.mrb[0].mxu0 %v381
        %v538 = vpop.f32.mrb[0].mxu0
        %v539 = vadd.f32 0.0, %v538
        %v540 = vpop.f32.mrb[0].mxu0
        %v541 = vadd.f32 0.0, %v540
        %v542 = vpop.f32.mrb[0].mxu0
        %v543 = vadd.f32 0.0, %v542
        %v544 = vpop.f32.mrb[0].mxu0
        %v545 = vadd.f32 0.0, %v544
        %546 = vmatprep.mubr.bf16.mxu0 0
        %547 = vmatmul.mubr.bf16.gmra.mrb[0].mxu0 %v384
        %v548 = vpop.f32.mrb[0].mxu0
        %v549 = vadd.f32 0.0, %v548
        %v550 = vpop.f32.mrb[0].mxu0
        %v551 = vadd.f32 0.0, %v550
        %v552 = vpop.f32.mrb[0].mxu0
        %v553 = vadd.f32 0.0, %v552
        %v554 = vpop.f32.mrb[0].mxu0
        %v555 = vadd.f32 0.0, %v554
        %556 = vdwg.mxu0
        %557 = vmatprep.subr.bf16.mxu0 %v403
        %558 = vmatpush1.bf16.msra.mxu0 %v400
        %559 = vmatprep.subr.bf16.mxu0 0
        %560 = vmatpush1.bf16.msra.mxu0 0
        %561 = vmatprep.subr.bf16.mxu0 0
        %562 = vmatpush1.bf16.msra.mxu0 0
        %563 = vmatprep.subr.bf16.mxu0 0
        %564 = vmatpush1.bf16.msra.mxu0 0
        %565 = vmatprep.subr.bf16.mxu0 0
        %566 = vmatpush1.bf16.msra.mxu0 0
        %567 = vmatprep.subr.bf16.mxu0 0
        %568 = vmatpush1.bf16.msra.mxu0 0
        %569 = vmatprep.subr.bf16.mxu0 0
        %570 = vmatpush1.bf16.msra.mxu0 0
        %571 = vmatprep.subr.bf16.mxu0 0
        %572 = vmatpush1.bf16.msra.mxu0 0
        %573 = vmatprep.subr.bf16.mxu0 0
        %574 = vmatpush1.bf16.msra.mxu0 0
        %575 = vmatprep.subr.bf16.mxu0 0
        %576 = vmatpush1.bf16.msra.mxu0 0
        %577 = vmatprep.subr.bf16.mxu0 0
        %578 = vmatpush1.bf16.msra.mxu0 0
        %579 = vmatprep.subr.bf16.mxu0 0
        %580 = vmatpush1.bf16.msra.mxu0 0
        %581 = vmatprep.subr.bf16.mxu0 0
        %582 = vmatpush1.bf16.msra.mxu0 0
        %583 = vmatprep.subr.bf16.mxu0 0
        %584 = vmatpush1.bf16.msra.mxu0 0
        %585 = vmatprep.subr.bf16.mxu0 0
        %586 = vmatpush1.bf16.msra.mxu0 0
        %587 = vmatprep.subr.bf16.mxu0 0
        %588 = vmatpush1.bf16.msra.mxu0 0
        %589 = vmatprep.mubr.bf16.mxu0 0
        %590 = vmatmul.mubr.bf16.gmra.mrb[0].mxu0 %v375
        %v591 = vpop.f32.mrb[0].mxu0
        %v592 = vadd.f32 0.0, %v591
        %v593 = vpop.f32.mrb[0].mxu0
        %v594 = vadd.f32 0.0, %v593
        %v595 = vpop.f32.mrb[0].mxu0
        %v596 = vadd.f32 0.0, %v595
        %v597 = vpop.f32.mrb[0].mxu0
        %v598 = vadd.f32 0.0, %v597
        %599 = vmatprep.mubr.bf16.mxu0 0
        %600 = vmatmul.mubr.bf16.gmra.mrb[0].mxu0 %v378
        %v601 = vpop.f32.mrb[0].mxu0
        %v602 = vadd.f32 0.0, %v601
        %v603 = vpop.f32.mrb[0].mxu0
        %v604 = vadd.f32 0.0, %v603
        %v605 = vpop.f32.mrb[0].mxu0
        %v606 = vadd.f32 0.0, %v605
        %v607 = vpop.f32.mrb[0].mxu0
        %v608 = vadd.f32 0.0, %v607
        %609 = vmatprep.mubr.bf16.mxu0 0
        %610 = vmatmul.mubr.bf16.gmra.mrb[0].mxu0 %v381
        %v611 = vpop.f32.mrb[0].mxu0
        %v612 = vadd.f32 0.0, %v611
        %v613 = vpop.f32.mrb[0].mxu0
        %v614 = vadd.f32 0.0, %v613
        %v615 = vpop.f32.mrb[0].mxu0
        %v616 = vadd.f32 0.0, %v615
        %v617 = vpop.f32.mrb[0].mxu0
        %v618 = vadd.f32 0.0, %v617
        %619 = vmatprep.mubr.bf16.mxu0 0
        %620 = vmatmul.mubr.bf16.gmra.mrb[0].mxu0 %v384
        %v621 = vpop.f32.mrb[0].mxu0
        %v622 = vadd.f32 0.0, %v621
        %v623 = vpop.f32.mrb[0].mxu0
        %v624 = vadd.f32 0.0, %v623
        %v625 = vpop.f32.mrb[0].mxu0
        %v626 = vadd.f32 0.0, %v625
        %v627 = vpop.f32.mrb[0].mxu0
        %v628 = vadd.f32 0.0, %v627
        %629 = vdwg.mxu0
        %630 = vmatprep.subr.bf16.mxu0 %v409
        %631 = vmatpush1.bf16.msra.mxu0 %v406
        %632 = vmatprep.subr.bf16.mxu0 0
        %633 = vmatpush1.bf16.msra.mxu0 0
        %634 = vmatprep.subr.bf16.mxu0 0
        %635 = vmatpush1.bf16.msra.mxu0 0
        %636 = vmatprep.subr.bf16.mxu0 0
        %637 = vmatpush1.bf16.msra.mxu0 0
        %638 = vmatprep.subr.bf16.mxu0 0
        %639 = vmatpush1.bf16.msra.mxu0 0
        %640 = vmatprep.subr.bf16.mxu0 0
        %641 = vmatpush1.bf16.msra.mxu0 0
        %642 = vmatprep.subr.bf16.mxu0 0
        %643 = vmatpush1.bf16.msra.mxu0 0
        %644 = vmatprep.subr.bf16.mxu0 0
        %645 = vmatpush1.bf16.msra.mxu0 0
        %646 = vmatprep.subr.bf16.mxu0 0
        %647 = vmatpush1.bf16.msra.mxu0 0
        %648 = vmatprep.subr.bf16.mxu0 0
        %649 = vmatpush1.bf16.msra.mxu0 0
        %650 = vmatprep.subr.bf16.mxu0 0
        %651 = vmatpush1.bf16.msra.mxu0 0
        %652 = vmatprep.subr.bf16.mxu0 0
        %653 = vmatpush1.bf16.msra.mxu0 0
        %654 = vmatprep.subr.bf16.mxu0 0
        %655 = vmatpush1.bf16.msra.mxu0 0
        %656 = vmatprep.subr.bf16.mxu0 0
        %657 = vmatpush1.bf16.msra.mxu0 0
        %658 = vmatprep.subr.bf16.mxu0 0
        %659 = vmatpush1.bf16.msra.mxu0 0
        %660 = vmatprep.subr.bf16.mxu0 0
        %661 = vmatpush1.bf16.msra.mxu0 0
        %662 = vmatprep.mubr.bf16.mxu0 0
        %663 = vmatmul.mubr.bf16.gmra.mrb[0].mxu0 %v375
        %v664 = vpop.f32.mrb[0].mxu0
        %v665 = vadd.f32 0.0, %v664
        %v666 = vpop.f32.mrb[0].mxu0
        %v667 = vadd.f32 0.0, %v666
        %v668 = vpop.f32.mrb[0].mxu0
        %v669 = vadd.f32 0.0, %v668
        %v670 = vpop.f32.mrb[0].mxu0
        %v671 = vadd.f32 0.0, %v670
        %672 = vmatprep.mubr.bf16.mxu0 0
        %673 = vmatmul.mubr.bf16.gmra.mrb[0].mxu0 %v378
        %v674 = vpop.f32.mrb[0].mxu0
        %v675 = vadd.f32 0.0, %v674
        %v676 = vpop.f32.mrb[0].mxu0
        %v677 = vadd.f32 0.0, %v676
        %v678 = vpop.f32.mrb[0].mxu0
        %v679 = vadd.f32 0.0, %v678
        %v680 = vpop.f32.mrb[0].mxu0
        %v681 = vadd.f32 0.0, %v680
        %682 = vmatprep.mubr.bf16.mxu0 0
        %683 = vmatmul.mubr.bf16.gmra.mrb[0].mxu0 %v381
        %v684 = vpop.f32.mrb[0].mxu0
        %v685 = vadd.f32 0.0, %v684
        %v686 = vpop.f32.mrb[0].mxu0
        %v687 = vadd.f32 0.0, %v686
        %v688 = vpop.f32.mrb[0].mxu0
        %v689 = vadd.f32 0.0, %v688
        %v690 = vpop.f32.mrb[0].mxu0
        %v691 = vadd.f32 0.0, %v690
        %692 = vmatprep.mubr.bf16.mxu0 0
        %693 = vmatmul.mubr.bf16.gmra.mrb[0].mxu0 %v384
        %v694 = vpop.f32.mrb[0].mxu0
        %v695 = vadd.f32 0.0, %v694
        %v696 = vpop.f32.mrb[0].mxu0
        %v697 = vadd.f32 0.0, %v696
        %v698 = vpop.f32.mrb[0].mxu0
        %v699 = vadd.f32 0.0, %v698
        %v700 = vpop.f32.mrb[0].mxu0
        %v701 = vadd.f32 0.0, %v700
        %702 = vdwg.mxu0
        %v711 = vunpack.c.l.b16 %v305
        %v712 = vunpack.c.l.b16 %v306
        %v713 = vunpack.c.l.b16 %v307
        %v714 = vunpack.c.l.b16 %v308
        %v715 = vunpack.c.l.b16 %v309
        %v716 = vunpack.c.l.b16 %v310
        %v717 = vunpack.c.l.b16 %v311
        %v718 = vunpack.c.l.b16 %v312
        %v719 = vpack.c.b16 %v712, %v711
        %v720 = vpack.c.b16 %v714, %v713
        %v721 = vpack.c.b16 %v716, %v715
        %v722 = vpack.c.b16 %v718, %v717
        %v731 = vunpack.c.l.b16 %v313
        %v732 = vunpack.c.h.b16 %v313
        %v733 = vunpack.c.l.b16 %v314
        %v734 = vunpack.c.h.b16 %v314
        %v735 = vunpack.c.l.b16 %v315
        %v736 = vunpack.c.h.b16 %v315
        %v737 = vunpack.c.l.b16 %v316
        %v738 = vunpack.c.h.b16 %v316
        %v739 = vunpack.c.l.b16 %v317
        %v740 = vunpack.c.h.b16 %v317
        %v741 = vunpack.c.l.b16 %v318
        %v742 = vunpack.c.h.b16 %v318
        %v743 = vunpack.c.l.b16 %v319
        %v744 = vunpack.c.h.b16 %v319
        %v745 = vunpack.c.l.b16 %v320
        %v746 = vunpack.c.h.b16 %v320
        %v747 = vpack.c.b16 %v739, %v731
        %v748 = vpack.c.b16 %v740, %v732
        %v749 = vpack.c.b16 %v741, %v733
        %v750 = vpack.c.b16 %v742, %v734
        %v751 = vpack.c.b16 %v743, %v735
        %v752 = vpack.c.b16 %v744, %v736
        %v753 = vpack.c.b16 %v745, %v737
        %v754 = vpack.c.b16 %v746, %v738
        %vm763 = vcmask 130048
        %v765 = vsel %vm763, %v719, 0
        %v768 = vsel %vm763, %v720, 0
        %v771 = vsel %vm763, %v721, 0
        %v774 = vsel %vm763, %v722, 0
        %776 = vmatprep.subr.bf16.mxu0 %v748
        %777 = vmatpush1.bf16.msra.mxu0 %v747
        %778 = vmatprep.subr.bf16.mxu0 0
        %779 = vmatpush1.bf16.msra.mxu0 0
        %780 = vmatprep.subr.bf16.mxu0 0
        %781 = vmatpush1.bf16.msra.mxu0 0
        %782 = vmatprep.subr.bf16.mxu0 0
        %783 = vmatpush1.bf16.msra.mxu0 0
        %784 = vmatprep.subr.bf16.mxu0 0
        %785 = vmatpush1.bf16.msra.mxu0 0
        %786 = vmatprep.subr.bf16.mxu0 0
        %787 = vmatpush1.bf16.msra.mxu0 0
        %788 = vmatprep.subr.bf16.mxu0 0
        %789 = vmatpush1.bf16.msra.mxu0 0
        %790 = vmatprep.subr.bf16.mxu0 0
        %791 = vmatpush1.bf16.msra.mxu0 0
        %792 = vmatprep.subr.bf16.mxu0 0
        %793 = vmatpush1.bf16.msra.mxu0 0
        %794 = vmatprep.subr.bf16.mxu0 0
        %795 = vmatpush1.bf16.msra.mxu0 0
        %796 = vmatprep.subr.bf16.mxu0 0
        %797 = vmatpush1.bf16.msra.mxu0 0
        %798 = vmatprep.subr.bf16.mxu0 0
        %799 = vmatpush1.bf16.msra.mxu0 0
        %800 = vmatprep.subr.bf16.mxu0 0
        %801 = vmatpush1.bf16.msra.mxu0 0
        %802 = vmatprep.subr.bf16.mxu0 0
        %803 = vmatpush1.bf16.msra.mxu0 0
        %804 = vmatprep.subr.bf16.mxu0 0
        %805 = vmatpush1.bf16.msra.mxu0 0
        %806 = vmatprep.subr.bf16.mxu0 0
        %807 = vmatpush1.bf16.msra.mxu0 0
        %808 = vmatprep.mubr.bf16.mxu0 0
        %809 = vmatmul.mubr.bf16.gmra.mrb[0].mxu0 %v765
        %v810 = vpop.f32.mrb[0].mxu0
        %v811 = vadd.f32 %v446, %v810
        %v812 = vpop.f32.mrb[0].mxu0
        %v813 = vadd.f32 %v448, %v812
        %v814 = vpop.f32.mrb[0].mxu0
        %v815 = vadd.f32 %v450, %v814
        %v816 = vpop.f32.mrb[0].mxu0
        %v817 = vadd.f32 %v452, %v816
        %818 = vmatprep.mubr.bf16.mxu0 0
        %819 = vmatmul.mubr.bf16.gmra.mrb[0].mxu0 %v768
        %v820 = vpop.f32.mrb[0].mxu0
        %v821 = vadd.f32 %v456, %v820
        %v822 = vpop.f32.mrb[0].mxu0
        %v823 = vadd.f32 %v458, %v822
        %v824 = vpop.f32.mrb[0].mxu0
        %v825 = vadd.f32 %v460, %v824
        %v826 = vpop.f32.mrb[0].mxu0
        %v827 = vadd.f32 %v462, %v826
        %828 = vmatprep.mubr.bf16.mxu0 0
        %829 = vmatmul.mubr.bf16.gmra.mrb[0].mxu0 %v771
        %v830 = vpop.f32.mrb[0].mxu0
        %v831 = vadd.f32 %v466, %v830
        %v832 = vpop.f32.mrb[0].mxu0
        %v833 = vadd.f32 %v468, %v832
        %v834 = vpop.f32.mrb[0].mxu0
        %v835 = vadd.f32 %v470, %v834
        %v836 = vpop.f32.mrb[0].mxu0
        %v837 = vadd.f32 %v472, %v836
        %838 = vmatprep.mubr.bf16.mxu0 0
        %839 = vmatmul.mubr.bf16.gmra.mrb[0].mxu0 %v774
        %v840 = vpop.f32.mrb[0].mxu0
        %v841 = vadd.f32 %v476, %v840
        %v842 = vpop.f32.mrb[0].mxu0
        %v843 = vadd.f32 %v478, %v842
        %v844 = vpop.f32.mrb[0].mxu0
        %v845 = vadd.f32 %v480, %v844
        %v846 = vpop.f32.mrb[0].mxu0
        %v847 = vadd.f32 %v482, %v846
        %848 = vdwg.mxu0
        %849 = vmatprep.subr.bf16.mxu0 %v750
        %850 = vmatpush1.bf16.msra.mxu0 %v749
        %851 = vmatprep.subr.bf16.mxu0 0
        %852 = vmatpush1.bf16.msra.mxu0 0
        %853 = vmatprep.subr.bf16.mxu0 0
        %854 = vmatpush1.bf16.msra.mxu0 0
        %855 = vmatprep.subr.bf16.mxu0 0
        %856 = vmatpush1.bf16.msra.mxu0 0
        %857 = vmatprep.subr.bf16.mxu0 0
        %858 = vmatpush1.bf16.msra.mxu0 0
        %859 = vmatprep.subr.bf16.mxu0 0
        %860 = vmatpush1.bf16.msra.mxu0 0
        %861 = vmatprep.subr.bf16.mxu0 0
        %862 = vmatpush1.bf16.msra.mxu0 0
        %863 = vmatprep.subr.bf16.mxu0 0
        %864 = vmatpush1.bf16.msra.mxu0 0
        %865 = vmatprep.subr.bf16.mxu0 0
        %866 = vmatpush1.bf16.msra.mxu0 0
        %867 = vmatprep.subr.bf16.mxu0 0
        %868 = vmatpush1.bf16.msra.mxu0 0
        %869 = vmatprep.subr.bf16.mxu0 0
        %870 = vmatpush1.bf16.msra.mxu0 0
        %871 = vmatprep.subr.bf16.mxu0 0
        %872 = vmatpush1.bf16.msra.mxu0 0
        %873 = vmatprep.subr.bf16.mxu0 0
        %874 = vmatpush1.bf16.msra.mxu0 0
        %875 = vmatprep.subr.bf16.mxu0 0
        %876 = vmatpush1.bf16.msra.mxu0 0
        %877 = vmatprep.subr.bf16.mxu0 0
        %878 = vmatpush1.bf16.msra.mxu0 0
        %879 = vmatprep.subr.bf16.mxu0 0
        %880 = vmatpush1.bf16.msra.mxu0 0
        %881 = vmatprep.mubr.bf16.mxu0 0
        %882 = vmatmul.mubr.bf16.gmra.mrb[0].mxu0 %v765
        %v883 = vpop.f32.mrb[0].mxu0
        %v884 = vadd.f32 %v519, %v883
        %v885 = vpop.f32.mrb[0].mxu0
        %v886 = vadd.f32 %v521, %v885
        %v887 = vpop.f32.mrb[0].mxu0
        %v888 = vadd.f32 %v523, %v887
        %v889 = vpop.f32.mrb[0].mxu0
        %v890 = vadd.f32 %v525, %v889
        %891 = vmatprep.mubr.bf16.mxu0 0
        %892 = vmatmul.mubr.bf16.gmra.mrb[0].mxu0 %v768
        %v893 = vpop.f32.mrb[0].mxu0
        %v894 = vadd.f32 %v529, %v893
        %v895 = vpop.f32.mrb[0].mxu0
        %v896 = vadd.f32 %v531, %v895
        %v897 = vpop.f32.mrb[0].mxu0
        %v898 = vadd.f32 %v533, %v897
        %v899 = vpop.f32.mrb[0].mxu0
        %v900 = vadd.f32 %v535, %v899
        %901 = vmatprep.mubr.bf16.mxu0 0
        %902 = vmatmul.mubr.bf16.gmra.mrb[0].mxu0 %v771
        %v903 = vpop.f32.mrb[0].mxu0
        %v904 = vadd.f32 %v539, %v903
        %v905 = vpop.f32.mrb[0].mxu0
        %v906 = vadd.f32 %v541, %v905
        %v907 = vpop.f32.mrb[0].mxu0
        %v908 = vadd.f32 %v543, %v907
        %v909 = vpop.f32.mrb[0].mxu0
        %v910 = vadd.f32 %v545, %v909
        %911 = vmatprep.mubr.bf16.mxu0 0
        %912 = vmatmul.mubr.bf16.gmra.mrb[0].mxu0 %v774
        %v913 = vpop.f32.mrb[0].mxu0
        %v914 = vadd.f32 %v549, %v913
        %v915 = vpop.f32.mrb[0].mxu0
        %v916 = vadd.f32 %v551, %v915
        %v917 = vpop.f32.mrb[0].mxu0
        %v918 = vadd.f32 %v553, %v917
        %v919 = vpop.f32.mrb[0].mxu0
        %v920 = vadd.f32 %v555, %v919
        %921 = vdwg.mxu0
        %922 = vmatprep.subr.bf16.mxu0 %v752
        %923 = vmatpush1.bf16.msra.mxu0 %v751
        %924 = vmatprep.subr.bf16.mxu0 0
        %925 = vmatpush1.bf16.msra.mxu0 0
        %926 = vmatprep.subr.bf16.mxu0 0
        %927 = vmatpush1.bf16.msra.mxu0 0
        %928 = vmatprep.subr.bf16.mxu0 0
        %929 = vmatpush1.bf16.msra.mxu0 0
        %930 = vmatprep.subr.bf16.mxu0 0
        %931 = vmatpush1.bf16.msra.mxu0 0
        %932 = vmatprep.subr.bf16.mxu0 0
        %933 = vmatpush1.bf16.msra.mxu0 0
        %934 = vmatprep.subr.bf16.mxu0 0
        %935 = vmatpush1.bf16.msra.mxu0 0
        %936 = vmatprep.subr.bf16.mxu0 0
        %937 = vmatpush1.bf16.msra.mxu0 0
        %938 = vmatprep.subr.bf16.mxu0 0
        %939 = vmatpush1.bf16.msra.mxu0 0
        %940 = vmatprep.subr.bf16.mxu0 0
        %941 = vmatpush1.bf16.msra.mxu0 0
        %942 = vmatprep.subr.bf16.mxu0 0
        %943 = vmatpush1.bf16.msra.mxu0 0
        %944 = vmatprep.subr.bf16.mxu0 0
        %945 = vmatpush1.bf16.msra.mxu0 0
        %946 = vmatprep.subr.bf16.mxu0 0
        %947 = vmatpush1.bf16.msra.mxu0 0
        %948 = vmatprep.subr.bf16.mxu0 0
        %949 = vmatpush1.bf16.msra.mxu0 0
        %950 = vmatprep.subr.bf16.mxu0 0
        %951 = vmatpush1.bf16.msra.mxu0 0
        %952 = vmatprep.subr.bf16.mxu0 0
        %953 = vmatpush1.bf16.msra.mxu0 0
        %954 = vmatprep.mubr.bf16.mxu0 0
        %955 = vmatmul.mubr.bf16.gmra.mrb[0].mxu0 %v765
        %v956 = vpop.f32.mrb[0].mxu0
        %v957 = vadd.f32 %v592, %v956
        %v958 = vpop.f32.mrb[0].mxu0
        %v959 = vadd.f32 %v594, %v958
        %v960 = vpop.f32.mrb[0].mxu0
        %v961 = vadd.f32 %v596, %v960
        %v962 = vpop.f32.mrb[0].mxu0
        %v963 = vadd.f32 %v598, %v962
        %964 = vmatprep.mubr.bf16.mxu0 0
        %965 = vmatmul.mubr.bf16.gmra.mrb[0].mxu0 %v768
        %v966 = vpop.f32.mrb[0].mxu0
        %v967 = vadd.f32 %v602, %v966
        %v968 = vpop.f32.mrb[0].mxu0
        %v969 = vadd.f32 %v604, %v968
        %v970 = vpop.f32.mrb[0].mxu0
        %v971 = vadd.f32 %v606, %v970
        %v972 = vpop.f32.mrb[0].mxu0
        %v973 = vadd.f32 %v608, %v972
        %974 = vmatprep.mubr.bf16.mxu0 0
        %975 = vmatmul.mubr.bf16.gmra.mrb[0].mxu0 %v771
        %v976 = vpop.f32.mrb[0].mxu0
        %v977 = vadd.f32 %v612, %v976
        %v978 = vpop.f32.mrb[0].mxu0
        %v979 = vadd.f32 %v614, %v978
        %v980 = vpop.f32.mrb[0].mxu0
        %v981 = vadd.f32 %v616, %v980
        %v982 = vpop.f32.mrb[0].mxu0
        %v983 = vadd.f32 %v618, %v982
        %984 = vmatprep.mubr.bf16.mxu0 0
        %985 = vmatmul.mubr.bf16.gmra.mrb[0].mxu0 %v774
        %v986 = vpop.f32.mrb[0].mxu0
        %v987 = vadd.f32 %v622, %v986
        %v988 = vpop.f32.mrb[0].mxu0
        %v989 = vadd.f32 %v624, %v988
        %v990 = vpop.f32.mrb[0].mxu0
        %v991 = vadd.f32 %v626, %v990
        %v992 = vpop.f32.mrb[0].mxu0
        %v993 = vadd.f32 %v628, %v992
        %994 = vdwg.mxu0
        %995 = vmatprep.subr.bf16.mxu0 %v754
        %996 = vmatpush1.bf16.msra.mxu0 %v753
        %997 = vmatprep.subr.bf16.mxu0 0
        %998 = vmatpush1.bf16.msra.mxu0 0
        %999 = vmatprep.subr.bf16.mxu0 0
        %1000 = vmatpush1.bf16.msra.mxu0 0
        %1001 = vmatprep.subr.bf16.mxu0 0
        %1002 = vmatpush1.bf16.msra.mxu0 0
        %1003 = vmatprep.subr.bf16.mxu0 0
        %1004 = vmatpush1.bf16.msra.mxu0 0
        %1005 = vmatprep.subr.bf16.mxu0 0
        %1006 = vmatpush1.bf16.msra.mxu0 0
        %1007 = vmatprep.subr.bf16.mxu0 0
        %1008 = vmatpush1.bf16.msra.mxu0 0
        %1009 = vmatprep.subr.bf16.mxu0 0
        %1010 = vmatpush1.bf16.msra.mxu0 0
        %1011 = vmatprep.subr.bf16.mxu0 0
        %1012 = vmatpush1.bf16.msra.mxu0 0
        %1013 = vmatprep.subr.bf16.mxu0 0
        %1014 = vmatpush1.bf16.msra.mxu0 0
        %1015 = vmatprep.subr.bf16.mxu0 0
        %1016 = vmatpush1.bf16.msra.mxu0 0
        %1017 = vmatprep.subr.bf16.mxu0 0
        %1018 = vmatpush1.bf16.msra.mxu0 0
        %1019 = vmatprep.subr.bf16.mxu0 0
        %1020 = vmatpush1.bf16.msra.mxu0 0
        %1021 = vmatprep.subr.bf16.mxu0 0
        %1022 = vmatpush1.bf16.msra.mxu0 0
        %1023 = vmatprep.subr.bf16.mxu0 0
        %1024 = vmatpush1.bf16.msra.mxu0 0
        %1025 = vmatprep.subr.bf16.mxu0 0
        %1026 = vmatpush1.bf16.msra.mxu0 0
        %1027 = vmatprep.mubr.bf16.mxu0 0
        %1028 = vmatmul.mubr.bf16.gmra.mrb[0].mxu0 %v765
        %v1029 = vpop.f32.mrb[0].mxu0
        %v1030 = vadd.f32 %v665, %v1029
        %v1031 = vpop.f32.mrb[0].mxu0
        %v1032 = vadd.f32 %v667, %v1031
        %v1033 = vpop.f32.mrb[0].mxu0
        %v1034 = vadd.f32 %v669, %v1033
        %v1035 = vpop.f32.mrb[0].mxu0
        %v1036 = vadd.f32 %v671, %v1035
        %1037 = vmatprep.mubr.bf16.mxu0 0
        %1038 = vmatmul.mubr.bf16.gmra.mrb[0].mxu0 %v768
        %v1039 = vpop.f32.mrb[0].mxu0
        %v1040 = vadd.f32 %v675, %v1039
        %v1041 = vpop.f32.mrb[0].mxu0
        %v1042 = vadd.f32 %v677, %v1041
        %v1043 = vpop.f32.mrb[0].mxu0
        %v1044 = vadd.f32 %v679, %v1043
        %v1045 = vpop.f32.mrb[0].mxu0
        %v1046 = vadd.f32 %v681, %v1045
        %1047 = vmatprep.mubr.bf16.mxu0 0
        %1048 = vmatmul.mubr.bf16.gmra.mrb[0].mxu0 %v771
        %v1049 = vpop.f32.mrb[0].mxu0
        %v1050 = vadd.f32 %v685, %v1049
        %v1051 = vpop.f32.mrb[0].mxu0
        %v1052 = vadd.f32 %v687, %v1051
        %v1053 = vpop.f32.mrb[0].mxu0
        %v1054 = vadd.f32 %v689, %v1053
        %v1055 = vpop.f32.mrb[0].mxu0
        %v1056 = vadd.f32 %v691, %v1055
        %1057 = vmatprep.mubr.bf16.mxu0 0
        %1058 = vmatmul.mubr.bf16.gmra.mrb[0].mxu0 %v774
        %v1059 = vpop.f32.mrb[0].mxu0
        %v1060 = vadd.f32 %v695, %v1059
        %v1061 = vpop.f32.mrb[0].mxu0
        %v1062 = vadd.f32 %v697, %v1061
        %v1063 = vpop.f32.mrb[0].mxu0
        %v1064 = vadd.f32 %v699, %v1063
        %v1065 = vpop.f32.mrb[0].mxu0
        %v1066 = vadd.f32 %v701, %v1065
        %1067 = vdwg.mxu0
        %v1068 = vld [vmem:[%s4] sm:$0xff]
        %v1069 = vld [vmem:[%s4 + $0x8] sm:$0xff]
        %v1070 = vld [vmem:[%s4 + $0x10] sm:$0xff]
        %v1071 = vld [vmem:[%s4 + $0x18] sm:$0xff]
        %v1072 = vld [vmem:[%s4 + $0x20] sm:$0xff]
        %v1073 = vld [vmem:[%s4 + $0x28] sm:$0xff]
        %v1074 = vld [vmem:[%s4 + $0x30] sm:$0xff]
        %v1075 = vld [vmem:[%s4 + $0x38] sm:$0xff]
        %1077 = vset.pattern.permute.xlu0 0
        %1078 = vperm.xlu0 %1077, %v1068
        %v1079 = vpop.permute.xlu0 %1078
        %1082 = vset.pattern.permute.xlu0 0
        %1083 = vperm.xlu0 %1082, %v1069
        %v1084 = vpop.permute.xlu0 %1083
        %1087 = vset.pattern.permute.xlu0 0
        %1088 = vperm.xlu0 %1087, %v1070
        %v1089 = vpop.permute.xlu0 %1088
        %1092 = vset.pattern.permute.xlu0 0
        %1093 = vperm.xlu0 %1092, %v1071
        %v1094 = vpop.permute.xlu0 %1093
        %1097 = vset.pattern.permute.xlu0 0
        %1098 = vperm.xlu0 %1097, %v1072
        %v1099 = vpop.permute.xlu0 %1098
        %1102 = vset.pattern.permute.xlu0 0
        %1103 = vperm.xlu0 %1102, %v1073
        %v1104 = vpop.permute.xlu0 %1103
        %1107 = vset.pattern.permute.xlu0 0
        %1108 = vperm.xlu0 %1107, %v1074
        %v1109 = vpop.permute.xlu0 %1108
        %1112 = vset.pattern.permute.xlu0 0
        %1113 = vperm.xlu0 %1112, %v1075
        %v1114 = vpop.permute.xlu0 %1113
        %v1116 = vmul.f32 %v811, %v1079
        %v1117 = vmul.f32 %v813, %v1079
        %v1118 = vmul.f32 %v884, %v1079
        %v1119 = vmul.f32 %v886, %v1079
        %v1120 = vmul.f32 %v957, %v1079
        %v1121 = vmul.f32 %v959, %v1079
        %v1122 = vmul.f32 %v1030, %v1079
        %v1123 = vmul.f32 %v1032, %v1079
        %v1124 = vmul.f32 %v815, %v1084
        %v1125 = vmul.f32 %v817, %v1084
        %v1126 = vmul.f32 %v888, %v1084
        %v1127 = vmul.f32 %v890, %v1084
        %v1128 = vmul.f32 %v961, %v1084
        %v1129 = vmul.f32 %v963, %v1084
        %v1130 = vmul.f32 %v1034, %v1084
        %v1131 = vmul.f32 %v1036, %v1084
        %v1132 = vmul.f32 %v821, %v1089
        %v1133 = vmul.f32 %v823, %v1089
        %v1134 = vmul.f32 %v894, %v1089
        %v1135 = vmul.f32 %v896, %v1089
        %v1136 = vmul.f32 %v967, %v1089
        %v1137 = vmul.f32 %v969, %v1089
        %v1138 = vmul.f32 %v1040, %v1089
        %v1139 = vmul.f32 %v1042, %v1089
        %v1140 = vmul.f32 %v825, %v1094
        %v1141 = vmul.f32 %v827, %v1094
        %v1142 = vmul.f32 %v898, %v1094
        %v1143 = vmul.f32 %v900, %v1094
        %v1144 = vmul.f32 %v971, %v1094
        %v1145 = vmul.f32 %v973, %v1094
        %v1146 = vmul.f32 %v1044, %v1094
        %v1147 = vmul.f32 %v1046, %v1094
        %v1148 = vmul.f32 %v831, %v1099
        %v1149 = vmul.f32 %v833, %v1099
        %v1150 = vmul.f32 %v904, %v1099
        %v1151 = vmul.f32 %v906, %v1099
        %v1152 = vmul.f32 %v977, %v1099
        %v1153 = vmul.f32 %v979, %v1099
        %v1154 = vmul.f32 %v1050, %v1099
        %v1155 = vmul.f32 %v1052, %v1099
        %v1156 = vmul.f32 %v835, %v1104
        %v1157 = vmul.f32 %v837, %v1104
        %v1158 = vmul.f32 %v908, %v1104
        %v1159 = vmul.f32 %v910, %v1104
        %v1160 = vmul.f32 %v981, %v1104
        %v1161 = vmul.f32 %v983, %v1104
        %v1162 = vmul.f32 %v1054, %v1104
        %v1163 = vmul.f32 %v1056, %v1104
        %v1164 = vmul.f32 %v841, %v1109
        %v1165 = vmul.f32 %v843, %v1109
        %v1166 = vmul.f32 %v914, %v1109
        %v1167 = vmul.f32 %v916, %v1109
        %v1168 = vmul.f32 %v987, %v1109
        %v1169 = vmul.f32 %v989, %v1109
        %v1170 = vmul.f32 %v1060, %v1109
        %v1171 = vmul.f32 %v1062, %v1109
        %v1172 = vmul.f32 %v845, %v1114
        %v1173 = vmul.f32 %v847, %v1114
        %v1174 = vmul.f32 %v918, %v1114
        %v1175 = vmul.f32 %v920, %v1114
        %v1176 = vmul.f32 %v991, %v1114
        %v1177 = vmul.f32 %v993, %v1114
        %v1178 = vmul.f32 %v1064, %v1114
        %v1179 = vmul.f32 %v1066, %v1114
        %v1180 = vld [vmem:[%s5] sm:$0xff]
        %v1181 = vld [vmem:[%s5 + $0x8] sm:$0xff]
        %v1182 = vld [vmem:[%s5 + $0x10] sm:$0xff]
        %v1183 = vld [vmem:[%s5 + $0x18] sm:$0xff]
        %v1184 = vld [vmem:[%s5 + $0x20] sm:$0xff]
        %v1185 = vld [vmem:[%s5 + $0x28] sm:$0xff]
        %v1186 = vld [vmem:[%s5 + $0x30] sm:$0xff]
        %v1187 = vld [vmem:[%s5 + $0x38] sm:$0xff]
        %1189 = vset.pattern.permute.xlu0 0
        %1190 = vperm.xlu0 %1189, %v1180
        %v1191 = vpop.permute.xlu0 %1190
        %1194 = vset.pattern.permute.xlu0 0
        %1195 = vperm.xlu0 %1194, %v1181
        %v1196 = vpop.permute.xlu0 %1195
        %1199 = vset.pattern.permute.xlu0 0
        %1200 = vperm.xlu0 %1199, %v1182
        %v1201 = vpop.permute.xlu0 %1200
        %1204 = vset.pattern.permute.xlu0 0
        %1205 = vperm.xlu0 %1204, %v1183
        %v1206 = vpop.permute.xlu0 %1205
        %1209 = vset.pattern.permute.xlu0 0
        %1210 = vperm.xlu0 %1209, %v1184
        %v1211 = vpop.permute.xlu0 %1210
        %1214 = vset.pattern.permute.xlu0 0
        %1215 = vperm.xlu0 %1214, %v1185
        %v1216 = vpop.permute.xlu0 %1215
        %1219 = vset.pattern.permute.xlu0 0
        %1220 = vperm.xlu0 %1219, %v1186
        %v1221 = vpop.permute.xlu0 %1220
        %1224 = vset.pattern.permute.xlu0 0
        %1225 = vperm.xlu0 %1224, %v1187
        %v1226 = vpop.permute.xlu0 %1225
        %v1228 = vadd.f32 %v1116, %v1191
        %v1229 = vadd.f32 %v1117, %v1191
        %v1230 = vadd.f32 %v1118, %v1191
        %v1231 = vadd.f32 %v1119, %v1191
        %v1232 = vadd.f32 %v1120, %v1191
        %v1233 = vadd.f32 %v1121, %v1191
        %v1234 = vadd.f32 %v1122, %v1191
        %v1235 = vadd.f32 %v1123, %v1191
        %v1236 = vadd.f32 %v1124, %v1196
        %v1237 = vadd.f32 %v1125, %v1196
        %v1238 = vadd.f32 %v1126, %v1196
        %v1239 = vadd.f32 %v1127, %v1196
        %v1240 = vadd.f32 %v1128, %v1196
        %v1241 = vadd.f32 %v1129, %v1196
        %v1242 = vadd.f32 %v1130, %v1196
        %v1243 = vadd.f32 %v1131, %v1196
        %v1244 = vadd.f32 %v1132, %v1201
        %v1245 = vadd.f32 %v1133, %v1201
        %v1246 = vadd.f32 %v1134, %v1201
        %v1247 = vadd.f32 %v1135, %v1201
        %v1248 = vadd.f32 %v1136, %v1201
        %v1249 = vadd.f32 %v1137, %v1201
        %v1250 = vadd.f32 %v1138, %v1201
        %v1251 = vadd.f32 %v1139, %v1201
        %v1252 = vadd.f32 %v1140, %v1206
        %v1253 = vadd.f32 %v1141, %v1206
        %v1254 = vadd.f32 %v1142, %v1206
        %v1255 = vadd.f32 %v1143, %v1206
        %v1256 = vadd.f32 %v1144, %v1206
        %v1257 = vadd.f32 %v1145, %v1206
        %v1258 = vadd.f32 %v1146, %v1206
        %v1259 = vadd.f32 %v1147, %v1206
        %v1260 = vadd.f32 %v1148, %v1211
        %v1261 = vadd.f32 %v1149, %v1211
        %v1262 = vadd.f32 %v1150, %v1211
        %v1263 = vadd.f32 %v1151, %v1211
        %v1264 = vadd.f32 %v1152, %v1211
        %v1265 = vadd.f32 %v1153, %v1211
        %v1266 = vadd.f32 %v1154, %v1211
        %v1267 = vadd.f32 %v1155, %v1211
        %v1268 = vadd.f32 %v1156, %v1216
        %v1269 = vadd.f32 %v1157, %v1216
        %v1270 = vadd.f32 %v1158, %v1216
        %v1271 = vadd.f32 %v1159, %v1216
        %v1272 = vadd.f32 %v1160, %v1216
        %v1273 = vadd.f32 %v1161, %v1216
        %v1274 = vadd.f32 %v1162, %v1216
        %v1275 = vadd.f32 %v1163, %v1216
        %v1276 = vadd.f32 %v1164, %v1221
        %v1277 = vadd.f32 %v1165, %v1221
        %v1278 = vadd.f32 %v1166, %v1221
        %v1279 = vadd.f32 %v1167, %v1221
        %v1280 = vadd.f32 %v1168, %v1221
        %v1281 = vadd.f32 %v1169, %v1221
        %v1282 = vadd.f32 %v1170, %v1221
        %v1283 = vadd.f32 %v1171, %v1221
        %v1284 = vadd.f32 %v1172, %v1226
        %v1285 = vadd.f32 %v1173, %v1226
        %v1286 = vadd.f32 %v1174, %v1226
        %v1287 = vadd.f32 %v1175, %v1226
        %v1288 = vadd.f32 %v1176, %v1226
        %v1289 = vadd.f32 %v1177, %v1226
        %v1290 = vadd.f32 %v1178, %v1226
        %v1291 = vadd.f32 %v1179, %v1226
        %v1292 = vmax.f32 %v1228, 0.0
        %v1293 = vmax.f32 %v1229, 0.0
        %v1294 = vmax.f32 %v1230, 0.0
        %v1295 = vmax.f32 %v1231, 0.0
        %v1296 = vmax.f32 %v1232, 0.0
        %v1297 = vmax.f32 %v1233, 0.0
        %v1298 = vmax.f32 %v1234, 0.0
        %v1299 = vmax.f32 %v1235, 0.0
        %v1300 = vmax.f32 %v1236, 0.0
        %v1301 = vmax.f32 %v1237, 0.0
        %v1302 = vmax.f32 %v1238, 0.0
        %v1303 = vmax.f32 %v1239, 0.0
        %v1304 = vmax.f32 %v1240, 0.0
        %v1305 = vmax.f32 %v1241, 0.0
        %v1306 = vmax.f32 %v1242, 0.0
        %v1307 = vmax.f32 %v1243, 0.0
        %v1308 = vmax.f32 %v1244, 0.0
        %v1309 = vmax.f32 %v1245, 0.0
        %v1310 = vmax.f32 %v1246, 0.0
        %v1311 = vmax.f32 %v1247, 0.0
        %v1312 = vmax.f32 %v1248, 0.0
        %v1313 = vmax.f32 %v1249, 0.0
        %v1314 = vmax.f32 %v1250, 0.0
        %v1315 = vmax.f32 %v1251, 0.0
        %v1316 = vmax.f32 %v1252, 0.0
        %v1317 = vmax.f32 %v1253, 0.0
        %v1318 = vmax.f32 %v1254, 0.0
        %v1319 = vmax.f32 %v1255, 0.0
        %v1320 = vmax.f32 %v1256, 0.0
        %v1321 = vmax.f32 %v1257, 0.0
        %v1322 = vmax.f32 %v1258, 0.0
        %v1323 = vmax.f32 %v1259, 0.0
        %v1324 = vmax.f32 %v1260, 0.0
        %v1325 = vmax.f32 %v1261, 0.0
        %v1326 = vmax.f32 %v1262, 0.0
        %v1327 = vmax.f32 %v1263, 0.0
        %v1328 = vmax.f32 %v1264, 0.0
        %v1329 = vmax.f32 %v1265, 0.0
        %v1330 = vmax.f32 %v1266, 0.0
        %v1331 = vmax.f32 %v1267, 0.0
        %v1332 = vmax.f32 %v1268, 0.0
        %v1333 = vmax.f32 %v1269, 0.0
        %v1334 = vmax.f32 %v1270, 0.0
        %v1335 = vmax.f32 %v1271, 0.0
        %v1336 = vmax.f32 %v1272, 0.0
        %v1337 = vmax.f32 %v1273, 0.0
        %v1338 = vmax.f32 %v1274, 0.0
        %v1339 = vmax.f32 %v1275, 0.0
        %v1340 = vmax.f32 %v1276, 0.0
        %v1341 = vmax.f32 %v1277, 0.0
        %v1342 = vmax.f32 %v1278, 0.0
        %v1343 = vmax.f32 %v1279, 0.0
        %v1344 = vmax.f32 %v1280, 0.0
        %v1345 = vmax.f32 %v1281, 0.0
        %v1346 = vmax.f32 %v1282, 0.0
        %v1347 = vmax.f32 %v1283, 0.0
        %v1348 = vmax.f32 %v1284, 0.0
        %v1349 = vmax.f32 %v1285, 0.0
        %v1350 = vmax.f32 %v1286, 0.0
        %v1351 = vmax.f32 %v1287, 0.0
        %v1352 = vmax.f32 %v1288, 0.0
        %v1353 = vmax.f32 %v1289, 0.0
        %v1354 = vmax.f32 %v1290, 0.0
        %v1355 = vmax.f32 %v1291, 0.0
        %1356 = vst [vmem:[%s295] sm:$0xff] %v1292
        %1357 = vst [vmem:[%s295 + $0x8] sm:$0xff] %v1293
        %1358 = vst [vmem:[%s295 + $0x10] sm:$0xff] %v1294
        %1359 = vst [vmem:[%s295 + $0x18] sm:$0xff] %v1295
        %1360 = vst [vmem:[%s295 + $0x20] sm:$0xff] %v1296
        %1361 = vst [vmem:[%s295 + $0x28] sm:$0xff] %v1297
        %1362 = vst [vmem:[%s295 + $0x30] sm:$0xff] %v1298
        %1363 = vst [vmem:[%s295 + $0x38] sm:$0xff] %v1299
        %1364 = vst [vmem:[%s295 + $0x40] sm:$0xff] %v1300
        %1365 = vst [vmem:[%s295 + $0x48] sm:$0xff] %v1301
        %1366 = vst [vmem:[%s295 + $0x50] sm:$0xff] %v1302
        %1367 = vst [vmem:[%s295 + $0x58] sm:$0xff] %v1303
        %1368 = vst [vmem:[%s295 + $0x60] sm:$0xff] %v1304
        %1369 = vst [vmem:[%s295 + $0x68] sm:$0xff] %v1305
        %1370 = vst [vmem:[%s295 + $0x70] sm:$0xff] %v1306
        %1371 = vst [vmem:[%s295 + $0x78] sm:$0xff] %v1307
        %1372 = vst [vmem:[%s295 + $0x80] sm:$0xff] %v1308
        %1373 = vst [vmem:[%s295 + $0x88] sm:$0xff] %v1309
        %1374 = vst [vmem:[%s295 + $0x90] sm:$0xff] %v1310
        %1375 = vst [vmem:[%s295 + $0x98] sm:$0xff] %v1311
        %1376 = vst [vmem:[%s295 + $0xa0] sm:$0xff] %v1312
        %1377 = vst [vmem:[%s295 + $0xa8] sm:$0xff] %v1313
        %1378 = vst [vmem:[%s295 + $0xb0] sm:$0xff] %v1314
        %1379 = vst [vmem:[%s295 + $0xb8] sm:$0xff] %v1315
        %1380 = vst [vmem:[%s295 + $0xc0] sm:$0xff] %v1316
        %1381 = vst [vmem:[%s295 + $0xc8] sm:$0xff] %v1317
        %1382 = vst [vmem:[%s295 + $0xd0] sm:$0xff] %v1318
        %1383 = vst [vmem:[%s295 + $0xd8] sm:$0xff] %v1319
        %1384 = vst [vmem:[%s295 + $0xe0] sm:$0xff] %v1320
        %1385 = vst [vmem:[%s295 + $0xe8] sm:$0xff] %v1321
        %1386 = vst [vmem:[%s295 + $0xf0] sm:$0xff] %v1322
        %1387 = vst [vmem:[%s295 + $0xf8] sm:$0xff] %v1323
        %1388 = vst [vmem:[%s295 + $0x100] sm:$0xff] %v1324
        %1389 = vst [vmem:[%s295 + $0x108] sm:$0xff] %v1325
        %1390 = vst [vmem:[%s295 + $0x110] sm:$0xff] %v1326
        %1391 = vst [vmem:[%s295 + $0x118] sm:$0xff] %v1327
        %1392 = vst [vmem:[%s295 + $0x120] sm:$0xff] %v1328
        %1393 = vst [vmem:[%s295 + $0x128] sm:$0xff] %v1329
        %1394 = vst [vmem:[%s295 + $0x130] sm:$0xff] %v1330
        %1395 = vst [vmem:[%s295 + $0x138] sm:$0xff] %v1331
        %1396 = vst [vmem:[%s295 + $0x140] sm:$0xff] %v1332
        %1397 = vst [vmem:[%s295 + $0x148] sm:$0xff] %v1333
        %1398 = vst [vmem:[%s295 + $0x150] sm:$0xff] %v1334
        %1399 = vst [vmem:[%s295 + $0x158] sm:$0xff] %v1335
        %1400 = vst [vmem:[%s295 + $0x160] sm:$0xff] %v1336
        %1401 = vst [vmem:[%s295 + $0x168] sm:$0xff] %v1337
        %1402 = vst [vmem:[%s295 + $0x170] sm:$0xff] %v1338
        %1403 = vst [vmem:[%s295 + $0x178] sm:$0xff] %v1339
        %1404 = vst [vmem:[%s295 + $0x180] sm:$0xff] %v1340
        %1405 = vst [vmem:[%s295 + $0x188] sm:$0xff] %v1341
        %1406 = vst [vmem:[%s295 + $0x190] sm:$0xff] %v1342
        %1407 = vst [vmem:[%s295 + $0x198] sm:$0xff] %v1343
        %1408 = vst [vmem:[%s295 + $0x1a0] sm:$0xff] %v1344
        %1409 = vst [vmem:[%s295 + $0x1a8] sm:$0xff] %v1345
        %1410 = vst [vmem:[%s295 + $0x1b0] sm:$0xff] %v1346
        %1411 = vst [vmem:[%s295 + $0x1b8] sm:$0xff] %v1347
        %1412 = vst [vmem:[%s295 + $0x1c0] sm:$0xff] %v1348
        %1413 = vst [vmem:[%s295 + $0x1c8] sm:$0xff] %v1349
        %1414 = vst [vmem:[%s295 + $0x1d0] sm:$0xff] %v1350
        %1415 = vst [vmem:[%s295 + $0x1d8] sm:$0xff] %v1351
        %1416 = vst [vmem:[%s295 + $0x1e0] sm:$0xff] %v1352
        %1417 = vst [vmem:[%s295 + $0x1e8] sm:$0xff] %v1353
        %1418 = vst [vmem:[%s295 + $0x1f0] sm:$0xff] %v1354
        %1419 = vst [vmem:[%s295 + $0x1f8] sm:$0xff] %v1355
        %s1420 = sand.u32 %s161, 1
        %s1421 = sand.u32 %s161, 1
        %s1422 = smul.addr %s1421, 512
        %s1423 = scalar_lea.vmem [#allocation3], %s1422
        // Predicated region
        $region68: #{decoder_forward.5} parent=62 // pred_check
          %p1424 = pneg %p171
        $region69: #{decoder_forward.5} parent=62 // pred_check_branch
          %1426 = sbr.rel (%p1424) target = $region71
        $region70: #{decoder_forward.5} parent=62 // pred_region
          %s1427 = smul.u32 8, %s17
          %s1428 = smul.addr %s1427, 8
          %s1429 = scalar_lea.vmem %s6, %s1428
          // Predicated region
          $region72: #{decoder_forward.5} parent=70 // pred_check
            _
          $region73: #{decoder_forward.5} parent=70 // pred_check_branch
            %1431 = sbr.rel (0) target = $region75
          $region74: #{decoder_forward.5} parent=70 // pred_region
            // Predicated region
            $region76: #{decoder_forward.5} parent=74 // pred_check
              _
            $region77: #{decoder_forward.5} parent=74 // pred_check_branch
              %1433 = sbr.rel (0) target = $region79
            $region78: #{decoder_forward.5} parent=74 // pred_region
              loop: start=0, step=1, limit=1
              $region80: #{decoder_forward.5} parent=78 // loop_pre_header
                _
              $region81: #{decoder_forward.5} parent=78 // loop_header
                %s1435 = sphi 0, %s1439
                %p1436 = scmp.ge.s32.totalorder %s1435, 1
                %s1440 = sphi %s1423, %s1423
                %s1441 = sphi %s1429, %s1429
              $region82: #{decoder_forward.5} parent=78 // loop_header_branch
                %1438 = sbr.rel (%p1436) target = $region86
              $region83: #{decoder_forward.5} parent=78 // loop_body
                %v1442 = vld [vmem:[%s1440] sm:$0xff]
                %1443 = vst [vmem:[%s1441] sm:$0xff] %v1442
                %v1444 = vld [vmem:[%s1440 + $0x8] sm:$0xff]
                %1445 = vst [vmem:[%s1441 + $0x8] sm:$0xff] %v1444
                %v1446 = vld [vmem:[%s1440 + $0x10] sm:$0xff]
                %1447 = vst [vmem:[%s1441 + $0x10] sm:$0xff] %v1446
                %v1448 = vld [vmem:[%s1440 + $0x18] sm:$0xff]
                %1449 = vst [vmem:[%s1441 + $0x18] sm:$0xff] %v1448
                %v1450 = vld [vmem:[%s1440 + $0x20] sm:$0xff]
                %1451 = vst [vmem:[%s1441 + $0x20] sm:$0xff] %v1450
                %v1452 = vld [vmem:[%s1440 + $0x28] sm:$0xff]
                %1453 = vst [vmem:[%s1441 + $0x28] sm:$0xff] %v1452
                %v1454 = vld [vmem:[%s1440 + $0x30] sm:$0xff]
                %1455 = vst [vmem:[%s1441 + $0x30] sm:$0xff] %v1454
                %v1456 = vld [vmem:[%s1440 + $0x38] sm:$0xff]
                %1457 = vst [vmem:[%s1441 + $0x38] sm:$0xff] %v1456
                %v1458 = vld [vmem:[%s1440 + $0x40] sm:$0xff]
                %1459 = vst [vmem:[%s1441 + $0x80] sm:$0xff] %v1458
                %v1460 = vld [vmem:[%s1440 + $0x48] sm:$0xff]
                %1461 = vst [vmem:[%s1441 + $0x88] sm:$0xff] %v1460
                %v1462 = vld [vmem:[%s1440 + $0x50] sm:$0xff]
                %1463 = vst [vmem:[%s1441 + $0x90] sm:$0xff] %v1462
                %v1464 = vld [vmem:[%s1440 + $0x58] sm:$0xff]
                %1465 = vst [vmem:[%s1441 + $0x98] sm:$0xff] %v1464
                %v1466 = vld [vmem:[%s1440 + $0x60] sm:$0xff]
                %1467 = vst [vmem:[%s1441 + $0xa0] sm:$0xff] %v1466
                %v1468 = vld [vmem:[%s1440 + $0x68] sm:$0xff]
                %1469 = vst [vmem:[%s1441 + $0xa8] sm:$0xff] %v1468
                %v1470 = vld [vmem:[%s1440 + $0x70] sm:$0xff]
                %1471 = vst [vmem:[%s1441 + $0xb0] sm:$0xff] %v1470
                %v1472 = vld [vmem:[%s1440 + $0x78] sm:$0xff]
                %1473 = vst [vmem:[%s1441 + $0xb8] sm:$0xff] %v1472
                %v1474 = vld [vmem:[%s1440 + $0x80] sm:$0xff]
                %1475 = vst [vmem:[%s1441 + $0x100] sm:$0xff] %v1474
                %v1476 = vld [vmem:[%s1440 + $0x88] sm:$0xff]
                %1477 = vst [vmem:[%s1441 + $0x108] sm:$0xff] %v1476
                %v1478 = vld [vmem:[%s1440 + $0x90] sm:$0xff]
                %1479 = vst [vmem:[%s1441 + $0x110] sm:$0xff] %v1478
                %v1480 = vld [vmem:[%s1440 + $0x98] sm:$0xff]
                %1481 = vst [vmem:[%s1441 + $0x118] sm:$0xff] %v1480
                %v1482 = vld [vmem:[%s1440 + $0xa0] sm:$0xff]
                %1483 = vst [vmem:[%s1441 + $0x120] sm:$0xff] %v1482
                %v1484 = vld [vmem:[%s1440 + $0xa8] sm:$0xff]
                %1485 = vst [vmem:[%s1441 + $0x128] sm:$0xff] %v1484
                %v1486 = vld [vmem:[%s1440 + $0xb0] sm:$0xff]
                %1487 = vst [vmem:[%s1441 + $0x130] sm:$0xff] %v1486
                %v1488 = vld [vmem:[%s1440 + $0xb8] sm:$0xff]
                %1489 = vst [vmem:[%s1441 + $0x138] sm:$0xff] %v1488
                %v1490 = vld [vmem:[%s1440 + $0xc0] sm:$0xff]
                %1491 = vst [vmem:[%s1441 + $0x180] sm:$0xff] %v1490
                %v1492 = vld [vmem:[%s1440 + $0xc8] sm:$0xff]
                %1493 = vst [vmem:[%s1441 + $0x188] sm:$0xff] %v1492
                %v1494 = vld [vmem:[%s1440 + $0xd0] sm:$0xff]
                %1495 = vst [vmem:[%s1441 + $0x190] sm:$0xff] %v1494
                %v1496 = vld [vmem:[%s1440 + $0xd8] sm:$0xff]
                %1497 = vst [vmem:[%s1441 + $0x198] sm:$0xff] %v1496
                %v1498 = vld [vmem:[%s1440 + $0xe0] sm:$0xff]
                %1499 = vst [vmem:[%s1441 + $0x1a0] sm:$0xff] %v1498
                %v1500 = vld [vmem:[%s1440 + $0xe8] sm:$0xff]
                %1501 = vst [vmem:[%s1441 + $0x1a8] sm:$0xff] %v1500
                %v1502 = vld [vmem:[%s1440 + $0xf0] sm:$0xff]
                %1503 = vst [vmem:[%s1441 + $0x1b0] sm:$0xff] %v1502
                %v1504 = vld [vmem:[%s1440 + $0xf8] sm:$0xff]
                %1505 = vst [vmem:[%s1441 + $0x1b8] sm:$0xff] %v1504
                %v1506 = vld [vmem:[%s1440 + $0x100] sm:$0xff]
                %1507 = vst [vmem:[%s1441 + $0x200] sm:$0xff] %v1506
                %v1508 = vld [vmem:[%s1440 + $0x108] sm:$0xff]
                %1509 = vst [vmem:[%s1441 + $0x208] sm:$0xff] %v1508
                %v1510 = vld [vmem:[%s1440 + $0x110] sm:$0xff]
                %1511 = vst [vmem:[%s1441 + $0x210] sm:$0xff] %v1510
                %v1512 = vld [vmem:[%s1440 + $0x118] sm:$0xff]
                %1513 = vst [vmem:[%s1441 + $0x218] sm:$0xff] %v1512
                %v1514 = vld [vmem:[%s1440 + $0x120] sm:$0xff]
                %1515 = vst [vmem:[%s1441 + $0x220] sm:$0xff] %v1514
                %v1516 = vld [vmem:[%s1440 + $0x128] sm:$0xff]
                %1517 = vst [vmem:[%s1441 + $0x228] sm:$0xff] %v1516
                %v1518 = vld [vmem:[%s1440 + $0x130] sm:$0xff]
                %1519 = vst [vmem:[%s1441 + $0x230] sm:$0xff] %v1518
                %v1520 = vld [vmem:[%s1440 + $0x138] sm:$0xff]
                %1521 = vst [vmem:[%s1441 + $0x238] sm:$0xff] %v1520
                %v1522 = vld [vmem:[%s1440 + $0x140] sm:$0xff]
                %1523 = vst [vmem:[%s1441 + $0x280] sm:$0xff] %v1522
                %v1524 = vld [vmem:[%s1440 + $0x148] sm:$0xff]
                %1525 = vst [vmem:[%s1441 + $0x288] sm:$0xff] %v1524
                %v1526 = vld [vmem:[%s1440 + $0x150] sm:$0xff]
                %1527 = vst [vmem:[%s1441 + $0x290] sm:$0xff] %v1526
                %v1528 = vld [vmem:[%s1440 + $0x158] sm:$0xff]
                %1529 = vst [vmem:[%s1441 + $0x298] sm:$0xff] %v1528
                %v1530 = vld [vmem:[%s1440 + $0x160] sm:$0xff]
                %1531 = vst [vmem:[%s1441 + $0x2a0] sm:$0xff] %v1530
                %v1532 = vld [vmem:[%s1440 + $0x168] sm:$0xff]
                %1533 = vst [vmem:[%s1441 + $0x2a8] sm:$0xff] %v1532
                %v1534 = vld [vmem:[%s1440 + $0x170] sm:$0xff]
                %1535 = vst [vmem:[%s1441 + $0x2b0] sm:$0xff] %v1534
                %v1536 = vld [vmem:[%s1440 + $0x178] sm:$0xff]
                %1537 = vst [vmem:[%s1441 + $0x2b8] sm:$0xff] %v1536
                %v1538 = vld [vmem:[%s1440 + $0x180] sm:$0xff]
                %1539 = vst [vmem:[%s1441 + $0x300] sm:$0xff] %v1538
                %v1540 = vld [vmem:[%s1440 + $0x188] sm:$0xff]
                %1541 = vst [vmem:[%s1441 + $0x308] sm:$0xff] %v1540
                %v1542 = vld [vmem:[%s1440 + $0x190] sm:$0xff]
                %1543 = vst [vmem:[%s1441 + $0x310] sm:$0xff] %v1542
                %v1544 = vld [vmem:[%s1440 + $0x198] sm:$0xff]
                %1545 = vst [vmem:[%s1441 + $0x318] sm:$0xff] %v1544
                %v1546 = vld [vmem:[%s1440 + $0x1a0] sm:$0xff]
                %1547 = vst [vmem:[%s1441 + $0x320] sm:$0xff] %v1546
                %v1548 = vld [vmem:[%s1440 + $0x1a8] sm:$0xff]
                %1549 = vst [vmem:[%s1441 + $0x328] sm:$0xff] %v1548
                %v1550 = vld [vmem:[%s1440 + $0x1b0] sm:$0xff]
                %1551 = vst [vmem:[%s1441 + $0x330] sm:$0xff] %v1550
                %v1552 = vld [vmem:[%s1440 + $0x1b8] sm:$0xff]
                %1553 = vst [vmem:[%s1441 + $0x338] sm:$0xff] %v1552
                %v1554 = vld [vmem:[%s1440 + $0x1c0] sm:$0xff]
                %1555 = vst [vmem:[%s1441 + $0x380] sm:$0xff] %v1554
                %v1556 = vld [vmem:[%s1440 + $0x1c8] sm:$0xff]
                %1557 = vst [vmem:[%s1441 + $0x388] sm:$0xff] %v1556
                %v1558 = vld [vmem:[%s1440 + $0x1d0] sm:$0xff]
                %1559 = vst [vmem:[%s1441 + $0x390] sm:$0xff] %v1558
                %v1560 = vld [vmem:[%s1440 + $0x1d8] sm:$0xff]
                %1561 = vst [vmem:[%s1441 + $0x398] sm:$0xff] %v1560
                %v1562 = vld [vmem:[%s1440 + $0x1e0] sm:$0xff]
                %1563 = vst [vmem:[%s1441 + $0x3a0] sm:$0xff] %v1562
                %v1564 = vld [vmem:[%s1440 + $0x1e8] sm:$0xff]
                %1565 = vst [vmem:[%s1441 + $0x3a8] sm:$0xff] %v1564
                %v1566 = vld [vmem:[%s1440 + $0x1f0] sm:$0xff]
                %1567 = vst [vmem:[%s1441 + $0x3b0] sm:$0xff] %v1566
                %v1568 = vld [vmem:[%s1440 + $0x1f8] sm:$0xff]
                %1569 = vst [vmem:[%s1441 + $0x3b8] sm:$0xff] %v1568
              $region84: #{decoder_forward.5} parent=78 // loop_footer
                %s1439 = sadd.s32 1, %s1435
              $region85: #{decoder_forward.5} parent=78 // loop_footer_branch
                %1434 = sbr.rel target = $region81
              $region86: #{decoder_forward.5} parent=78 // loop_exit
                _
            $region79: #{decoder_forward.5} parent=74 // pred_fallthru
              _
            // Predicated region
            $region87: #{decoder_forward.5} parent=74 // pred_check
              _
            $region88: #{decoder_forward.5} parent=74 // pred_check_branch
              %1571 = sbr.rel target = $region90
            $region89: #{decoder_forward.5} parent=74 // pred_region
              _
            $region90: #{decoder_forward.5} parent=74 // pred_fallthru
              _
          $region75: #{decoder_forward.5} parent=70 // pred_fallthru
            _
          %1572 = vnop
        $region71: #{decoder_forward.5} parent=62 // pred_fallthru
          _
      $region63: #{decoder_forward.5} parent=5 // pred_fallthru
        _
      %p1573 = scmp.le.s32.totalorder 2, %s12
      // Predicated region
      $region91: #{decoder_forward.5} parent=5 // pred_check
        %p1574 = pneg %p1573
      $region92: #{decoder_forward.5} parent=5 // pred_check_branch
        %1576 = sbr.rel (%p1574) target = $region94
      $region93: #{decoder_forward.5} parent=5 // pred_region
        %s1577 = ssub.s32 %s12, 2
        // Predicated region
        $region95: #{decoder_forward.5} parent=93 // pred_check
          %p1578 = pneg %p177
        $region96: #{decoder_forward.5} parent=93 // pred_check_branch
          %1580 = sbr.rel (%p1578) target = $region98
        $region97: #{decoder_forward.5} parent=93 // pred_region
          %s1581 = sand.u32 %s162, 1
          %s1582 = sand.u32 %s162, 1
          %s1583 = smul.addr %s1582, 512
          %s1584 = scalar_lea.vmem [#allocation3], %s1583
        $region98: #{decoder_forward.5} parent=93 // pred_fallthru
          _
      $region94: #{decoder_forward.5} parent=5 // pred_fallthru
        _
    $region6: #{decoder_forward.5} parent=1 // loop_footer
      %s16 = sadd.s32 1, %s12
    $region7: #{decoder_forward.5} parent=1 // loop_footer_branch
      %11 = sbr.rel target = $region3
    $region8: #{decoder_forward.5} parent=1 // loop_exit
      _

</llo_original>
